<compile_context>
chip_gen: v7x
topology: tpu7x:2x2x1
jax: 0.10.0
libtpu: 0.0.40
codegen_flags: <defaults>
</compile_context>

<pallas_src>
import math
import functools

import jax
import jax.numpy as jnp
from jax.experimental import pallas as pl
from jax.experimental.pallas import tpu as pltpu


# --------------------------------------------------------------------------
# Generation-aware VMEM budget (v7x: 64 MiB physical, v5e/v6e: 128 MiB)
# --------------------------------------------------------------------------

_VMEM_LIMIT_CACHE = None


def _vmem_limit():
    global _VMEM_LIMIT_CACHE
    if _VMEM_LIMIT_CACHE is None:
        cap = 128 * 1024 * 1024
        get_info = getattr(pltpu, "get_tpu_info", None)
        if get_info is not None:
            try:
                cap = int(getattr(get_info(), "vmem_capacity_bytes", cap))
            except Exception:
                pass
        # leave headroom for Mosaic-internal scratch / double buffering
        _VMEM_LIMIT_CACHE = int(min(max(cap - 16 * 1024 * 1024,
                                        32 * 1024 * 1024),
                                    112 * 1024 * 1024))
    return _VMEM_LIMIT_CACHE


# --------------------------------------------------------------------------
# In-kernel helpers
# --------------------------------------------------------------------------

def _fill_padded(xpad_ref, a, H, W, Cin):
    """Write a (H*W, Cin) tile into the interior of the (H+2, W+2, Cin) pad
    scratch and zero only the 1-pixel halo strips (the interior is fully
    overwritten every grid step, so re-zeroing it is wasted store slots).
    Rewriting the halo every step keeps the kernel megacore-safe."""
    zrow = jnp.zeros((1, W + 2, Cin), jnp.float32)
    zcol = jnp.zeros((H + 2, 1, Cin), jnp.float32)
    xpad_ref[0:1, :, :] = zrow
    xpad_ref[H + 1:H + 2, :, :] = zrow
    xpad_ref[:, 0:1, :] = zcol
    xpad_ref[:, W + 1:W + 2, :] = zcol
    xpad_ref[1:H + 1, 1:W + 1, :] = a.reshape(H, W, Cin)


def _im2col(xpad_ref, H, W, Cin):
    """(H+2, W+2, Cin) padded image -> (H*W, 9*Cin) bf16 im2col patch,
    K order = (ky, kx, cin), matching _prep_conv_weight."""
    HW = H * W
    xp = xpad_ref[...]
    return jnp.concatenate(
        [xp[ky:ky + H, kx:kx + W, :].reshape(HW, Cin)
         for ky in range(3) for kx in range(3)],
        axis=1).astype(jnp.bfloat16)


# --------------------------------------------------------------------------
# Pallas kernels
# --------------------------------------------------------------------------

def _make_conv_kernel(H, W, Cin, Cout, apply_act, emit_prologue_out):
    """Fused scale/shift(+ReLU) prologue + 3x3 SAME conv for one batch slab.

    Per grid step (one batch element):
      a    = relu?(x * pscale + pshift)        # fused ActNorm/BN apply
      out  = bias + im2col(pad(a)) @ W         # one MXU dot, K = 9*Cin
    Also emits per-step partial sums / sums-of-squares of the f32 accumulator
    (for BatchNorm batch stats) and optionally the pre-ReLU prologue result
    (the normalized in_a, needed for the coupling concat).
    """
    HW = H * W

    def body(x_ref, pscale_ref, pshift_ref, w_ref, b_ref,
             o_ref, zsum_ref, zsq_ref, a_out_ref, xpad_ref):
        x = x_ref[0].astype(jnp.float32)
        a0 = x * pscale_ref[...] + pshift_ref[...]
        a = jnp.maximum(a0, 0.0) if apply_act else a0
        if a_out_ref is not None:
            a_out_ref[0] = a0                     # normalized in_a (f32)

        _fill_padded(xpad_ref, a, H, W, Cin)
        patch = _im2col(xpad_ref, H, W, Cin)
        acc = jnp.dot(patch, w_ref[...],
                      preferred_element_type=jnp.float32) + b_ref[...]

        o_ref[0] = acc.astype(o_ref.dtype)        # bf16 hidden activation
        zsum_ref[0] = jnp.sum(acc, axis=0, keepdims=True)
        zsq_ref[0] = jnp.sum(acc * acc, axis=0, keepdims=True)

    if emit_prologue_out:
        def kernel(x_ref, ps, psh, w, b, o, zs, zq, a_out, xpad):
            body(x_ref, ps, psh, w, b, o, zs, zq, a_out, xpad)
    else:
        def kernel(x_ref, ps, psh, w, b, o, zs, zq, xpad):
            body(x_ref, ps, psh, w, b, o, zs, zq, None, xpad)
    return kernel


def _make_conv_couple_kernel(H, W, Cin, Cout, hc, apply_act):
    """Final 3x3 conv fused with ActNorm(in_b) + affine-coupling combine +
    per-sample logdet."""
    HW = H * W

    def kernel(x_ref, pscale_ref, pshift_ref, w_ref, b_ref,
               inb_ref, bscale_ref, bloc_ref, outb_ref, ld_ref, xpad_ref):
        x = x_ref[0].astype(jnp.float32)
        a0 = x * pscale_ref[...] + pshift_ref[...]
        a = jnp.maximum(a0, 0.0) if apply_act else a0

        _fill_padded(xpad_ref, a, H, W, Cin)
        patch = _im2col(xpad_ref, H, W, Cin)
        acc = jnp.dot(patch, w_ref[...],
                      preferred_element_type=jnp.float32) + b_ref[...]

        log_s = acc[:, :hc]
        t = acc[:, hc:]
        s = jax.nn.sigmoid(log_s)

        # ActNorm-apply on the in_b half, fused into the coupling combine.
        inb = (inb_ref[0] + bloc_ref[...]) * bscale_ref[...]
        outb_ref[0] = (inb + t) * s

        # Numerically safe log(sigmoid(x)) = x - m - log(exp(x-m) + exp(-m)),
        # m = max(x, 0); plain log(sigmoid(x)) underflows for very negative x.
        m = jnp.maximum(log_s, 0.0)
        log_sig = log_s - m - jnp.log(jnp.exp(log_s - m) + jnp.exp(-m))
        ld = jnp.sum(log_sig, axis=1, keepdims=True)        # (HW, 1)
        ld_ref[0] = jnp.sum(ld, axis=0, keepdims=True)       # (1, 1)

    return kernel


# --------------------------------------------------------------------------
# Pallas wrappers
# --------------------------------------------------------------------------

def _prep_conv_weight(w_oihw):
    """(Cout, Cin, 3, 3) -> (9*Cin, Cout) bf16, K order = (ky, kx, cin)."""
    Cout, Cin = w_oihw.shape[0], w_oihw.shape[1]
    return (jnp.transpose(w_oihw, (2, 3, 1, 0))      # (ky, kx, Cin, Cout)
            .reshape(9 * Cin, Cout).astype(jnp.bfloat16))


def conv3x3_pallas(x_rows, pscale, pshift, w_oihw, b, H, W, apply_act,
                   emit_prologue_out=False):
    """x_rows: (N, H*W, Cin) f32/bf16.  Returns
    (z bf16 (N,HW,Cout), zsum f32 (N,1,Cout), zsq f32 (N,1,Cout)
     [, a_norm f32 (N,HW,Cin)])."""
    N, HW, Cin = x_rows.shape
    Cout = w_oihw.shape[0]
    wk = _prep_conv_weight(w_oihw)
    kern = _make_conv_kernel(H, W, Cin, Cout, apply_act, emit_prologue_out)

    out_shape = [jax.ShapeDtypeStruct((N, HW, Cout), jnp.bfloat16),
                 jax.ShapeDtypeStruct((N, 1, Cout), jnp.float32),
                 jax.ShapeDtypeStruct((N, 1, Cout), jnp.float32)]
    out_specs = [pl.BlockSpec((1, HW, Cout), lambda n: (n, 0, 0)),
                 pl.BlockSpec((1, 1, Cout), lambda n: (n, 0, 0)),
                 pl.BlockSpec((1, 1, Cout), lambda n: (n, 0, 0))]
    if emit_prologue_out:
        out_shape.append(jax.ShapeDtypeStruct((N, HW, Cin), jnp.float32))
        out_specs.append(pl.BlockSpec((1, HW, Cin), lambda n: (n, 0, 0)))

    return pl.pallas_call(
        kern,
        out_shape=tuple(out_shape),
        grid=(N,),
        in_specs=[
            pl.BlockSpec((1, HW, Cin), lambda n: (n, 0, 0)),
            pl.BlockSpec((1, Cin), lambda n: (0, 0)),
            pl.BlockSpec((1, Cin), lambda n: (0, 0)),
            pl.BlockSpec((9 * Cin, Cout), lambda n: (0, 0)),
            pl.BlockSpec((1, Cout), lambda n: (0, 0)),
        ],
        out_specs=tuple(out_specs),
        scratch_shapes=[pltpu.VMEM((H + 2, W + 2, Cin), jnp.float32)],
        compiler_params=pltpu.CompilerParams(
            dimension_semantics=("parallel",),
            vmem_limit_bytes=_vmem_limit()),
    )(x_rows,
      pscale.reshape(1, Cin).astype(jnp.float32),
      pshift.reshape(1, Cin).astype(jnp.float32),
      wk, b.reshape(1, Cout).astype(jnp.float32))


def conv3x3_couple_pallas(x_rows, pscale, pshift, w_oihw, b,
                          inb_rows, bscale, bloc, H, W, apply_act):
    """Final conv + ActNorm(in_b) + coupling combine + logdet.
    Returns (out_b (N,HW,Cb) f32, logdet (N,) f32)."""
    N, HW, Cin = x_rows.shape
    Cout = w_oihw.shape[0]
    hc = math.ceil(Cout / 2)
    Cb = Cout - hc
    assert inb_rows.shape[-1] == Cb, (inb_rows.shape, Cb)
    wk = _prep_conv_weight(w_oihw)
    kern = _make_conv_couple_kernel(H, W, Cin, Cout, hc, apply_act)

    outb, ld = pl.pallas_call(
        kern,
        out_shape=(jax.ShapeDtypeStruct((N, HW, Cb), jnp.float32),
                   jax.ShapeDtypeStruct((N, 1, 1), jnp.float32)),
        grid=(N,),
        in_specs=[
            pl.BlockSpec((1, HW, Cin), lambda n: (n, 0, 0)),
            pl.BlockSpec((1, Cin), lambda n: (0, 0)),
            pl.BlockSpec((1, Cin), lambda n: (0, 0)),
            pl.BlockSpec((9 * Cin, Cout), lambda n: (0, 0)),
            pl.BlockSpec((1, Cout), lambda n: (0, 0)),
            pl.BlockSpec((1, HW, Cb), lambda n: (n, 0, 0)),
            pl.BlockSpec((1, Cb), lambda n: (0, 0)),
            pl.BlockSpec((1, Cb), lambda n: (0, 0)),
        ],
        out_specs=(pl.BlockSpec((1, HW, Cb), lambda n: (n, 0, 0)),
                   pl.BlockSpec((1, 1, 1), lambda n: (n, 0, 0))),
        scratch_shapes=[pltpu.VMEM((H + 2, W + 2, Cin), jnp.float32)],
        compiler_params=pltpu.CompilerParams(
            dimension_semantics=("parallel",),
            vmem_limit_bytes=_vmem_limit()),
    )(x_rows,
      pscale.reshape(1, Cin).astype(jnp.float32),
      pshift.reshape(1, Cin).astype(jnp.float32),
      wk, b.reshape(1, Cout).astype(jnp.float32),
      inb_rows,
      bscale.reshape(1, Cb).astype(jnp.float32),
      bloc.reshape(1, Cb).astype(jnp.float32))
    return outb, ld.reshape(N)


# --------------------------------------------------------------------------
# Small XLA helpers
# --------------------------------------------------------------------------

def _bn_scale_shift(zsum, zsq, gamma, beta, count, eps=1e-5):
    """Finish BatchNorm batch stats from per-sample partial sums."""
    s1 = jnp.sum(zsum, axis=(0, 1))
    s2 = jnp.sum(zsq, axis=(0, 1))
    mean = s1 / count
    var = jnp.maximum(s2 / count - mean * mean, 0.0)
    scale = gamma * jax.lax.rsqrt(var + eps)
    shift = beta - mean * scale
    return scale, shift


# --------------------------------------------------------------------------
# Pure-JAX reference helpers (NHWC, f32, HIGHEST precision)
# --------------------------------------------------------------------------

def conv3x3_ref_nhwc(x, w_oihw, b):
    wt = jnp.transpose(w_oihw, (2, 3, 1, 0))   # HWIO
    out = jax.lax.conv_general_dilated(
        x, wt, window_strides=(1, 1), padding="SAME",
        dimension_numbers=("NHWC", "HWIO", "NHWC"),
        precision=jax.lax.Precision.HIGHEST)
    return out + b.reshape(1, 1, 1, -1)


def batchnorm_relu_ref(x, gamma, beta, eps=1e-5):
    mean = jnp.mean(x, axis=(0, 1, 2), keepdims=True)
    var = jnp.var(x, axis=(0, 1, 2), keepdims=True)
    xn = (x - mean) * jax.lax.rsqrt(var + eps)
    return jax.nn.relu(xn * gamma.reshape(1, 1, 1, -1) + beta.reshape(1, 1, 1, -1))


# --------------------------------------------------------------------------
# Flow / Block / Glow (NHWC activations throughout)
# --------------------------------------------------------------------------

def flow_forward(x, fparams, mask_swap, use_pallas):
    """One Flow (ActNorm fused into the coupling kernels; conv_lu=2)."""
    N, H, W, C = x.shape

    # ActNorm data-dependent init (fresh module, training-mode first forward).
    flat = x.reshape(-1, C)
    mean = jnp.mean(flat, axis=0)
    std = jnp.std(flat, axis=0, ddof=1)          # torch .std() is unbiased
    loc = -mean
    scale = 1.0 / (std + 1e-6)
    an_logdet = H * W * jnp.sum(jnp.log(jnp.abs(scale)))

    layers = fparams["coupling"]["layers"]
    norms = fparams["coupling"]["norms"]
    n_layers = len(layers)
    ca = math.ceil(C / 2)

    if not use_pallas:
        # Reference path: ActNorm, then the coupling net, all in f32/HIGHEST.
        y = (x + loc) * scale
        in_a, in_b = y[..., :ca], y[..., ca:]
        if mask_swap:
            in_a, in_b = in_b, in_a
        h = in_a
        for i in range(n_layers - 1):
            h = conv3x3_ref_nhwc(h, layers[i]["w"], layers[i]["b"])
            h = batchnorm_relu_ref(h, norms[i]["gamma"], norms[i]["beta"])
        h = conv3x3_ref_nhwc(h, layers[-1]["w"], layers[-1]["b"])
        hc = math.ceil(h.shape[-1] / 2)
        log_s, t = h[..., :hc], h[..., hc:]
        s = jax.nn.sigmoid(log_s)
        out_b = (in_b + t) * s
        cp_logdet = jnp.sum(jnp.log(s).reshape(N, -1), axis=1)
        a_fin = in_a
    else:
        in_a, in_b = x[..., :ca], x[..., ca:]
        loc_a, loc_b = loc[:ca], loc[ca:]
        scale_a, scale_b = scale[:ca], scale[ca:]
        if mask_swap:
            in_a, in_b = in_b, in_a
            loc_a, loc_b = loc_b, loc_a
            scale_a, scale_b = scale_b, scale_a
        Ca, Cb = in_a.shape[-1], in_b.shape[-1]
        a_rows = in_a.reshape(N, H * W, Ca)
        count = N * H * W

        if n_layers >= 2:
            # First conv: ActNorm(in_a) fused into the prologue; emits the
            # normalized in_a and the BN stat partials of its output.
            z, zsum, zsq, a_norm_rows = conv3x3_pallas(
                a_rows, scale_a, loc_a * scale_a,
                layers[0]["w"], layers[0]["b"], H, W,
                apply_act=False, emit_prologue_out=True)
            pscale, pshift = _bn_scale_shift(
                zsum, zsq, norms[0]["gamma"], norms[0]["beta"], count)
            h_rows, act = z, True
            for i in range(1, n_layers - 1):
                z, zsum, zsq = conv3x3_pallas(
                    h_rows, pscale, pshift, layers[i]["w"], layers[i]["b"],
                    H, W, apply_act=True)
                pscale, pshift = _bn_scale_shift(
                    zsum, zsq, norms[i]["gamma"], norms[i]["beta"], count)
                h_rows = z
        else:
            # TODO(synk): no hidden layer -> ActNorm(in_a) as a tiny XLA op.
            a_norm_rows = (a_rows + loc_a) * scale_a
            h_rows, pscale, pshift, act = a_rows, scale_a, loc_a * scale_a, False

        inb_rows = in_b.reshape(N, H * W, Cb)
        outb_rows, cp_logdet = conv3x3_couple_pallas(
            h_rows, pscale, pshift, layers[-1]["w"], layers[-1]["b"],
            inb_rows, scale_b, loc_b, H, W, act)
        out_b = outb_rows.reshape(N, H, W, Cb)
        a_fin = a_norm_rows.reshape(N, H, W, Ca)

    if mask_swap:
        result = jnp.concatenate([out_b, a_fin], axis=-1)
    else:
        result = jnp.concatenate([a_fin, out_b], axis=-1)
    return result, an_logdet + cp_logdet


def squeeze_nhwc(x, fold):
    N, H, W, C = x.shape
    x = x.reshape(N, H // fold, fold, W // fold, fold, C)
    x = jnp.transpose(x, (0, 1, 3, 5, 2, 4))
    return x.reshape(N, H // fold, W // fold, C * fold * fold)


def unsqueeze_nhwc(x, fold):
    N, H, W, C = x.shape
    x = x.reshape(N, H, W, C // (fold * fold), fold, fold)
    x = jnp.transpose(x, (0, 1, 4, 2, 5, 3))
    return x.reshape(N, H * fold, W * fold, C // (fold * fold))


def glow_forward(x_nchw, params, squeeze_fold, use_pallas=True):
    # Single NCHW<->NHWC conversion at the boundary; NHWC inside.
    x = jnp.transpose(x_nchw, (0, 2, 3, 1)).astype(jnp.float32)
    N = x.shape[0]
    logdet = jnp.zeros((N,), jnp.float32)
    out = x
    for bparams in params["blocks"]:
        out = squeeze_nhwc(out, squeeze_fold)
        for i, fparams in enumerate(bparams["flows"]):
            out, det = flow_forward(out, fparams, mask_swap=bool(i % 2),
                                    use_pallas=use_pallas)
            logdet = logdet + det
        out = unsqueeze_nhwc(out, squeeze_fold)
    return jnp.transpose(out, (0, 3, 1, 2)), logdet


# --------------------------------------------------------------------------
# Deterministic parameter init (shapes follow the PyTorch __init__)
# --------------------------------------------------------------------------

def init_glow_params(key, in_channel, n_flow, n_block, squeeze_fold,
                     hidden_channels, affine=True):
    squeeze_dim = in_channel * squeeze_fold * squeeze_fold
    blocks = []
    for _ in range(n_block):
        flows = []
        for _ in range(n_flow):
            last_h = math.ceil(squeeze_dim / 2)
            vh = tuple(hidden_channels) + ((squeeze_dim,) if affine
                                           else (math.ceil(squeeze_dim / 2),))
            layers, norms = [], []
            for hch in vh:
                key, kw, kb = jax.random.split(key, 3)
                layers.append({
                    "w": 0.1 * jax.random.normal(kw, (hch, last_h, 3, 3),
                                                 jnp.float32),
                    "b": 0.01 * jax.random.normal(kb, (hch,), jnp.float32),
                })
                norms.append({
                    "gamma": jnp.ones((hch,), jnp.float32),
                    "beta": jnp.zeros((hch,), jnp.float32),
                })
                last_h = hch
            flows.append({"coupling": {"layers": layers, "norms": norms}})
        blocks.append({"flows": flows})
    return {"blocks": blocks}


# --------------------------------------------------------------------------

if __name__ == "__main__":
    key = jax.random.PRNGKey(0)
    kx, kp = jax.random.split(key)

    in_channel, n_flow, n_block, fold = 4, 2, 1, 2
    hidden_channels = (32,)

    x = jax.random.normal(kx, (2, in_channel, 16, 16), jnp.float32)
    params = init_glow_params(kp, in_channel, n_flow, n_block, fold,
                              hidden_channels)

    fwd_pallas = jax.jit(
        functools.partial(glow_forward, params=params, squeeze_fold=fold,
                          use_pallas=True))
    out, logdet = jax.block_until_ready(fwd_pallas(x))

    # Pure-JAX f32 reference (same math, no Pallas / no bf16) sanity check.
    ref_out, ref_ld = jax.block_until_ready(
        glow_forward(x, params, fold, use_pallas=False))

    assert out.shape == x.shape, out.shape
    assert logdet.shape == (x.shape[0],), logdet.shape
    assert bool(jnp.all(jnp.isfinite(out))) and bool(jnp.all(jnp.isfinite(logdet)))
    # bf16 MXU inputs / bf16 hidden activations vs. an f32 HIGHEST reference.
    assert jnp.allclose(out, ref_out, rtol=3e-2, atol=3e-2), \
        float(jnp.max(jnp.abs(out - ref_out)))
    assert jnp.allclose(logdet, ref_ld, rtol=3e-2, atol=3e-2), \
        float(jnp.max(jnp.abs(logdet - ref_ld)))

    print("KERNEL_OK")
</pallas_src>

<mosaic_0001>
module attributes {stable_mosaic.version = 11 : i64} {
  func.func @kernel(%arg0: i32, %arg1: memref<1x64x8xf32, #tpu.memory_space<vmem>>, %arg2: memref<1x8xf32, #tpu.memory_space<vmem>>, %arg3: memref<1x8xf32, #tpu.memory_space<vmem>>, %arg4: memref<72x32xbf16, #tpu.memory_space<vmem>>, %arg5: memref<1x32xf32, #tpu.memory_space<vmem>>, %arg6: memref<1x64x32xbf16, #tpu.memory_space<vmem>>, %arg7: memref<1x1x32xf32, #tpu.memory_space<vmem>>, %arg8: memref<1x1x32xf32, #tpu.memory_space<vmem>>, %arg9: memref<1x64x8xf32, #tpu.memory_space<vmem>>, %arg10: memref<10x10x8xf32, #tpu.memory_space<vmem>>) attributes {dimension_semantics = [#tpu.dimension_semantics<parallel>], iteration_bounds = array<i64: 2>, scalar_prefetch = 0 : i64, scratch_operands = 1 : i64, tpu.core_type = #tpu.core_type<tc>, window_params = [{transform_indices = @transform_0, window_bounds = array<i64: 1, 64, 8>}, {pipeline_mode = #tpu.pipeline_mode<synchronous>, transform_indices = @transform_1, window_bounds = array<i64: 1, 8>}, {pipeline_mode = #tpu.pipeline_mode<synchronous>, transform_indices = @transform_2, window_bounds = array<i64: 1, 8>}, {pipeline_mode = #tpu.pipeline_mode<synchronous>, transform_indices = @transform_3, window_bounds = array<i64: 72, 32>}, {pipeline_mode = #tpu.pipeline_mode<synchronous>, transform_indices = @transform_4, window_bounds = array<i64: 1, 32>}, {transform_indices = @transform_5, window_bounds = array<i64: 1, 64, 32>}, {transform_indices = @transform_6, window_bounds = array<i64: 1, 1, 32>}, {transform_indices = @transform_7, window_bounds = array<i64: 1, 1, 32>}, {transform_indices = @transform_8, window_bounds = array<i64: 1, 64, 8>}]} {
    %c0 = arith.constant 0 : index
    %c0_0 = arith.constant 0 : index
    %c0_1 = arith.constant 0 : index
    %0 = vector.load %arg1[%c0, %c0_0, %c0_1] : memref<1x64x8xf32, #tpu.memory_space<vmem>>, vector<1x64x8xf32>
    %1 = vector.shape_cast %0 : vector<1x64x8xf32> to vector<64x8xf32>
    %c0_2 = arith.constant 0 : index
    %c0_3 = arith.constant 0 : index
    %2 = vector.load %arg2[%c0_2, %c0_3] : memref<1x8xf32, #tpu.memory_space<vmem>>, vector<1x8xf32>
    %3 = vector.broadcast %2 : vector<1x8xf32> to vector<64x8xf32>
    %4 = arith.mulf %1, %3 : vector<64x8xf32>
    %c0_4 = arith.constant 0 : index
    %c0_5 = arith.constant 0 : index
    %5 = vector.load %arg3[%c0_4, %c0_5] : memref<1x8xf32, #tpu.memory_space<vmem>>, vector<1x8xf32>
    %6 = vector.broadcast %5 : vector<1x8xf32> to vector<64x8xf32>
    %7 = arith.addf %4, %6 : vector<64x8xf32>
    %c0_6 = arith.constant 0 : index
    %c0_7 = arith.constant 0 : index
    %c0_8 = arith.constant 0 : index
    %8 = vector.load %arg9[%c0_6, %c0_7, %c0_8] : memref<1x64x8xf32, #tpu.memory_space<vmem>>, vector<1x64x8xf32>
    %9 = vector.shape_cast %8 : vector<1x64x8xf32> to vector<64x8xf32>
    %10 = vector.shape_cast %7 : vector<64x8xf32> to vector<1x64x8xf32>
    tpu.vector_store %arg9[%c0_6, %c0_7, %c0_8], %10 {strides = array<i32>} : memref<1x64x8xf32, #tpu.memory_space<vmem>>, vector<1x64x8xf32>,
    %cst = arith.constant 0.000000e+00 : f32
    %11 = vector.broadcast %cst : f32 to vector<1x10x8xf32>
    %cst_9 = arith.constant 0.000000e+00 : f32
    %12 = vector.broadcast %cst_9 : f32 to vector<10x1x8xf32>
    %c0_10 = arith.constant 0 : index
    %c0_11 = arith.constant 0 : index
    %c0_12 = arith.constant 0 : index
    %13 = vector.load %arg10[%c0_10, %c0_11, %c0_12] : memref<10x10x8xf32, #tpu.memory_space<vmem>>, vector<1x10x8xf32>
    tpu.vector_store %arg10[%c0_10, %c0_11, %c0_12], %11 {strides = array<i32>} : memref<10x10x8xf32, #tpu.memory_space<vmem>>, vector<1x10x8xf32>,
    %c9 = arith.constant 9 : index
    %c0_13 = arith.constant 0 : index
    %c0_14 = arith.constant 0 : index
    %14 = vector.load %arg10[%c9, %c0_13, %c0_14] : memref<10x10x8xf32, #tpu.memory_space<vmem>>, vector<1x10x8xf32>
    tpu.vector_store %arg10[%c9, %c0_13, %c0_14], %11 {strides = array<i32>} : memref<10x10x8xf32, #tpu.memory_space<vmem>>, vector<1x10x8xf32>,
    %c0_15 = arith.constant 0 : index
    %c0_16 = arith.constant 0 : index
    %c0_17 = arith.constant 0 : index
    %15 = vector.load %arg10[%c0_15, %c0_16, %c0_17] : memref<10x10x8xf32, #tpu.memory_space<vmem>>, vector<10x1x8xf32>
    tpu.vector_store %arg10[%c0_15, %c0_16, %c0_17], %12 {strides = array<i32>} : memref<10x10x8xf32, #tpu.memory_space<vmem>>, vector<10x1x8xf32>,
    %c0_18 = arith.constant 0 : index
    %c9_19 = arith.constant 9 : index
    %c0_20 = arith.constant 0 : index
    %16 = vector.load %arg10[%c0_18, %c9_19, %c0_20] : memref<10x10x8xf32, #tpu.memory_space<vmem>>, vector<10x1x8xf32>
    tpu.vector_store %arg10[%c0_18, %c9_19, %c0_20], %12 {strides = array<i32>} : memref<10x10x8xf32, #tpu.memory_space<vmem>>, vector<10x1x8xf32>,
    %17 = vector.shape_cast %7 : vector<64x8xf32> to vector<8x8x8xf32>
    %c1 = arith.constant 1 : index
    %c1_21 = arith.constant 1 : index
    %c0_22 = arith.constant 0 : index
    %18 = vector.load %arg10[%c1, %c1_21, %c0_22] : memref<10x10x8xf32, #tpu.memory_space<vmem>>, vector<8x8x8xf32>
    tpu.vector_store %arg10[%c1, %c1_21, %c0_22], %17 {strides = array<i32>} : memref<10x10x8xf32, #tpu.memory_space<vmem>>, vector<8x8x8xf32>,
    %c0_23 = arith.constant 0 : index
    %c0_24 = arith.constant 0 : index
    %c0_25 = arith.constant 0 : index
    %19 = vector.load %arg10[%c0_23, %c0_24, %c0_25] : memref<10x10x8xf32, #tpu.memory_space<vmem>>, vector<10x10x8xf32>
    %20 = vector.extract_strided_slice %19 {offsets = [0, 0, 0], sizes = [8, 8, 8], strides = [1, 1, 1]} : vector<10x10x8xf32> to vector<8x8x8xf32>
    %21 = vector.shape_cast %20 : vector<8x8x8xf32> to vector<64x8xf32>
    %22 = vector.extract_strided_slice %19 {offsets = [0, 1, 0], sizes = [8, 8, 8], strides = [1, 1, 1]} : vector<10x10x8xf32> to vector<8x8x8xf32>
    %23 = vector.shape_cast %22 : vector<8x8x8xf32> to vector<64x8xf32>
    %24 = vector.extract_strided_slice %19 {offsets = [0, 2, 0], sizes = [8, 8, 8], strides = [1, 1, 1]} : vector<10x10x8xf32> to vector<8x8x8xf32>
    %25 = vector.shape_cast %24 : vector<8x8x8xf32> to vector<64x8xf32>
    %26 = vector.extract_strided_slice %19 {offsets = [1, 0, 0], sizes = [8, 8, 8], strides = [1, 1, 1]} : vector<10x10x8xf32> to vector<8x8x8xf32>
    %27 = vector.shape_cast %26 : vector<8x8x8xf32> to vector<64x8xf32>
    %28 = vector.extract_strided_slice %19 {offsets = [1, 1, 0], sizes = [8, 8, 8], strides = [1, 1, 1]} : vector<10x10x8xf32> to vector<8x8x8xf32>
    %29 = vector.shape_cast %28 : vector<8x8x8xf32> to vector<64x8xf32>
    %30 = vector.extract_strided_slice %19 {offsets = [1, 2, 0], sizes = [8, 8, 8], strides = [1, 1, 1]} : vector<10x10x8xf32> to vector<8x8x8xf32>
    %31 = vector.shape_cast %30 : vector<8x8x8xf32> to vector<64x8xf32>
    %32 = vector.extract_strided_slice %19 {offsets = [2, 0, 0], sizes = [8, 8, 8], strides = [1, 1, 1]} : vector<10x10x8xf32> to vector<8x8x8xf32>
    %33 = vector.shape_cast %32 : vector<8x8x8xf32> to vector<64x8xf32>
    %34 = vector.extract_strided_slice %19 {offsets = [2, 1, 0], sizes = [8, 8, 8], strides = [1, 1, 1]} : vector<10x10x8xf32> to vector<8x8x8xf32>
    %35 = vector.shape_cast %34 : vector<8x8x8xf32> to vector<64x8xf32>
    %36 = vector.extract_strided_slice %19 {offsets = [2, 2, 0], sizes = [8, 8, 8], strides = [1, 1, 1]} : vector<10x10x8xf32> to vector<8x8x8xf32>
    %37 = vector.shape_cast %36 : vector<8x8x8xf32> to vector<64x8xf32>
    %38 = tpu.concatenate %21, %23, %25, %27, %29, %31, %33, %35, %37 in 1 : vector<64x8xf32>, vector<64x8xf32>, vector<64x8xf32>, vector<64x8xf32>, vector<64x8xf32>, vector<64x8xf32>, vector<64x8xf32>, vector<64x8xf32>, vector<64x8xf32> -> vector<64x72xf32>
    %39 = arith.truncf %38 : vector<64x72xf32> to vector<64x72xbf16>
    %c0_26 = arith.constant 0 : index
    %c0_27 = arith.constant 0 : index
    %40 = vector.load %arg4[%c0_26, %c0_27] : memref<72x32xbf16, #tpu.memory_space<vmem>>, vector<72x32xbf16>
    %cst_28 = arith.constant dense<0.000000e+00> : vector<64x32xf32>
    %41 = tpu.matmul %39, %40, %cst_28 {dimension_numbers = #tpu.dot_dimension_numbers<[1], [0], [0], [1], [0, 0, 1, 1], [], []>} : vector<64x72xbf16>, vector<72x32xbf16>, vector<64x32xf32> -> vector<64x32xf32>
    %c0_29 = arith.constant 0 : index
    %c0_30 = arith.constant 0 : index
    %42 = vector.load %arg5[%c0_29, %c0_30] : memref<1x32xf32, #tpu.memory_space<vmem>>, vector<1x32xf32>
    %43 = vector.broadcast %42 : vector<1x32xf32> to vector<64x32xf32>
    %44 = arith.addf %41, %43 : vector<64x32xf32>
    %45 = arith.truncf %44 : vector<64x32xf32> to vector<64x32xbf16>
    %c0_31 = arith.constant 0 : index
    %c0_32 = arith.constant 0 : index
    %c0_33 = arith.constant 0 : index
    %46 = vector.load %arg6[%c0_31, %c0_32, %c0_33] : memref<1x64x32xbf16, #tpu.memory_space<vmem>>, vector<1x64x32xbf16>
    %47 = vector.shape_cast %46 : vector<1x64x32xbf16> to vector<64x32xbf16>
    %48 = vector.shape_cast %45 : vector<64x32xbf16> to vector<1x64x32xbf16>
    tpu.vector_store %arg6[%c0_31, %c0_32, %c0_33], %48 {strides = array<i32>} : memref<1x64x32xbf16, #tpu.memory_space<vmem>>, vector<1x64x32xbf16>,
    %cst_34 = arith.constant dense<0.000000e+00> : vector<32xf32>
    %49 = vector.multi_reduction <add>, %44, %cst_34 [0] : vector<64x32xf32> to vector<32xf32>
    %50 = vector.shape_cast %49 : vector<32xf32> to vector<1x32xf32>
    %c0_35 = arith.constant 0 : index
    %c0_36 = arith.constant 0 : index
    %c0_37 = arith.constant 0 : index
    %51 = vector.load %arg7[%c0_35, %c0_36, %c0_37] : memref<1x1x32xf32, #tpu.memory_space<vmem>>, vector<1x1x32xf32>
    %52 = vector.shape_cast %51 : vector<1x1x32xf32> to vector<1x32xf32>
    %53 = vector.shape_cast %50 : vector<1x32xf32> to vector<1x1x32xf32>
    tpu.vector_store %arg7[%c0_35, %c0_36, %c0_37], %53 {strides = array<i32>} : memref<1x1x32xf32, #tpu.memory_space<vmem>>, vector<1x1x32xf32>,
    %54 = arith.mulf %44, %44 : vector<64x32xf32>
    %cst_38 = arith.constant dense<0.000000e+00> : vector<32xf32>
    %55 = vector.multi_reduction <add>, %54, %cst_38 [0] : vector<64x32xf32> to vector<32xf32>
    %56 = vector.shape_cast %55 : vector<32xf32> to vector<1x32xf32>
    %c0_39 = arith.constant 0 : index
    %c0_40 = arith.constant 0 : index
    %c0_41 = arith.constant 0 : index
    %57 = vector.load %arg8[%c0_39, %c0_40, %c0_41] : memref<1x1x32xf32, #tpu.memory_space<vmem>>, vector<1x1x32xf32>
    %58 = vector.shape_cast %57 : vector<1x1x32xf32> to vector<1x32xf32>
    %59 = vector.shape_cast %56 : vector<1x32xf32> to vector<1x1x32xf32>
    tpu.vector_store %arg8[%c0_39, %c0_40, %c0_41], %59 {strides = array<i32>} : memref<1x1x32xf32, #tpu.memory_space<vmem>>, vector<1x1x32xf32>,
    return
  }
  func.func @transform_0(%arg0: i32) -> (i32, i32, i32) {
    %c0_i32 = arith.constant 0 : i32
    %c0_i32_0 = arith.constant 0 : i32
    %c0_i32_1 = arith.constant 0 : i32
    return %arg0, %c0_i32, %c0_i32_0 : i32, i32, i32
  }
  func.func @transform_1(%arg0: i32) -> (i32, i32) {
    %c0_i32 = arith.constant 0 : i32
    %c0_i32_0 = arith.constant 0 : i32
    %c0_i32_1 = arith.constant 0 : i32
    return %c0_i32, %c0_i32_0 : i32, i32
  }
  func.func @transform_2(%arg0: i32) -> (i32, i32) {
    %c0_i32 = arith.constant 0 : i32
    %c0_i32_0 = arith.constant 0 : i32
    %c0_i32_1 = arith.constant 0 : i32
    return %c0_i32, %c0_i32_0 : i32, i32
  }
  func.func @transform_3(%arg0: i32) -> (i32, i32) {
    %c0_i32 = arith.constant 0 : i32
    %c0_i32_0 = arith.constant 0 : i32
    %c0_i32_1 = arith.constant 0 : i32
    return %c0_i32, %c0_i32_0 : i32, i32
  }
  func.func @transform_4(%arg0: i32) -> (i32, i32) {
    %c0_i32 = arith.constant 0 : i32
    %c0_i32_0 = arith.constant 0 : i32
    %c0_i32_1 = arith.constant 0 : i32
    return %c0_i32, %c0_i32_0 : i32, i32
  }
  func.func @transform_5(%arg0: i32) -> (i32, i32, i32) {
    %c0_i32 = arith.constant 0 : i32
    %c0_i32_0 = arith.constant 0 : i32
    %c0_i32_1 = arith.constant 0 : i32
    return %arg0, %c0_i32, %c0_i32_0 : i32, i32, i32
  }
  func.func @transform_6(%arg0: i32) -> (i32, i32, i32) {
    %c0_i32 = arith.constant 0 : i32
    %c0_i32_0 = arith.constant 0 : i32
    %c0_i32_1 = arith.constant 0 : i32
    return %arg0, %c0_i32, %c0_i32_0 : i32, i32, i32
  }
  func.func @transform_7(%arg0: i32) -> (i32, i32, i32) {
    %c0_i32 = arith.constant 0 : i32
    %c0_i32_0 = arith.constant 0 : i32
    %c0_i32_1 = arith.constant 0 : i32
    return %arg0, %c0_i32, %c0_i32_0 : i32, i32, i32
  }
  func.func @transform_8(%arg0: i32) -> (i32, i32, i32) {
    %c0_i32 = arith.constant 0 : i32
    %c0_i32_0 = arith.constant 0 : i32
    %c0_i32_1 = arith.constant 0 : i32
    return %arg0, %c0_i32, %c0_i32_0 : i32, i32, i32
  }
}

module attributes {stable_mosaic.version = 11 : i64} {
  func.func @kernel(%arg0: i32, %arg1: memref<1x64x32xbf16, #tpu.memory_space<vmem>>, %arg2: memref<1x32xf32, #tpu.memory_space<vmem>>, %arg3: memref<1x32xf32, #tpu.memory_space<vmem>>, %arg4: memref<288x16xbf16, #tpu.memory_space<vmem>>, %arg5: memref<1x16xf32, #tpu.memory_space<vmem>>, %arg6: memref<1x64x8xf32, #tpu.memory_space<vmem>>, %arg7: memref<1x8xf32, #tpu.memory_space<vmem>>, %arg8: memref<1x8xf32, #tpu.memory_space<vmem>>, %arg9: memref<1x64x8xf32, #tpu.memory_space<vmem>>, %arg10: memref<1x1x1xf32, #tpu.memory_space<vmem>>, %arg11: memref<10x10x32xf32, #tpu.memory_space<vmem>>) attributes {dimension_semantics = [#tpu.dimension_semantics<parallel>], iteration_bounds = array<i64: 2>, scalar_prefetch = 0 : i64, scratch_operands = 1 : i64, tpu.core_type = #tpu.core_type<tc>, window_params = [{transform_indices = @transform_0, window_bounds = array<i64: 1, 64, 32>}, {pipeline_mode = #tpu.pipeline_mode<synchronous>, transform_indices = @transform_1, window_bounds = array<i64: 1, 32>}, {pipeline_mode = #tpu.pipeline_mode<synchronous>, transform_indices = @transform_2, window_bounds = array<i64: 1, 32>}, {pipeline_mode = #tpu.pipeline_mode<synchronous>, transform_indices = @transform_3, window_bounds = array<i64: 288, 16>}, {pipeline_mode = #tpu.pipeline_mode<synchronous>, transform_indices = @transform_4, window_bounds = array<i64: 1, 16>}, {transform_indices = @transform_5, window_bounds = array<i64: 1, 64, 8>}, {pipeline_mode = #tpu.pipeline_mode<synchronous>, transform_indices = @transform_6, window_bounds = array<i64: 1, 8>}, {pipeline_mode = #tpu.pipeline_mode<synchronous>, transform_indices = @transform_7, window_bounds = array<i64: 1, 8>}, {transform_indices = @transform_8, window_bounds = array<i64: 1, 64, 8>}, {transform_indices = @transform_9, window_bounds = array<i64: 1, 1, 1>}]} {
    %c0 = arith.constant 0 : index
    %c0_0 = arith.constant 0 : index
    %c0_1 = arith.constant 0 : index
    %0 = vector.load %arg1[%c0, %c0_0, %c0_1] : memref<1x64x32xbf16, #tpu.memory_space<vmem>>, vector<1x64x32xbf16>
    %1 = vector.shape_cast %0 : vector<1x64x32xbf16> to vector<64x32xbf16>
    %2 = arith.extf %1 : vector<64x32xbf16> to vector<64x32xf32>
    %c0_2 = arith.constant 0 : index
    %c0_3 = arith.constant 0 : index
    %3 = vector.load %arg2[%c0_2, %c0_3] : memref<1x32xf32, #tpu.memory_space<vmem>>, vector<1x32xf32>
    %4 = vector.broadcast %3 : vector<1x32xf32> to vector<64x32xf32>
    %5 = arith.mulf %2, %4 : vector<64x32xf32>
    %c0_4 = arith.constant 0 : index
    %c0_5 = arith.constant 0 : index
    %6 = vector.load %arg3[%c0_4, %c0_5] : memref<1x32xf32, #tpu.memory_space<vmem>>, vector<1x32xf32>
    %7 = vector.broadcast %6 : vector<1x32xf32> to vector<64x32xf32>
    %8 = arith.addf %5, %7 : vector<64x32xf32>
    %cst = arith.constant 0.000000e+00 : f32
    %9 = vector.broadcast %cst : f32 to vector<64x32xf32>
    %10 = arith.maximumf %8, %9 : vector<64x32xf32>
    %cst_6 = arith.constant 0.000000e+00 : f32
    %11 = vector.broadcast %cst_6 : f32 to vector<1x10x32xf32>
    %cst_7 = arith.constant 0.000000e+00 : f32
    %12 = vector.broadcast %cst_7 : f32 to vector<10x1x32xf32>
    %c0_8 = arith.constant 0 : index
    %c0_9 = arith.constant 0 : index
    %c0_10 = arith.constant 0 : index
    %13 = vector.load %arg11[%c0_8, %c0_9, %c0_10] : memref<10x10x32xf32, #tpu.memory_space<vmem>>, vector<1x10x32xf32>
    tpu.vector_store %arg11[%c0_8, %c0_9, %c0_10], %11 {strides = array<i32>} : memref<10x10x32xf32, #tpu.memory_space<vmem>>, vector<1x10x32xf32>,
    %c9 = arith.constant 9 : index
    %c0_11 = arith.constant 0 : index
    %c0_12 = arith.constant 0 : index
    %14 = vector.load %arg11[%c9, %c0_11, %c0_12] : memref<10x10x32xf32, #tpu.memory_space<vmem>>, vector<1x10x32xf32>
    tpu.vector_store %arg11[%c9, %c0_11, %c0_12], %11 {strides = array<i32>} : memref<10x10x32xf32, #tpu.memory_space<vmem>>, vector<1x10x32xf32>,
    %c0_13 = arith.constant 0 : index
    %c0_14 = arith.constant 0 : index
    %c0_15 = arith.constant 0 : index
    %15 = vector.load %arg11[%c0_13, %c0_14, %c0_15] : memref<10x10x32xf32, #tpu.memory_space<vmem>>, vector<10x1x32xf32>
    tpu.vector_store %arg11[%c0_13, %c0_14, %c0_15], %12 {strides = array<i32>} : memref<10x10x32xf32, #tpu.memory_space<vmem>>, vector<10x1x32xf32>,
    %c0_16 = arith.constant 0 : index
    %c9_17 = arith.constant 9 : index
    %c0_18 = arith.constant 0 : index
    %16 = vector.load %arg11[%c0_16, %c9_17, %c0_18] : memref<10x10x32xf32, #tpu.memory_space<vmem>>, vector<10x1x32xf32>
    tpu.vector_store %arg11[%c0_16, %c9_17, %c0_18], %12 {strides = array<i32>} : memref<10x10x32xf32, #tpu.memory_space<vmem>>, vector<10x1x32xf32>,
    %17 = vector.shape_cast %10 : vector<64x32xf32> to vector<8x8x32xf32>
    %c1 = arith.constant 1 : index
    %c1_19 = arith.constant 1 : index
    %c0_20 = arith.constant 0 : index
    %18 = vector.load %arg11[%c1, %c1_19, %c0_20] : memref<10x10x32xf32, #tpu.memory_space<vmem>>, vector<8x8x32xf32>
    tpu.vector_store %arg11[%c1, %c1_19, %c0_20], %17 {strides = array<i32>} : memref<10x10x32xf32, #tpu.memory_space<vmem>>, vector<8x8x32xf32>,
    %c0_21 = arith.constant 0 : index
    %c0_22 = arith.constant 0 : index
    %c0_23 = arith.constant 0 : index
    %19 = vector.load %arg11[%c0_21, %c0_22, %c0_23] : memref<10x10x32xf32, #tpu.memory_space<vmem>>, vector<10x10x32xf32>
    %20 = vector.extract_strided_slice %19 {offsets = [0, 0, 0], sizes = [8, 8, 32], strides = [1, 1, 1]} : vector<10x10x32xf32> to vector<8x8x32xf32>
    %21 = vector.shape_cast %20 : vector<8x8x32xf32> to vector<64x32xf32>
    %22 = vector.extract_strided_slice %19 {offsets = [0, 1, 0], sizes = [8, 8, 32], strides = [1, 1, 1]} : vector<10x10x32xf32> to vector<8x8x32xf32>
    %23 = vector.shape_cast %22 : vector<8x8x32xf32> to vector<64x32xf32>
    %24 = vector.extract_strided_slice %19 {offsets = [0, 2, 0], sizes = [8, 8, 32], strides = [1, 1, 1]} : vector<10x10x32xf32> to vector<8x8x32xf32>
    %25 = vector.shape_cast %24 : vector<8x8x32xf32> to vector<64x32xf32>
    %26 = vector.extract_strided_slice %19 {offsets = [1, 0, 0], sizes = [8, 8, 32], strides = [1, 1, 1]} : vector<10x10x32xf32> to vector<8x8x32xf32>
    %27 = vector.shape_cast %26 : vector<8x8x32xf32> to vector<64x32xf32>
    %28 = vector.extract_strided_slice %19 {offsets = [1, 1, 0], sizes = [8, 8, 32], strides = [1, 1, 1]} : vector<10x10x32xf32> to vector<8x8x32xf32>
    %29 = vector.shape_cast %28 : vector<8x8x32xf32> to vector<64x32xf32>
    %30 = vector.extract_strided_slice %19 {offsets = [1, 2, 0], sizes = [8, 8, 32], strides = [1, 1, 1]} : vector<10x10x32xf32> to vector<8x8x32xf32>
    %31 = vector.shape_cast %30 : vector<8x8x32xf32> to vector<64x32xf32>
    %32 = vector.extract_strided_slice %19 {offsets = [2, 0, 0], sizes = [8, 8, 32], strides = [1, 1, 1]} : vector<10x10x32xf32> to vector<8x8x32xf32>
    %33 = vector.shape_cast %32 : vector<8x8x32xf32> to vector<64x32xf32>
    %34 = vector.extract_strided_slice %19 {offsets = [2, 1, 0], sizes = [8, 8, 32], strides = [1, 1, 1]} : vector<10x10x32xf32> to vector<8x8x32xf32>
    %35 = vector.shape_cast %34 : vector<8x8x32xf32> to vector<64x32xf32>
    %36 = vector.extract_strided_slice %19 {offsets = [2, 2, 0], sizes = [8, 8, 32], strides = [1, 1, 1]} : vector<10x10x32xf32> to vector<8x8x32xf32>
    %37 = vector.shape_cast %36 : vector<8x8x32xf32> to vector<64x32xf32>
    %38 = tpu.concatenate %21, %23, %25, %27, %29, %31, %33, %35, %37 in 1 : vector<64x32xf32>, vector<64x32xf32>, vector<64x32xf32>, vector<64x32xf32>, vector<64x32xf32>, vector<64x32xf32>, vector<64x32xf32>, vector<64x32xf32>, vector<64x32xf32> -> vector<64x288xf32>
    %39 = arith.truncf %38 : vector<64x288xf32> to vector<64x288xbf16>
    %c0_24 = arith.constant 0 : index
    %c0_25 = arith.constant 0 : index
    %40 = vector.load %arg4[%c0_24, %c0_25] : memref<288x16xbf16, #tpu.memory_space<vmem>>, vector<288x16xbf16>
    %cst_26 = arith.constant dense<0.000000e+00> : vector<64x16xf32>
    %41 = tpu.matmul %39, %40, %cst_26 {dimension_numbers = #tpu.dot_dimension_numbers<[1], [0], [0], [1], [0, 0, 1, 1], [], []>} : vector<64x288xbf16>, vector<288x16xbf16>, vector<64x16xf32> -> vector<64x16xf32>
    %c0_27 = arith.constant 0 : index
    %c0_28 = arith.constant 0 : index
    %42 = vector.load %arg5[%c0_27, %c0_28] : memref<1x16xf32, #tpu.memory_space<vmem>>, vector<1x16xf32>
    %43 = vector.broadcast %42 : vector<1x16xf32> to vector<64x16xf32>
    %44 = arith.addf %41, %43 : vector<64x16xf32>
    %45 = vector.extract_strided_slice %44 {offsets = [0, 0], sizes = [64, 8], strides = [1, 1]} : vector<64x16xf32> to vector<64x8xf32>
    %46 = vector.extract_strided_slice %44 {offsets = [0, 8], sizes = [64, 8], strides = [1, 1]} : vector<64x16xf32> to vector<64x8xf32>
    %47 = arith.negf %45 : vector<64x8xf32>
    %48 = math.exp %47 : vector<64x8xf32>
    %cst_29 = arith.constant 1.000000e+00 : f32
    %49 = vector.broadcast %cst_29 : f32 to vector<64x8xf32>
    %50 = arith.addf %49, %48 : vector<64x8xf32>
    %51 = arith.divf %49, %50 : vector<64x8xf32>
    %c0_30 = arith.constant 0 : index
    %c0_31 = arith.constant 0 : index
    %c0_32 = arith.constant 0 : index
    %52 = vector.load %arg6[%c0_30, %c0_31, %c0_32] : memref<1x64x8xf32, #tpu.memory_space<vmem>>, vector<1x64x8xf32>
    %53 = vector.shape_cast %52 : vector<1x64x8xf32> to vector<64x8xf32>
    %c0_33 = arith.constant 0 : index
    %c0_34 = arith.constant 0 : index
    %54 = vector.load %arg8[%c0_33, %c0_34] : memref<1x8xf32, #tpu.memory_space<vmem>>, vector<1x8xf32>
    %55 = vector.broadcast %54 : vector<1x8xf32> to vector<64x8xf32>
    %56 = arith.addf %53, %55 : vector<64x8xf32>
    %c0_35 = arith.constant 0 : index
    %c0_36 = arith.constant 0 : index
    %57 = vector.load %arg7[%c0_35, %c0_36] : memref<1x8xf32, #tpu.memory_space<vmem>>, vector<1x8xf32>
    %58 = vector.broadcast %57 : vector<1x8xf32> to vector<64x8xf32>
    %59 = arith.mulf %56, %58 : vector<64x8xf32>
    %60 = arith.addf %59, %46 : vector<64x8xf32>
    %61 = arith.mulf %60, %51 : vector<64x8xf32>
    %c0_37 = arith.constant 0 : index
    %c0_38 = arith.constant 0 : index
    %c0_39 = arith.constant 0 : index
    %62 = vector.load %arg9[%c0_37, %c0_38, %c0_39] : memref<1x64x8xf32, #tpu.memory_space<vmem>>, vector<1x64x8xf32>
    %63 = vector.shape_cast %62 : vector<1x64x8xf32> to vector<64x8xf32>
    %64 = vector.shape_cast %61 : vector<64x8xf32> to vector<1x64x8xf32>
    tpu.vector_store %arg9[%c0_37, %c0_38, %c0_39], %64 {strides = array<i32>} : memref<1x64x8xf32, #tpu.memory_space<vmem>>, vector<1x64x8xf32>,
    %cst_40 = arith.constant 0.000000e+00 : f32
    %65 = vector.broadcast %cst_40 : f32 to vector<64x8xf32>
    %66 = arith.maximumf %45, %65 : vector<64x8xf32>
    %67 = arith.subf %45, %66 : vector<64x8xf32>
    %68 = arith.subf %45, %66 : vector<64x8xf32>
    %69 = math.exp %68 : vector<64x8xf32>
    %cst_41 = arith.constant 0.000000e+00 : f32
    %70 = vector.broadcast %cst_41 : f32 to vector<64x8xf32>
    %71 = arith.subf %70, %66 : vector<64x8xf32>
    %72 = math.exp %71 : vector<64x8xf32>
    %73 = arith.addf %69, %72 : vector<64x8xf32>
    %74 = math.log %73 : vector<64x8xf32>
    %75 = arith.subf %67, %74 : vector<64x8xf32>
    %cst_42 = arith.constant dense<0.000000e+00> : vector<64xf32>
    %76 = vector.multi_reduction <add>, %75, %cst_42 [1] : vector<64x8xf32> to vector<64xf32>
    %77 = vector.shape_cast %76 : vector<64xf32> to vector<64x1xf32>
    %cst_43 = arith.constant dense<0.000000e+00> : vector<1xf32>
    %78 = vector.multi_reduction <add>, %77, %cst_43 [0] : vector<64x1xf32> to vector<1xf32>
    %79 = vector.shape_cast %78 : vector<1xf32> to vector<1x1xf32>
    %c0_44 = arith.constant 0 : index
    %c0_45 = arith.constant 0 : index
    %c0_46 = arith.constant 0 : index
    %80 = vector.load %arg10[%c0_44, %c0_45, %c0_46] : memref<1x1x1xf32, #tpu.memory_space<vmem>>, vector<1x1x1xf32>
    %81 = vector.shape_cast %80 : vector<1x1x1xf32> to vector<1x1xf32>
    %82 = vector.shape_cast %79 : vector<1x1xf32> to vector<1x1x1xf32>
    tpu.vector_store %arg10[%c0_44, %c0_45, %c0_46], %82 {strides = array<i32>} : memref<1x1x1xf32, #tpu.memory_space<vmem>>, vector<1x1x1xf32>,
    return
  }
  func.func @transform_0(%arg0: i32) -> (i32, i32, i32) {
    %c0_i32 = arith.constant 0 : i32
    %c0_i32_0 = arith.constant 0 : i32
    %c0_i32_1 = arith.constant 0 : i32
    return %arg0, %c0_i32, %c0_i32_0 : i32, i32, i32
  }
  func.func @transform_1(%arg0: i32) -> (i32, i32) {
    %c0_i32 = arith.constant 0 : i32
    %c0_i32_0 = arith.constant 0 : i32
    %c0_i32_1 = arith.constant 0 : i32
    return %c0_i32, %c0_i32_0 : i32, i32
  }
  func.func @transform_2(%arg0: i32) -> (i32, i32) {
    %c0_i32 = arith.constant 0 : i32
    %c0_i32_0 = arith.constant 0 : i32
    %c0_i32_1 = arith.constant 0 : i32
    return %c0_i32, %c0_i32_0 : i32, i32
  }
  func.func @transform_3(%arg0: i32) -> (i32, i32) {
    %c0_i32 = arith.constant 0 : i32
    %c0_i32_0 = arith.constant 0 : i32
    %c0_i32_1 = arith.constant 0 : i32
    return %c0_i32, %c0_i32_0 : i32, i32
  }
  func.func @transform_4(%arg0: i32) -> (i32, i32) {
    %c0_i32 = arith.constant 0 : i32
    %c0_i32_0 = arith.constant 0 : i32
    %c0_i32_1 = arith.constant 0 : i32
    return %c0_i32, %c0_i32_0 : i32, i32
  }
  func.func @transform_5(%arg0: i32) -> (i32, i32, i32) {
    %c0_i32 = arith.constant 0 : i32
    %c0_i32_0 = arith.constant 0 : i32
    %c0_i32_1 = arith.constant 0 : i32
    return %arg0, %c0_i32, %c0_i32_0 : i32, i32, i32
  }
  func.func @transform_6(%arg0: i32) -> (i32, i32) {
    %c0_i32 = arith.constant 0 : i32
    %c0_i32_0 = arith.constant 0 : i32
    %c0_i32_1 = arith.constant 0 : i32
    return %c0_i32, %c0_i32_0 : i32, i32
  }
  func.func @transform_7(%arg0: i32) -> (i32, i32) {
    %c0_i32 = arith.constant 0 : i32
    %c0_i32_0 = arith.constant 0 : i32
    %c0_i32_1 = arith.constant 0 : i32
    return %c0_i32, %c0_i32_0 : i32, i32
  }
  func.func @transform_8(%arg0: i32) -> (i32, i32, i32) {
    %c0_i32 = arith.constant 0 : i32
    %c0_i32_0 = arith.constant 0 : i32
    %c0_i32_1 = arith.constant 0 : i32
    return %arg0, %c0_i32, %c0_i32_0 : i32, i32, i32
  }
  func.func @transform_9(%arg0: i32) -> (i32, i32, i32) {
    %c0_i32 = arith.constant 0 : i32
    %c0_i32_0 = arith.constant 0 : i32
    %c0_i32_1 = arith.constant 0 : i32
    return %arg0, %c0_i32, %c0_i32_0 : i32, i32, i32
  }
}

</mosaic_0001>

<llo_original>
// kernel: glow_forward.4
$region0: #{glow_forward.4}
  #allocation0 [shape = 'u32[]', space=smem, size = 0x4, offset = 0x4, fixed_abs, tag = 'smem constant byte address 0x4 - core index']
  #allocation1 [shape = 'u32[144,128]{1,0:T(1,128)}', space=vmem, size = 0x12000, scoped, tag = 'internal scratch']
  #allocation2 [shape = 'f32[10,10,8]{2,1,0:T(8,128)}', space=vmem, size = 0x14000, scoped, tag = 'scratch operand']
  %s0 = inlined_call_operand.hbm [shape: f32[2,64,8], index: 0, kind: input, shape index: {}]
  %s1 = inlined_call_operand.hbm [shape: f32[1,8], index: 1, kind: input, shape index: {}]
  %s2 = inlined_call_operand.hbm [shape: f32[1,8], index: 2, kind: input, shape index: {}]
  %s3 = inlined_call_operand.hbm [shape: bf16[72,32], index: 3, kind: input, shape index: {}]
  %s4 = inlined_call_operand.hbm [shape: f32[1,32], index: 4, kind: input, shape index: {}]
  %s5 = inlined_call_operand.hbm [shape: bf16[2,64,32], index: 5, kind: output, shape index: {0}]
  %s6 = inlined_call_operand.hbm [shape: f32[2,1,32], index: 6, kind: output, shape index: {1}]
  %s7 = inlined_call_operand.hbm [shape: f32[2,1,32], index: 7, kind: output, shape index: {2}]
  %s8 = inlined_call_operand.hbm [shape: f32[2,64,8], index: 8, kind: output, shape index: {3}]
  %9 = xla_tuple %s5, %s6, %s7, %s8
  %s10 = sld [smem:[#allocation0]]
  $region97: #{glow_forward.4} parent=0
    _
  %s12 = ssub.s32 1, %s10
  %s13 = scalar_select 0, %s12, %s10
  $region1: #{glow_forward.4} parent=0
    #allocation3 [shape = 'u8[65536]{0}', space=vmem, size = 0x10000, scoped, tag = 'input window, operand 0']
    #allocation4 [shape = 's32[2]{0}', space=sflag, size = 0x8, scoped, tag = 'scoped memory for glow_forward.4']
    #allocation5 [shape = 's32[2]{0}', space=sflag, size = 0x8, scoped, tag = 'scoped memory for glow_forward.4']
    #allocation6 [shape = 'u8[512]{0}', space=vmem, size = 0x400, scoped, tag = 'input window, operand 1, single buffered']
    #allocation7 [shape = 's32[1]{0}', space=sflag, size = 0x4, scoped, tag = 'scoped memory for glow_forward.4']
    #allocation8 [shape = 'u8[512]{0}', space=vmem, size = 0x400, scoped, tag = 'input window, operand 2, single buffered']
    #allocation9 [shape = 'u8[18432]{0}', space=vmem, size = 0x4800, scoped, tag = 'input window, operand 3, single buffered']
    #allocation10 [shape = 's32[1]{0}', space=sflag, size = 0x4, scoped, tag = 'scoped memory for glow_forward.4']
    #allocation11 [shape = 'u8[512]{0}', space=vmem, size = 0x400, scoped, tag = 'input window, operand 4, single buffered']
    #allocation12 [shape = 'u8[32768]{0}', space=vmem, size = 0x8000, scoped, tag = 'output window, operand 0']
    #allocation13 [shape = 'u8[1024]{0}', space=vmem, size = 0x400, scoped, tag = 'output window, operand 1']
    #allocation14 [shape = 's32[2]{0}', space=sflag, size = 0x8, scoped, tag = 'scoped memory for glow_forward.4']
    #allocation15 [shape = 'u8[1024]{0}', space=vmem, size = 0x400, scoped, tag = 'output window, operand 2']
    #allocation16 [shape = 'u8[65536]{0}', space=vmem, size = 0x10000, scoped, tag = 'output window, operand 3']
    #allocation17 [shape = 's32[2]{0}', space=sflag, size = 0x8, scoped, tag = 'scoped memory for glow_forward.4']
    %14 = vsyncpa [#allocation4], 0
    %s15 = scalar_lea.sflag [#allocation4], 1
    %16 = vsyncpa %s15, 0
    %17 = vsyncpa [#allocation7], 0
    %18 = vsyncpa [#allocation10], 0
    %19 = vsyncpa [#allocation5], 0
    %s20 = scalar_lea.sflag [#allocation5], 1
    %21 = vsyncpa %s20, 0
    %22 = vsyncpa [#allocation14], 0
    %s23 = scalar_lea.sflag [#allocation14], 1
    %24 = vsyncpa %s23, 0
    %25 = vsyncpa [#allocation17], 0
    %s26 = scalar_lea.sflag [#allocation17], 1
    %27 = vsyncpa %s26, 0
    loop: start=0, step=1, limit=4
    $region2: #{glow_forward.4} parent=1 // loop_pre_header
      _
    $region3: #{glow_forward.4} parent=1 // loop_header
      %s29 = sphi 0, %s33
      %p30 = scmp.ge.s32.totalorder %s29, 4
      %s39 = sphi 0, %s41
      %s42 = sphi 0, %s39
      %s43 = sphi 0, %s42
      %s59 = sphi 0, %s43
      %s63 = sphi 0, %s63
      %s65 = sphi 0, %s63
      %s66 = sphi 0, %s65
      %s80 = sphi 0, %s66
      %s84 = sphi 0, %s84
      %s86 = sphi 0, %s84
      %s87 = sphi 0, %s86
      %s101 = sphi 0, %s87
      %s105 = sphi 0, %s105
      %s107 = sphi 0, %s105
      %s108 = sphi 0, %s107
      %s122 = sphi 0, %s108
      %s126 = sphi 0, %s126
      %s128 = sphi 0, %s126
      %s129 = sphi 0, %s128
      %s143 = sphi 0, %s129
      %s149 = sphi 0, %s151
      %s152 = sphi 0, %s149
      %s153 = sphi 0, %s152
      %s169 = sphi 0, %s153
      %s175 = sphi 0, %s177
      %s178 = sphi 0, %s175
      %s179 = sphi 0, %s178
      %s195 = sphi 0, %s179
      %s201 = sphi 0, %s203
      %s204 = sphi 0, %s201
      %s205 = sphi 0, %s204
      %s221 = sphi 0, %s205
      %s227 = sphi 0, %s229
      %s230 = sphi 0, %s227
      %s231 = sphi 0, %s230
      %s247 = sphi 0, %s231
    $region4: #{glow_forward.4} parent=1 // loop_header_branch
      %32 = sbr.rel (%p30) target = $region8
    $region5: #{glow_forward.4} parent=1 // loop_body
      %s34 = ssub.s32 %s29, 1
      %s35 = ssub.s32 %s29, 2
      %s36 = sadd.s32 %s29, 1
      %s37 = ssub.s32 %s29, %s36
      %p38 = scmp.eq.s32.totalorder %s37, 0
      %s40 = sadd.s32 %s39, 1
      %s41 = scalar_select %p38, %s39, %s40
      %p44 = pneg %p38
      %p45 = scmp.eq.s32.totalorder %s29, 1
      %p46 = por %p44, %p45
      %p47 = scmp.ne.s32.totalorder %s39, %s42
      %p48 = scmp.eq.s32.totalorder %s29, 0
      %p49 = por %p47, %p48
      %p50 = scmp.ne.s32.totalorder %s39, %s42
      %p51 = scmp.eq.s32.totalorder %s34, 1
      %p52 = por %p50, %p51
      %p53 = scmp.ne.s32.totalorder %s42, %s43
      %p54 = scmp.eq.s32.totalorder %s34, 0
      %p55 = por %p53, %p54
      %p56 = scmp.ne.s32.totalorder %s42, %s43
      %p57 = scmp.eq.s32.totalorder %s35, 1
      %p58 = por %p56, %p57
      %p60 = scmp.ne.s32.totalorder %s43, %s59
      %p61 = scmp.eq.s32.totalorder %s35, 0
      %p62 = por %p60, %p61
      %s64 = sadd.s32 %s63, 1
      %p67 = scmp.eq.s32.totalorder %s29, 1
      %p68 = scmp.ne.s32.totalorder %s63, %s65
      %p69 = scmp.eq.s32.totalorder %s29, 0
      %p70 = por %p68, %p69
      %p71 = scmp.ne.s32.totalorder %s63, %s65
      %p72 = scmp.eq.s32.totalorder %s34, 1
      %p73 = por %p71, %p72
      %p74 = scmp.ne.s32.totalorder %s65, %s66
      %p75 = scmp.eq.s32.totalorder %s34, 0
      %p76 = por %p74, %p75
      %p77 = scmp.ne.s32.totalorder %s65, %s66
      %p78 = scmp.eq.s32.totalorder %s35, 1
      %p79 = por %p77, %p78
      %p81 = scmp.ne.s32.totalorder %s66, %s80
      %p82 = scmp.eq.s32.totalorder %s35, 0
      %p83 = por %p81, %p82
      %s85 = sadd.s32 %s84, 1
      %p88 = scmp.eq.s32.totalorder %s29, 1
      %p89 = scmp.ne.s32.totalorder %s84, %s86
      %p90 = scmp.eq.s32.totalorder %s29, 0
      %p91 = por %p89, %p90
      %p92 = scmp.ne.s32.totalorder %s84, %s86
      %p93 = scmp.eq.s32.totalorder %s34, 1
      %p94 = por %p92, %p93
      %p95 = scmp.ne.s32.totalorder %s86, %s87
      %p96 = scmp.eq.s32.totalorder %s34, 0
      %p97 = por %p95, %p96
      %p98 = scmp.ne.s32.totalorder %s86, %s87
      %p99 = scmp.eq.s32.totalorder %s35, 1
      %p100 = por %p98, %p99
      %p102 = scmp.ne.s32.totalorder %s87, %s101
      %p103 = scmp.eq.s32.totalorder %s35, 0
      %p104 = por %p102, %p103
      %s106 = sadd.s32 %s105, 1
      %p109 = scmp.eq.s32.totalorder %s29, 1
      %p110 = scmp.ne.s32.totalorder %s105, %s107
      %p111 = scmp.eq.s32.totalorder %s29, 0
      %p112 = por %p110, %p111
      %p113 = scmp.ne.s32.totalorder %s105, %s107
      %p114 = scmp.eq.s32.totalorder %s34, 1
      %p115 = por %p113, %p114
      %p116 = scmp.ne.s32.totalorder %s107, %s108
      %p117 = scmp.eq.s32.totalorder %s34, 0
      %p118 = por %p116, %p117
      %p119 = scmp.ne.s32.totalorder %s107, %s108
      %p120 = scmp.eq.s32.totalorder %s35, 1
      %p121 = por %p119, %p120
      %p123 = scmp.ne.s32.totalorder %s108, %s122
      %p124 = scmp.eq.s32.totalorder %s35, 0
      %p125 = por %p123, %p124
      %s127 = sadd.s32 %s126, 1
      %p130 = scmp.eq.s32.totalorder %s29, 1
      %p131 = scmp.ne.s32.totalorder %s126, %s128
      %p132 = scmp.eq.s32.totalorder %s29, 0
      %p133 = por %p131, %p132
      %p134 = scmp.ne.s32.totalorder %s126, %s128
      %p135 = scmp.eq.s32.totalorder %s34, 1
      %p136 = por %p134, %p135
      %p137 = scmp.ne.s32.totalorder %s128, %s129
      %p138 = scmp.eq.s32.totalorder %s34, 0
      %p139 = por %p137, %p138
      %p140 = scmp.ne.s32.totalorder %s128, %s129
      %p141 = scmp.eq.s32.totalorder %s35, 1
      %p142 = por %p140, %p141
      %p144 = scmp.ne.s32.totalorder %s129, %s143
      %p145 = scmp.eq.s32.totalorder %s35, 0
      %p146 = por %p144, %p145
      %s147 = ssub.s32 %s29, %s36
      %p148 = scmp.eq.s32.totalorder %s147, 0
      %s150 = sadd.s32 %s149, 1
      %s151 = scalar_select %p148, %s149, %s150
      %p154 = pneg %p148
      %p155 = scmp.eq.s32.totalorder %s29, 1
      %p156 = por %p154, %p155
      %p157 = scmp.ne.s32.totalorder %s149, %s152
      %p158 = scmp.eq.s32.totalorder %s29, 0
      %p159 = por %p157, %p158
      %p160 = scmp.ne.s32.totalorder %s149, %s152
      %p161 = scmp.eq.s32.totalorder %s34, 1
      %p162 = por %p160, %p161
      %p163 = scmp.ne.s32.totalorder %s152, %s153
      %p164 = scmp.eq.s32.totalorder %s34, 0
      %p165 = por %p163, %p164
      %p166 = scmp.ne.s32.totalorder %s152, %s153
      %p167 = scmp.eq.s32.totalorder %s35, 1
      %p168 = por %p166, %p167
      %p170 = scmp.ne.s32.totalorder %s153, %s169
      %p171 = scmp.eq.s32.totalorder %s35, 0
      %p172 = por %p170, %p171
      %s173 = ssub.s32 %s29, %s36
      %p174 = scmp.eq.s32.totalorder %s173, 0
      %s176 = sadd.s32 %s175, 1
      %s177 = scalar_select %p174, %s175, %s176
      %p180 = pneg %p174
      %p181 = scmp.eq.s32.totalorder %s29, 1
      %p182 = por %p180, %p181
      %p183 = scmp.ne.s32.totalorder %s175, %s178
      %p184 = scmp.eq.s32.totalorder %s29, 0
      %p185 = por %p183, %p184
      %p186 = scmp.ne.s32.totalorder %s175, %s178
      %p187 = scmp.eq.s32.totalorder %s34, 1
      %p188 = por %p186, %p187
      %p189 = scmp.ne.s32.totalorder %s178, %s179
      %p190 = scmp.eq.s32.totalorder %s34, 0
      %p191 = por %p189, %p190
      %p192 = scmp.ne.s32.totalorder %s178, %s179
      %p193 = scmp.eq.s32.totalorder %s35, 1
      %p194 = por %p192, %p193
      %p196 = scmp.ne.s32.totalorder %s179, %s195
      %p197 = scmp.eq.s32.totalorder %s35, 0
      %p198 = por %p196, %p197
      %s199 = ssub.s32 %s29, %s36
      %p200 = scmp.eq.s32.totalorder %s199, 0
      %s202 = sadd.s32 %s201, 1
      %s203 = scalar_select %p200, %s201, %s202
      %p206 = pneg %p200
      %p207 = scmp.eq.s32.totalorder %s29, 1
      %p208 = por %p206, %p207
      %p209 = scmp.ne.s32.totalorder %s201, %s204
      %p210 = scmp.eq.s32.totalorder %s29, 0
      %p211 = por %p209, %p210
      %p212 = scmp.ne.s32.totalorder %s201, %s204
      %p213 = scmp.eq.s32.totalorder %s34, 1
      %p214 = por %p212, %p213
      %p215 = scmp.ne.s32.totalorder %s204, %s205
      %p216 = scmp.eq.s32.totalorder %s34, 0
      %p217 = por %p215, %p216
      %p218 = scmp.ne.s32.totalorder %s204, %s205
      %p219 = scmp.eq.s32.totalorder %s35, 1
      %p220 = por %p218, %p219
      %p222 = scmp.ne.s32.totalorder %s205, %s221
      %p223 = scmp.eq.s32.totalorder %s35, 0
      %p224 = por %p222, %p223
      %s225 = ssub.s32 %s29, %s36
      %p226 = scmp.eq.s32.totalorder %s225, 0
      %s228 = sadd.s32 %s227, 1
      %s229 = scalar_select %p226, %s227, %s228
      %p232 = pneg %p226
      %p233 = scmp.eq.s32.totalorder %s29, 1
      %p234 = por %p232, %p233
      %p235 = scmp.ne.s32.totalorder %s227, %s230
      %p236 = scmp.eq.s32.totalorder %s29, 0
      %p237 = por %p235, %p236
      %p238 = scmp.ne.s32.totalorder %s227, %s230
      %p239 = scmp.eq.s32.totalorder %s34, 1
      %p240 = por %p238, %p239
      %p241 = scmp.ne.s32.totalorder %s230, %s231
      %p242 = scmp.eq.s32.totalorder %s34, 0
      %p243 = por %p241, %p242
      %p244 = scmp.ne.s32.totalorder %s230, %s231
      %p245 = scmp.eq.s32.totalorder %s35, 1
      %p246 = por %p244, %p245
      %p248 = scmp.ne.s32.totalorder %s231, %s247
      %p249 = scmp.eq.s32.totalorder %s35, 0
      %p250 = por %p248, %p249
      %p251 = scmp.le.s32.totalorder 1, %s29
      %p252 = scmp.lt.s32.totalorder %s29, 3
      %p253 = pnand %p251, %p252
      %p254 = pneg %p253
      // Predicated region
      $region9: #{glow_forward.4} parent=5 // pred_check
        _
      $region10: #{glow_forward.4} parent=5 // pred_check_branch
        %256 = sbr.rel (%p253) target = $region12
      $region11: #{glow_forward.4} parent=5 // pred_region
        %s257 = ssub.s32 %s29, 1
        // Predicated region
        $region13: #{glow_forward.4} parent=11 // pred_check
          %p258 = pneg %p76
        $region14: #{glow_forward.4} parent=11 // pred_check_branch
          %260 = sbr.rel (%p258) target = $region16
        $region15: #{glow_forward.4} parent=11 // pred_region
          %s262 = ssub.s32 16, 16
          %263 = vsyncadd [#allocation7], %s262
          %s265 = sshll.u32 [#allocation6], 4
          %s266 = int_to_ptr.vmem [resolvable:$true] %s265
          %268 = dma.hbm_to_vmem [thread:$0]  %s1, 16, %s266, [#allocation7]
        $region16: #{glow_forward.4} parent=11 // pred_fallthru
          _
        // Predicated region
        $region17: #{glow_forward.4} parent=11 // pred_check
          %p269 = pneg %p97
        $region18: #{glow_forward.4} parent=11 // pred_check_branch
          %271 = sbr.rel (%p269) target = $region20
        $region19: #{glow_forward.4} parent=11 // pred_region
          %s273 = ssub.s32 16, 16
          %274 = vsyncadd [#allocation7], %s273
          %s276 = sshll.u32 [#allocation8], 4
          %s277 = int_to_ptr.vmem [resolvable:$true] %s276
          %279 = dma.hbm_to_vmem [thread:$0]  %s2, 16, %s277, [#allocation7]
        $region20: #{glow_forward.4} parent=11 // pred_fallthru
          _
        // Predicated region
        $region21: #{glow_forward.4} parent=11 // pred_check
          %p280 = pneg %p118
        $region22: #{glow_forward.4} parent=11 // pred_check_branch
          %282 = sbr.rel (%p280) target = $region24
        $region23: #{glow_forward.4} parent=11 // pred_region
          %s284 = ssub.s32 576, 576
          %285 = vsyncadd [#allocation10], %s284
          %s286 = sshll.u32 [#allocation9], 4
          %s287 = int_to_ptr.vmem [resolvable:$true] %s286
          %292 = dma.hbm_to_vmem [thread:$0]  %s3, 576, %s287, [#allocation10], 64, 64, 4
        $region24: #{glow_forward.4} parent=11 // pred_fallthru
          _
        // Predicated region
        $region25: #{glow_forward.4} parent=11 // pred_check
          %p293 = pneg %p139
        $region26: #{glow_forward.4} parent=11 // pred_check_branch
          %295 = sbr.rel (%p293) target = $region28
        $region27: #{glow_forward.4} parent=11 // pred_region
          %s297 = ssub.s32 16, 16
          %298 = vsyncadd [#allocation10], %s297
          %s300 = sshll.u32 [#allocation11], 4
          %s301 = int_to_ptr.vmem [resolvable:$true] %s300
          %303 = dma.hbm_to_vmem [thread:$0]  %s4, 16, %s301, [#allocation10]
        $region28: #{glow_forward.4} parent=11 // pred_fallthru
          _
      $region12: #{glow_forward.4} parent=5 // pred_fallthru
        _
      %p304 = scmp.lt.s32.totalorder %s29, 2
      // Predicated region
      $region29: #{glow_forward.4} parent=5 // pred_check
        %p305 = pneg %p304
      $region30: #{glow_forward.4} parent=5 // pred_check_branch
        %307 = sbr.rel (%p305) target = $region32
      $region31: #{glow_forward.4} parent=5 // pred_region
        // Predicated region
        $region33: #{glow_forward.4} parent=31 // pred_check
          %p308 = pneg %p49
        $region34: #{glow_forward.4} parent=31 // pred_check_branch
          %310 = sbr.rel (%p308) target = $region36
        $region35: #{glow_forward.4} parent=31 // pred_region
          %s311 = sand.u32 %s39, 1
          %s312 = scalar_lea.sflag [#allocation4], %s311
          %s313 = sand.u32 %s39, 1
          %s314 = smul.addr %s313, 64
          %s315 = scalar_lea.vmem [#allocation3], %s314
          %s317 = ssub.s32 1024, 1024
          %318 = vsyncadd %s312, %s317
          %s319 = smul.addr %s29, 8
          %s320 = smul.addr %s319, 128
          %s321 = scalar_lea.hbm %s0, %s320
          %s322 = sshll.u32 %s315, 4
          %s323 = int_to_ptr.vmem [resolvable:$true] %s322
          %328 = dma.hbm_to_vmem [thread:$0]  %s321, 1024, %s323, %s312, 128, 128, 8
        $region36: #{glow_forward.4} parent=31 // pred_fallthru
          _
      $region32: #{glow_forward.4} parent=5 // pred_fallthru
        _
      %p329 = scmp.le.s32.totalorder 1, %s29
      %p330 = scmp.lt.s32.totalorder %s29, 3
      %p331 = pnand %p329, %p330
      %p332 = pneg %p331
      // Predicated region
      $region37: #{glow_forward.4} parent=5 // pred_check
        _
      $region38: #{glow_forward.4} parent=5 // pred_check_branch
        %334 = sbr.rel (%p331) target = $region40
      $region39: #{glow_forward.4} parent=5 // pred_region
        %s335 = ssub.s32 %s29, 1
        %s336 = sand.u32 %s42, 1
        %s337 = scalar_lea.sflag [#allocation4], %s336
        %s338 = sand.u32 %s42, 1
        %s339 = smul.addr %s338, 64
        %s340 = scalar_lea.vmem [#allocation3], %s339
        // Predicated region
        $region41: #{glow_forward.4} parent=39 // pred_check
          %p341 = pneg %p55
        $region42: #{glow_forward.4} parent=39 // pred_check_branch
          %343 = sbr.rel (%p341) target = $region44
        $region43: #{glow_forward.4} parent=39 // pred_region
          %344 = dma.done %s337, 1024
        $region44: #{glow_forward.4} parent=39 // pred_fallthru
          _
        // Predicated region
        $region45: #{glow_forward.4} parent=39 // pred_check
          %p345 = pneg %p76
        $region46: #{glow_forward.4} parent=39 // pred_check_branch
          %347 = sbr.rel (%p345) target = $region48
        $region47: #{glow_forward.4} parent=39 // pred_region
          %348 = dma.done [#allocation7], 16
        $region48: #{glow_forward.4} parent=39 // pred_fallthru
          _
        // Predicated region
        $region49: #{glow_forward.4} parent=39 // pred_check
          %p349 = pneg %p97
        $region50: #{glow_forward.4} parent=39 // pred_check_branch
          %351 = sbr.rel (%p349) target = $region52
        $region51: #{glow_forward.4} parent=39 // pred_region
          %352 = dma.done [#allocation7], 16
        $region52: #{glow_forward.4} parent=39 // pred_fallthru
          _
        // Predicated region
        $region53: #{glow_forward.4} parent=39 // pred_check
          %p353 = pneg %p118
        $region54: #{glow_forward.4} parent=39 // pred_check_branch
          %355 = sbr.rel (%p353) target = $region56
        $region55: #{glow_forward.4} parent=39 // pred_region
          %356 = dma.done [#allocation10], 576
        $region56: #{glow_forward.4} parent=39 // pred_fallthru
          _
        // Predicated region
        $region57: #{glow_forward.4} parent=39 // pred_check
          %p357 = pneg %p139
        $region58: #{glow_forward.4} parent=39 // pred_check_branch
          %359 = sbr.rel (%p357) target = $region60
        $region59: #{glow_forward.4} parent=39 // pred_region
          %360 = dma.done [#allocation10], 16
        $region60: #{glow_forward.4} parent=39 // pred_fallthru
          _
        %s361 = sand.u32 %s42, 1
        %s362 = scalar_lea.sflag [#allocation4], %s361
        %s363 = sand.u32 %s42, 1
        %s364 = smul.addr %s363, 64
        %s365 = scalar_lea.vmem [#allocation3], %s364
        %p366 = pneg %p55
        %p367 = pneg %p52
        %p368 = pneg %p76
        %p369 = pneg %p73
        %p370 = pneg %p97
        %p371 = pneg %p94
        %p372 = pneg %p118
        %p373 = pneg %p115
        %p374 = pneg %p139
        %p375 = pneg %p136
        %p376 = pneg %p165
        %p377 = pneg %p162
        %s378 = sand.u32 %s152, 1
        %s379 = scalar_lea.sflag [#allocation5], %s378
        %s380 = sand.u32 %s152, 1
        %s381 = smul.addr %s380, 32
        %s382 = scalar_lea.vmem [#allocation12], %s381
        %p383 = pneg %p191
        %p384 = pneg %p188
        %s385 = sand.u32 %s34, 1
        %s386 = scalar_lea.sflag [#allocation14], %s385
        %s387 = sand.u32 %s178, 1
        %s388 = scalar_lea.vmem [#allocation13], %s387
        %p389 = pneg %p217
        %p390 = pneg %p214
        %s391 = sand.u32 %s34, 1
        %s392 = scalar_lea.sflag [#allocation14], %s391
        %s393 = sand.u32 %s204, 1
        %s394 = scalar_lea.vmem [#allocation15], %s393
        %p395 = pneg %p243
        %p396 = pneg %p240
        %s397 = sand.u32 %s230, 1
        %s398 = scalar_lea.sflag [#allocation17], %s397
        %s399 = sand.u32 %s230, 1
        %s400 = smul.addr %s399, 64
        %s401 = scalar_lea.vmem [#allocation16], %s400
        %v403 = vld [vmem:[%s340] sm:$0xff]
        %v404 = vld [vmem:[%s340 + $0x8] sm:$0xff]
        %v405 = vld [vmem:[%s340 + $0x10] sm:$0xff]
        %v406 = vld [vmem:[%s340 + $0x18] sm:$0xff]
        %v407 = vld [vmem:[%s340 + $0x20] sm:$0xff]
        %v408 = vld [vmem:[%s340 + $0x28] sm:$0xff]
        %v409 = vld [vmem:[%s340 + $0x30] sm:$0xff]
        %v410 = vld [vmem:[%s340 + $0x38] sm:$0xff]
        %v411 = vld [vmem:[#allocation6] sm:$0x1]
        %v413 = vlaneseq
        %v414 = vshrl.u32 %v413, 7
        %v415 = vsub.s32 0, %v414
        %v416 = vrot.slane %v411, %v415
        %v418 = vmul.f32 %v403, %v416
        %v419 = vmul.f32 %v404, %v416
        %v420 = vmul.f32 %v405, %v416
        %v421 = vmul.f32 %v406, %v416
        %v422 = vmul.f32 %v407, %v416
        %v423 = vmul.f32 %v408, %v416
        %v424 = vmul.f32 %v409, %v416
        %v425 = vmul.f32 %v410, %v416
        %v426 = vld [vmem:[#allocation8] sm:$0x1]
        %v428 = vlaneseq
        %v429 = vshrl.u32 %v428, 7
        %v430 = vsub.s32 0, %v429
        %v431 = vrot.slane %v426, %v430
        %v433 = vadd.f32 %v418, %v431
        %v434 = vadd.f32 %v419, %v431
        %v435 = vadd.f32 %v420, %v431
        %v436 = vadd.f32 %v421, %v431
        %v437 = vadd.f32 %v422, %v431
        %v438 = vadd.f32 %v423, %v431
        %v439 = vadd.f32 %v424, %v431
        %v440 = vadd.f32 %v425, %v431
        %vm441 = vcmask 64512
        %442 = vst.msk [vmem:[%s401] sm:$0xff] %vm441, %v433
        %443 = vst.msk [vmem:[%s401 + $0x8] sm:$0xff] %vm441, %v434
        %444 = vst.msk [vmem:[%s401 + $0x10] sm:$0xff] %vm441, %v435
        %445 = vst.msk [vmem:[%s401 + $0x18] sm:$0xff] %vm441, %v436
        %446 = vst.msk [vmem:[%s401 + $0x20] sm:$0xff] %vm441, %v437
        %447 = vst.msk [vmem:[%s401 + $0x28] sm:$0xff] %vm441, %v438
        %448 = vst.msk [vmem:[%s401 + $0x30] sm:$0xff] %vm441, %v439
        %449 = vst.msk [vmem:[%s401 + $0x38] sm:$0xff] %vm441, %v440
        %450 = vst.msk [vmem:[#allocation2] sm:$0xff] %vm441, 0.0
        %vm451 = vcmask 58368
        %452 = vst.msk [vmem:[#allocation2 + $0x8] sm:$0x3] %vm451, 0.0
        %s453 = scalar_lea.vmem [#allocation2], 144
        %454 = vst.msk [vmem:[%s453] sm:$0xff] %vm441, 0.0
        %455 = vst.msk [vmem:[%s453 + $0x8] sm:$0x3] %vm451, 0.0
        %vm456 = vcmask 57344
        %457 = vst.msk [vmem:[#allocation2] sm:$0x1] %vm456, 0.0
        %458 = vst.msk [vmem:[#allocation2 + $0x10] sm:$0x1] %vm456, 0.0
        %459 = vst.msk [vmem:[#allocation2 + $0x20] sm:$0x1] %vm456, 0.0
        %460 = vst.msk [vmem:[#allocation2 + $0x30] sm:$0x1] %vm456, 0.0
        %461 = vst.msk [vmem:[#allocation2 + $0x40] sm:$0x1] %vm456, 0.0
        %462 = vst.msk [vmem:[#allocation2 + $0x50] sm:$0x1] %vm456, 0.0
        %463 = vst.msk [vmem:[#allocation2 + $0x60] sm:$0x1] %vm456, 0.0
        %464 = vst.msk [vmem:[#allocation2 + $0x70] sm:$0x1] %vm456, 0.0
        %465 = vst.msk [vmem:[#allocation2 + $0x80] sm:$0x1] %vm456, 0.0
        %466 = vst.msk [vmem:[#allocation2 + $0x90] sm:$0x1] %vm456, 0.0
        %467 = vst.msk [vmem:[#allocation2 + $0x9] sm:$0x1] %vm456, 0.0
        %468 = vst.msk [vmem:[#allocation2 + $0x19] sm:$0x1] %vm456, 0.0
        %469 = vst.msk [vmem:[#allocation2 + $0x29] sm:$0x1] %vm456, 0.0
        %470 = vst.msk [vmem:[#allocation2 + $0x39] sm:$0x1] %vm456, 0.0
        %471 = vst.msk [vmem:[#allocation2 + $0x49] sm:$0x1] %vm456, 0.0
        %472 = vst.msk [vmem:[#allocation2 + $0x59] sm:$0x1] %vm456, 0.0
        %473 = vst.msk [vmem:[#allocation2 + $0x69] sm:$0x1] %vm456, 0.0
        %474 = vst.msk [vmem:[#allocation2 + $0x79] sm:$0x1] %vm456, 0.0
        %475 = vst.msk [vmem:[#allocation2 + $0x89] sm:$0x1] %vm456, 0.0
        %476 = vst.msk [vmem:[#allocation2 + $0x99] sm:$0x1] %vm456, 0.0
        %s477 = scalar_lea.vmem [#allocation2], 16
        %478 = vst.msk [vmem:[%s477 + $0x1] sm:$0xff] %vm441, %v433
        %479 = vst.msk [vmem:[%s477 + $0x11] sm:$0xff] %vm441, %v434
        %480 = vst.msk [vmem:[%s477 + $0x21] sm:$0xff] %vm441, %v435
        %481 = vst.msk [vmem:[%s477 + $0x31] sm:$0xff] %vm441, %v436
        %482 = vst.msk [vmem:[%s477 + $0x41] sm:$0xff] %vm441, %v437
        %483 = vst.msk [vmem:[%s477 + $0x51] sm:$0xff] %vm441, %v438
        %484 = vst.msk [vmem:[%s477 + $0x61] sm:$0xff] %vm441, %v439
        %485 = vst.msk [vmem:[%s477 + $0x71] sm:$0xff] %vm441, %v440
        %v486 = vld [vmem:[#allocation2] sm:$0xff]
        %v487 = vld [vmem:[#allocation2 + $0x8] sm:$0x3]
        %v488 = vld [vmem:[#allocation2 + $0x10] sm:$0xff]
        %v489 = vld [vmem:[#allocation2 + $0x18] sm:$0x3]
        %v490 = vld [vmem:[#allocation2 + $0x20] sm:$0xff]
        %v491 = vld [vmem:[#allocation2 + $0x28] sm:$0x3]
        %v492 = vld [vmem:[#allocation2 + $0x30] sm:$0xff]
        %v493 = vld [vmem:[#allocation2 + $0x38] sm:$0x3]
        %v494 = vld [vmem:[#allocation2 + $0x40] sm:$0xff]
        %v495 = vld [vmem:[#allocation2 + $0x48] sm:$0x3]
        %v496 = vld [vmem:[#allocation2 + $0x50] sm:$0xff]
        %v497 = vld [vmem:[#allocation2 + $0x58] sm:$0x3]
        %v498 = vld [vmem:[#allocation2 + $0x60] sm:$0xff]
        %v499 = vld [vmem:[#allocation2 + $0x68] sm:$0x3]
        %v500 = vld [vmem:[#allocation2 + $0x70] sm:$0xff]
        %v501 = vld [vmem:[#allocation2 + $0x78] sm:$0x3]
        %v502 = vld [vmem:[#allocation2 + $0x80] sm:$0xff]
        %v503 = vld [vmem:[#allocation2 + $0x88] sm:$0x3]
        %v504 = vld [vmem:[#allocation2 + $0x90] sm:$0xff]
        %v505 = vld [vmem:[#allocation2 + $0x98] sm:$0x3]
        %vm522 = vcmask 1046528
        %v523 = vrot.slane %v486, 1
        %v524 = vrot.slane %v487, 1
        %v525 = vsel %vm522, %v523, %v524
        %v526 = vrot.slane %v488, 1
        %v527 = vrot.slane %v489, 1
        %v528 = vsel %vm522, %v526, %v527
        %v529 = vrot.slane %v490, 1
        %v530 = vrot.slane %v491, 1
        %v531 = vsel %vm522, %v529, %v530
        %v532 = vrot.slane %v492, 1
        %v533 = vrot.slane %v493, 1
        %v534 = vsel %vm522, %v532, %v533
        %v535 = vrot.slane %v494, 1
        %v536 = vrot.slane %v495, 1
        %v537 = vsel %vm522, %v535, %v536
        %v538 = vrot.slane %v496, 1
        %v539 = vrot.slane %v497, 1
        %v540 = vsel %vm522, %v538, %v539
        %v541 = vrot.slane %v498, 1
        %v542 = vrot.slane %v499, 1
        %v543 = vsel %vm522, %v541, %v542
        %v544 = vrot.slane %v500, 1
        %v545 = vrot.slane %v501, 1
        %v546 = vsel %vm522, %v544, %v545
        %vm547 = vcmask 1045504
        %v548 = vrot.slane %v486, 2
        %v549 = vrot.slane %v487, 2
        %v550 = vsel %vm547, %v548, %v549
        %v551 = vrot.slane %v488, 2
        %v552 = vrot.slane %v489, 2
        %v553 = vsel %vm547, %v551, %v552
        %v554 = vrot.slane %v490, 2
        %v555 = vrot.slane %v491, 2
        %v556 = vsel %vm547, %v554, %v555
        %v557 = vrot.slane %v492, 2
        %v558 = vrot.slane %v493, 2
        %v559 = vsel %vm547, %v557, %v558
        %v560 = vrot.slane %v494, 2
        %v561 = vrot.slane %v495, 2
        %v562 = vsel %vm547, %v560, %v561
        %v563 = vrot.slane %v496, 2
        %v564 = vrot.slane %v497, 2
        %v565 = vsel %vm547, %v563, %v564
        %v566 = vrot.slane %v498, 2
        %v567 = vrot.slane %v499, 2
        %v568 = vsel %vm547, %v566, %v567
        %v569 = vrot.slane %v500, 2
        %v570 = vrot.slane %v501, 2
        %v571 = vsel %vm547, %v569, %v570
        %v574 = vrot.slane %v502, 1
        %v575 = vrot.slane %v503, 1
        %v576 = vsel %vm522, %v574, %v575
        %v577 = vrot.slane %v502, 2
        %v578 = vrot.slane %v503, 2
        %v579 = vsel %vm547, %v577, %v578
        %v582 = vrot.slane %v504, 1
        %v583 = vrot.slane %v505, 1
        %v584 = vsel %vm522, %v582, %v583
        %v585 = vrot.slane %v504, 2
        %v586 = vrot.slane %v505, 2
        %v587 = vsel %vm547, %v585, %v586
        %588 = vrot.lane.b32.xlu0 %v525, 8
        %v589 = vpop.permute.xlu0 %588
        %590 = vrot.lane.b32.xlu0 %v528, 8
        %v591 = vpop.permute.xlu0 %590
        %592 = vrot.lane.b32.xlu0 %v531, 8
        %v593 = vpop.permute.xlu0 %592
        %594 = vrot.lane.b32.xlu0 %v534, 8
        %v595 = vpop.permute.xlu0 %594
        %596 = vrot.lane.b32.xlu0 %v537, 8
        %v597 = vpop.permute.xlu0 %596
        %598 = vrot.lane.b32.xlu0 %v540, 8
        %v599 = vpop.permute.xlu0 %598
        %600 = vrot.lane.b32.xlu0 %v543, 8
        %v601 = vpop.permute.xlu0 %600
        %602 = vrot.lane.b32.xlu0 %v546, 8
        %v603 = vpop.permute.xlu0 %602
        %612 = vrot.lane.b32.xlu0 %v550, 16
        %v613 = vpop.permute.xlu0 %612
        %614 = vrot.lane.b32.xlu0 %v553, 16
        %v615 = vpop.permute.xlu0 %614
        %616 = vrot.lane.b32.xlu0 %v556, 16
        %v617 = vpop.permute.xlu0 %616
        %618 = vrot.lane.b32.xlu0 %v559, 16
        %v619 = vpop.permute.xlu0 %618
        %620 = vrot.lane.b32.xlu0 %v562, 16
        %v621 = vpop.permute.xlu0 %620
        %622 = vrot.lane.b32.xlu0 %v565, 16
        %v623 = vpop.permute.xlu0 %622
        %624 = vrot.lane.b32.xlu0 %v568, 16
        %v625 = vpop.permute.xlu0 %624
        %626 = vrot.lane.b32.xlu0 %v571, 16
        %v627 = vpop.permute.xlu0 %626
        %636 = vrot.lane.b32.xlu0 %v488, 24
        %v637 = vpop.permute.xlu0 %636
        %638 = vrot.lane.b32.xlu0 %v490, 24
        %v639 = vpop.permute.xlu0 %638
        %640 = vrot.lane.b32.xlu0 %v492, 24
        %v641 = vpop.permute.xlu0 %640
        %642 = vrot.lane.b32.xlu0 %v494, 24
        %v643 = vpop.permute.xlu0 %642
        %644 = vrot.lane.b32.xlu0 %v496, 24
        %v645 = vpop.permute.xlu0 %644
        %646 = vrot.lane.b32.xlu0 %v498, 24
        %v647 = vpop.permute.xlu0 %646
        %648 = vrot.lane.b32.xlu0 %v500, 24
        %v649 = vpop.permute.xlu0 %648
        %650 = vrot.lane.b32.xlu0 %v502, 24
        %v651 = vpop.permute.xlu0 %650
        %660 = vrot.lane.b32.xlu0 %v528, 32
        %v661 = vpop.permute.xlu0 %660
        %662 = vrot.lane.b32.xlu0 %v531, 32
        %v663 = vpop.permute.xlu0 %662
        %664 = vrot.lane.b32.xlu0 %v534, 32
        %v665 = vpop.permute.xlu0 %664
        %666 = vrot.lane.b32.xlu0 %v537, 32
        %v667 = vpop.permute.xlu0 %666
        %668 = vrot.lane.b32.xlu0 %v540, 32
        %v669 = vpop.permute.xlu0 %668
        %670 = vrot.lane.b32.xlu0 %v543, 32
        %v671 = vpop.permute.xlu0 %670
        %672 = vrot.lane.b32.xlu0 %v546, 32
        %v673 = vpop.permute.xlu0 %672
        %674 = vrot.lane.b32.xlu0 %v576, 32
        %v675 = vpop.permute.xlu0 %674
        %684 = vrot.lane.b32.xlu0 %v553, 40
        %v685 = vpop.permute.xlu0 %684
        %686 = vrot.lane.b32.xlu0 %v556, 40
        %v687 = vpop.permute.xlu0 %686
        %688 = vrot.lane.b32.xlu0 %v559, 40
        %v689 = vpop.permute.xlu0 %688
        %690 = vrot.lane.b32.xlu0 %v562, 40
        %v691 = vpop.permute.xlu0 %690
        %692 = vrot.lane.b32.xlu0 %v565, 40
        %v693 = vpop.permute.xlu0 %692
        %694 = vrot.lane.b32.xlu0 %v568, 40
        %v695 = vpop.permute.xlu0 %694
        %696 = vrot.lane.b32.xlu0 %v571, 40
        %v697 = vpop.permute.xlu0 %696
        %698 = vrot.lane.b32.xlu0 %v579, 40
        %v699 = vpop.permute.xlu0 %698
        %708 = vrot.lane.b32.xlu0 %v490, 48
        %v709 = vpop.permute.xlu0 %708
        %710 = vrot.lane.b32.xlu0 %v492, 48
        %v711 = vpop.permute.xlu0 %710
        %712 = vrot.lane.b32.xlu0 %v494, 48
        %v713 = vpop.permute.xlu0 %712
        %714 = vrot.lane.b32.xlu0 %v496, 48
        %v715 = vpop.permute.xlu0 %714
        %716 = vrot.lane.b32.xlu0 %v498, 48
        %v717 = vpop.permute.xlu0 %716
        %718 = vrot.lane.b32.xlu0 %v500, 48
        %v719 = vpop.permute.xlu0 %718
        %720 = vrot.lane.b32.xlu0 %v502, 48
        %v721 = vpop.permute.xlu0 %720
        %722 = vrot.lane.b32.xlu0 %v504, 48
        %v723 = vpop.permute.xlu0 %722
        %732 = vrot.lane.b32.xlu0 %v531, 56
        %v733 = vpop.permute.xlu0 %732
        %734 = vrot.lane.b32.xlu0 %v534, 56
        %v735 = vpop.permute.xlu0 %734
        %736 = vrot.lane.b32.xlu0 %v537, 56
        %v737 = vpop.permute.xlu0 %736
        %738 = vrot.lane.b32.xlu0 %v540, 56
        %v739 = vpop.permute.xlu0 %738
        %740 = vrot.lane.b32.xlu0 %v543, 56
        %v741 = vpop.permute.xlu0 %740
        %742 = vrot.lane.b32.xlu0 %v546, 56
        %v743 = vpop.permute.xlu0 %742
        %744 = vrot.lane.b32.xlu0 %v576, 56
        %v745 = vpop.permute.xlu0 %744
        %746 = vrot.lane.b32.xlu0 %v584, 56
        %v747 = vpop.permute.xlu0 %746
        %756 = vrot.lane.b32.xlu0 %v556, 64
        %v757 = vpop.permute.xlu0 %756
        %758 = vrot.lane.b32.xlu0 %v559, 64
        %v759 = vpop.permute.xlu0 %758
        %760 = vrot.lane.b32.xlu0 %v562, 64
        %v761 = vpop.permute.xlu0 %760
        %762 = vrot.lane.b32.xlu0 %v565, 64
        %v763 = vpop.permute.xlu0 %762
        %764 = vrot.lane.b32.xlu0 %v568, 64
        %v765 = vpop.permute.xlu0 %764
        %766 = vrot.lane.b32.xlu0 %v571, 64
        %v767 = vpop.permute.xlu0 %766
        %768 = vrot.lane.b32.xlu0 %v579, 64
        %v769 = vpop.permute.xlu0 %768
        %770 = vrot.lane.b32.xlu0 %v587, 64
        %v771 = vpop.permute.xlu0 %770
        %v780 = vsel %vm441, %v486, %v589
        %v781 = vsel %vm441, %v488, %v591
        %v782 = vsel %vm441, %v490, %v593
        %v783 = vsel %vm441, %v492, %v595
        %v784 = vsel %vm441, %v494, %v597
        %v785 = vsel %vm441, %v496, %v599
        %v786 = vsel %vm441, %v498, %v601
        %v787 = vsel %vm441, %v500, %v603
        %vm788 = vcmask 130048
        %v789 = vsel %vm788, %v780, %v613
        %v790 = vsel %vm788, %v781, %v615
        %v791 = vsel %vm788, %v782, %v617
        %v792 = vsel %vm788, %v783, %v619
        %v793 = vsel %vm788, %v784, %v621
        %v794 = vsel %vm788, %v785, %v623
        %v795 = vsel %vm788, %v786, %v625
        %v796 = vsel %vm788, %v787, %v627
        %vm797 = vcmask 195584
        %v798 = vsel %vm797, %v789, %v637
        %v799 = vsel %vm797, %v790, %v639
        %v800 = vsel %vm797, %v791, %v641
        %v801 = vsel %vm797, %v792, %v643
        %v802 = vsel %vm797, %v793, %v645
        %v803 = vsel %vm797, %v794, %v647
        %v804 = vsel %vm797, %v795, %v649
        %v805 = vsel %vm797, %v796, %v651
        %vm806 = vcmask 261120
        %v807 = vsel %vm806, %v798, %v661
        %v808 = vsel %vm806, %v799, %v663
        %v809 = vsel %vm806, %v800, %v665
        %v810 = vsel %vm806, %v801, %v667
        %v811 = vsel %vm806, %v802, %v669
        %v812 = vsel %vm806, %v803, %v671
        %v813 = vsel %vm806, %v804, %v673
        %v814 = vsel %vm806, %v805, %v675
        %vm815 = vcmask 326656
        %v816 = vsel %vm815, %v807, %v685
        %v817 = vsel %vm815, %v808, %v687
        %v818 = vsel %vm815, %v809, %v689
        %v819 = vsel %vm815, %v810, %v691
        %v820 = vsel %vm815, %v811, %v693
        %v821 = vsel %vm815, %v812, %v695
        %v822 = vsel %vm815, %v813, %v697
        %v823 = vsel %vm815, %v814, %v699
        %vm824 = vcmask 392192
        %v825 = vsel %vm824, %v816, %v709
        %v826 = vsel %vm824, %v817, %v711
        %v827 = vsel %vm824, %v818, %v713
        %v828 = vsel %vm824, %v819, %v715
        %v829 = vsel %vm824, %v820, %v717
        %v830 = vsel %vm824, %v821, %v719
        %v831 = vsel %vm824, %v822, %v721
        %v832 = vsel %vm824, %v823, %v723
        %vm833 = vcmask 457728
        %v834 = vsel %vm833, %v825, %v733
        %v835 = vsel %vm833, %v826, %v735
        %v836 = vsel %vm833, %v827, %v737
        %v837 = vsel %vm833, %v828, %v739
        %v838 = vsel %vm833, %v829, %v741
        %v839 = vsel %vm833, %v830, %v743
        %v840 = vsel %vm833, %v831, %v745
        %v841 = vsel %vm833, %v832, %v747
        %vm842 = vcmask 523264
        %v843 = vsel %vm842, %v834, %v757
        %v844 = vsel %vm842, %v835, %v759
        %v845 = vsel %vm842, %v836, %v761
        %v846 = vsel %vm842, %v837, %v763
        %v847 = vsel %vm842, %v838, %v765
        %v848 = vsel %vm842, %v839, %v767
        %v849 = vsel %vm842, %v840, %v769
        %v850 = vsel %vm842, %v841, %v771
        %v851 = vpack.c.bf16 %v844, %v843
        %v852 = vpack.c.bf16 %v846, %v845
        %v853 = vpack.c.bf16 %v848, %v847
        %v854 = vpack.c.bf16 %v850, %v849
        %v855 = vld [vmem:[#allocation9] sm:$0xf]
        %v856 = vld [vmem:[#allocation9 + $0x4] sm:$0xf]
        %v857 = vld [vmem:[#allocation9 + $0x8] sm:$0xf]
        %v858 = vld [vmem:[#allocation9 + $0xc] sm:$0xf]
        %v859 = vld [vmem:[#allocation9 + $0x10] sm:$0xf]
        %v860 = vld [vmem:[#allocation9 + $0x14] sm:$0xf]
        %v861 = vld [vmem:[#allocation9 + $0x18] sm:$0xf]
        %v862 = vld [vmem:[#allocation9 + $0x1c] sm:$0xf]
        %v863 = vld [vmem:[#allocation9 + $0x20] sm:$0xf]
        %v864 = vld [vmem:[#allocation11] sm:$0x1]
        %v866 = vlaneseq
        %v867 = vshrl.u32 %v866, 7
        %v868 = vsub.s32 0, %v867
        %v869 = vrot.slane %v864, %v868
        %v880 = vunpack.c.l.b16 %v855
        %v881 = vunpack.c.l.b16 %v856
        %v882 = vunpack.c.l.b16 %v857
        %v883 = vunpack.c.l.b16 %v858
        %v884 = vunpack.c.l.b16 %v859
        %v885 = vunpack.c.l.b16 %v860
        %v886 = vunpack.c.l.b16 %v861
        %v887 = vunpack.c.l.b16 %v862
        %v888 = vunpack.c.l.b16 %v863
        %v889 = vpack.c.b16 %v881, %v880
        %v890 = vpack.c.b16 %v883, %v882
        %v891 = vpack.c.b16 %v885, %v884
        %v892 = vpack.c.b16 %v887, %v886
        %v893 = vpack.c.b16 %v888, %v888
        %vm898 = vcmask 588800
        %v900 = vsel %vm898, %v851, 0
        %v903 = vsel %vm898, %v852, 0
        %v906 = vsel %vm898, %v853, 0
        %v909 = vsel %vm898, %v854, 0
        %vm911 = vcmask 1043456
        %v913 = vsel %vm911, %v893, 0
        %915 = vmatprep.subr.bf16.mxu0 0
        %916 = vmatpush1.bf16.msra.mxu0 %v889
        %917 = vmatprep.subr.bf16.mxu0 0
        %918 = vmatpush1.bf16.msra.mxu0 %v890
        %919 = vmatprep.subr.bf16.mxu0 0
        %920 = vmatpush1.bf16.msra.mxu0 %v891
        %921 = vmatprep.subr.bf16.mxu0 0
        %922 = vmatpush1.bf16.msra.mxu0 %v892
        %923 = vmatprep.subr.bf16.mxu0 0
        %924 = vmatpush1.bf16.msra.mxu0 %v913
        %925 = vmatprep.subr.bf16.mxu0 0
        %926 = vmatpush1.bf16.msra.mxu0 0
        %927 = vmatprep.subr.bf16.mxu0 0
        %928 = vmatpush1.bf16.msra.mxu0 0
        %929 = vmatprep.subr.bf16.mxu0 0
        %930 = vmatpush1.bf16.msra.mxu0 0
        %931 = vmatprep.subr.bf16.mxu0 0
        %932 = vmatpush1.bf16.msra.mxu0 0
        %933 = vmatprep.subr.bf16.mxu0 0
        %934 = vmatpush1.bf16.msra.mxu0 0
        %935 = vmatprep.subr.bf16.mxu0 0
        %936 = vmatpush1.bf16.msra.mxu0 0
        %937 = vmatprep.subr.bf16.mxu0 0
        %938 = vmatpush1.bf16.msra.mxu0 0
        %939 = vmatprep.subr.bf16.mxu0 0
        %940 = vmatpush1.bf16.msra.mxu0 0
        %941 = vmatprep.subr.bf16.mxu0 0
        %942 = vmatpush1.bf16.msra.mxu0 0
        %943 = vmatprep.subr.bf16.mxu0 0
        %944 = vmatpush1.bf16.msra.mxu0 0
        %945 = vmatprep.subr.bf16.mxu0 0
        %946 = vmatpush1.bf16.msra.mxu0 0
        %947 = vmatprep.mubr.bf16.mxu0 0
        %948 = vmatmul.mubr.bf16.gmra.mrb[0].mxu0 %v900
        %v949 = vpop.f32.mrb[0].mxu0
        %v950 = vadd.f32 %v869, %v949
        %v951 = vpop.f32.mrb[0].mxu0
        %v952 = vpop.f32.mrb[0].mxu0
        %v953 = vadd.f32 %v869, %v952
        %v954 = vpop.f32.mrb[0].mxu0
        %955 = vmatprep.mubr.bf16.mxu0 0
        %956 = vmatmul.mubr.bf16.gmra.mrb[0].mxu0 %v903
        %v957 = vpop.f32.mrb[0].mxu0
        %v958 = vadd.f32 %v869, %v957
        %v959 = vpop.f32.mrb[0].mxu0
        %v960 = vpop.f32.mrb[0].mxu0
        %v961 = vadd.f32 %v869, %v960
        %v962 = vpop.f32.mrb[0].mxu0
        %963 = vmatprep.mubr.bf16.mxu0 0
        %964 = vmatmul.mubr.bf16.gmra.mrb[0].mxu0 %v906
        %v965 = vpop.f32.mrb[0].mxu0
        %v966 = vadd.f32 %v869, %v965
        %v967 = vpop.f32.mrb[0].mxu0
        %v968 = vpop.f32.mrb[0].mxu0
        %v969 = vadd.f32 %v869, %v968
        %v970 = vpop.f32.mrb[0].mxu0
        %971 = vmatprep.mubr.bf16.mxu0 0
        %972 = vmatmul.mubr.bf16.gmra.mrb[0].mxu0 %v909
        %v973 = vpop.f32.mrb[0].mxu0
        %v974 = vadd.f32 %v869, %v973
        %v975 = vpop.f32.mrb[0].mxu0
        %v976 = vpop.f32.mrb[0].mxu0
        %v977 = vadd.f32 %v869, %v976
        %v978 = vpop.f32.mrb[0].mxu0
        %979 = vdwg.mxu0
        %v980 = vpack.c.bf16 %v953, %v950
        %v981 = vpack.c.bf16 %v961, %v958
        %v982 = vpack.c.bf16 %v969, %v966
        %v983 = vpack.c.bf16 %v977, %v974
        %v988 = vunpack.c.l.b16 %v980
        %v989 = vunpack.c.h.b16 %v980
        %v990 = vunpack.c.l.b16 %v981
        %v991 = vunpack.c.h.b16 %v981
        %v992 = vunpack.c.l.b16 %v982
        %v993 = vunpack.c.h.b16 %v982
        %v994 = vunpack.c.l.b16 %v983
        %v995 = vunpack.c.h.b16 %v983
        %v996 = vpack.c.b16 %v988, %v988
        %v997 = vpack.c.b16 %v989, %v989
        %v998 = vpack.c.b16 %v990, %v990
        %v999 = vpack.c.b16 %v991, %v991
        %v1000 = vpack.c.b16 %v992, %v992
        %v1001 = vpack.c.b16 %v993, %v993
        %v1002 = vpack.c.b16 %v994, %v994
        %v1003 = vpack.c.b16 %v995, %v995
        %vm1012 = vcmask 257024
        %1013 = vst.msk [vmem:[%s382] sm:$0xf] %vm1012, %v996
        %1014 = vst.msk [vmem:[%s382 + $0x4] sm:$0xf] %vm1012, %v997
        %1015 = vst.msk [vmem:[%s382 + $0x8] sm:$0xf] %vm1012, %v998
        %1016 = vst.msk [vmem:[%s382 + $0xc] sm:$0xf] %vm1012, %v999
        %1017 = vst.msk [vmem:[%s382 + $0x10] sm:$0xf] %vm1012, %v1000
        %1018 = vst.msk [vmem:[%s382 + $0x14] sm:$0xf] %vm1012, %v1001
        %1019 = vst.msk [vmem:[%s382 + $0x18] sm:$0xf] %vm1012, %v1002
        %1020 = vst.msk [vmem:[%s382 + $0x1c] sm:$0xf] %vm1012, %v1003
        %v1021 = vsel %vm806, %v950, 0.0
        %v1022 = vsel %vm806, %v953, 0.0
        %v1023 = vadd.f32 %v1021, %v1022
        %v1024 = vsel %vm806, %v958, 0.0
        %v1025 = vadd.f32 %v1023, %v1024
        %v1026 = vsel %vm806, %v961, 0.0
        %v1027 = vadd.f32 %v1025, %v1026
        %v1028 = vsel %vm806, %v966, 0.0
        %v1029 = vadd.f32 %v1027, %v1028
        %v1030 = vsel %vm806, %v969, 0.0
        %v1031 = vadd.f32 %v1029, %v1030
        %v1032 = vsel %vm806, %v974, 0.0
        %v1033 = vadd.f32 %v1031, %v1032
        %v1034 = vsel %vm806, %v977, 0.0
        %v1035 = vadd.f32 %v1033, %v1034
        %v1036 = vrot.slane %v1035, 4
        %v1037 = vadd.f32 %v1035, %v1036
        %v1038 = vrot.slane %v1037, 2
        %v1039 = vadd.f32 %v1037, %v1038
        %v1040 = vrot.slane %v1039, 1
        %v1041 = vadd.f32 %v1039, %v1040
        %vm1042 = vcmask 253952
        %1043 = vst.msk [vmem:[%s388] sm:$0x1] %vm1042, %v1041
        %v1044 = vmul.f32 %v950, %v950
        %v1045 = vmul.f32 %v953, %v953
        %v1046 = vmul.f32 %v958, %v958
        %v1047 = vmul.f32 %v961, %v961
        %v1048 = vmul.f32 %v966, %v966
        %v1049 = vmul.f32 %v969, %v969
        %v1050 = vmul.f32 %v974, %v974
        %v1051 = vmul.f32 %v977, %v977
        %v1052 = vsel %vm806, %v1044, 0.0
        %v1053 = vsel %vm806, %v1045, 0.0
        %v1054 = vadd.f32 %v1052, %v1053
        %v1055 = vsel %vm806, %v1046, 0.0
        %v1056 = vadd.f32 %v1054, %v1055
        %v1057 = vsel %vm806, %v1047, 0.0
        %v1058 = vadd.f32 %v1056, %v1057
        %v1059 = vsel %vm806, %v1048, 0.0
        %v1060 = vadd.f32 %v1058, %v1059
        %v1061 = vsel %vm806, %v1049, 0.0
        %v1062 = vadd.f32 %v1060, %v1061
        %v1063 = vsel %vm806, %v1050, 0.0
        %v1064 = vadd.f32 %v1062, %v1063
        %v1065 = vsel %vm806, %v1051, 0.0
        %v1066 = vadd.f32 %v1064, %v1065
        %v1067 = vrot.slane %v1066, 4
        %v1068 = vadd.f32 %v1066, %v1067
        %v1069 = vrot.slane %v1068, 2
        %v1070 = vadd.f32 %v1068, %v1069
        %v1071 = vrot.slane %v1070, 1
        %v1072 = vadd.f32 %v1070, %v1071
        %1073 = vst.msk [vmem:[%s394] sm:$0x1] %vm1042, %v1072
        %s1074 = sand.u32 %s152, 1
        %s1075 = scalar_lea.sflag [#allocation5], %s1074
        %s1076 = sand.u32 %s152, 1
        %s1077 = smul.addr %s1076, 32
        %s1078 = scalar_lea.vmem [#allocation12], %s1077
        %s1079 = sand.u32 %s34, 1
        %s1080 = scalar_lea.sflag [#allocation14], %s1079
        %s1081 = sand.u32 %s178, 1
        %s1082 = scalar_lea.vmem [#allocation13], %s1081
        %s1083 = sand.u32 %s34, 1
        %s1084 = scalar_lea.sflag [#allocation14], %s1083
        %s1085 = sand.u32 %s204, 1
        %s1086 = scalar_lea.vmem [#allocation15], %s1085
        %s1087 = sand.u32 %s230, 1
        %s1088 = scalar_lea.sflag [#allocation17], %s1087
        %s1089 = sand.u32 %s230, 1
        %s1090 = smul.addr %s1089, 64
        %s1091 = scalar_lea.vmem [#allocation16], %s1090
        // Predicated region
        $region61: #{glow_forward.4} parent=39 // pred_check
          %p1092 = pneg %p162
        $region62: #{glow_forward.4} parent=39 // pred_check_branch
          %1094 = sbr.rel (%p1092) target = $region64
        $region63: #{glow_forward.4} parent=39 // pred_region
          %s1096 = ssub.s32 512, 512
          %1097 = vsyncadd %s1075, %s1096
          %s1098 = smul.addr %s34, 8
          %s1099 = smul.addr %s1098, 64
          %s1100 = scalar_lea.hbm %s5, %s1099
          %s1101 = sshll.u32 %s1078, 4
          %s1102 = int_to_ptr.vmem [resolvable:$true] %s1101
          %1107 = dma.vmem_to_hbm [thread:$0]  %s1102, 512, %s1100, %s1075, 64, 64, 4
        $region64: #{glow_forward.4} parent=39 // pred_fallthru
          _
        // Predicated region
        $region65: #{glow_forward.4} parent=39 // pred_check
          %p1108 = pneg %p188
        $region66: #{glow_forward.4} parent=39 // pred_check_branch
          %1110 = sbr.rel (%p1108) target = $region68
        $region67: #{glow_forward.4} parent=39 // pred_region
          %s1112 = ssub.s32 16, 16
          %1113 = vsyncadd %s1080, %s1112
          %s1114 = smul.addr %s34, 16
          %s1115 = scalar_lea.hbm %s6, %s1114
          %s1117 = sshll.u32 %s1082, 4
          %s1118 = int_to_ptr.vmem [resolvable:$true] %s1117
          %1120 = dma.vmem_to_hbm [thread:$0]  %s1118, 16, %s1115, %s1080
        $region68: #{glow_forward.4} parent=39 // pred_fallthru
          _
        // Predicated region
        $region69: #{glow_forward.4} parent=39 // pred_check
          %p1121 = pneg %p214
        $region70: #{glow_forward.4} parent=39 // pred_check_branch
          %1123 = sbr.rel (%p1121) target = $region72
        $region71: #{glow_forward.4} parent=39 // pred_region
          %s1125 = ssub.s32 16, 16
          %1126 = vsyncadd %s1084, %s1125
          %s1127 = smul.addr %s34, 16
          %s1128 = scalar_lea.hbm %s7, %s1127
          %s1130 = sshll.u32 %s1086, 4
          %s1131 = int_to_ptr.vmem [resolvable:$true] %s1130
          %1133 = dma.vmem_to_hbm [thread:$0]  %s1131, 16, %s1128, %s1084
        $region72: #{glow_forward.4} parent=39 // pred_fallthru
          _
        // Predicated region
        $region73: #{glow_forward.4} parent=39 // pred_check
          %p1134 = pneg %p240
        $region74: #{glow_forward.4} parent=39 // pred_check_branch
          %1136 = sbr.rel (%p1134) target = $region76
        $region75: #{glow_forward.4} parent=39 // pred_region
          %s1138 = ssub.s32 1024, 1024
          %1139 = vsyncadd %s1088, %s1138
          %s1140 = smul.addr %s34, 8
          %s1141 = smul.addr %s1140, 128
          %s1142 = scalar_lea.hbm %s8, %s1141
          %s1143 = sshll.u32 %s1091, 4
          %s1144 = int_to_ptr.vmem [resolvable:$true] %s1143
          %1149 = dma.vmem_to_hbm [thread:$0]  %s1144, 1024, %s1142, %s1088, 128, 128, 8
        $region76: #{glow_forward.4} parent=39 // pred_fallthru
          _
      $region40: #{glow_forward.4} parent=5 // pred_fallthru
        _
      %p1150 = scmp.le.s32.totalorder 2, %s29
      // Predicated region
      $region77: #{glow_forward.4} parent=5 // pred_check
        %p1151 = pneg %p1150
      $region78: #{glow_forward.4} parent=5 // pred_check_branch
        %1153 = sbr.rel (%p1151) target = $region80
      $region79: #{glow_forward.4} parent=5 // pred_region
        %s1154 = ssub.s32 %s29, 2
        // Predicated region
        $region81: #{glow_forward.4} parent=79 // pred_check
          %p1155 = pneg %p168
        $region82: #{glow_forward.4} parent=79 // pred_check_branch
          %1157 = sbr.rel (%p1155) target = $region84
        $region83: #{glow_forward.4} parent=79 // pred_region
          %s1158 = sand.u32 %s153, 1
          %s1159 = scalar_lea.sflag [#allocation5], %s1158
          %s1160 = sand.u32 %s153, 1
          %s1161 = smul.addr %s1160, 32
          %s1162 = scalar_lea.vmem [#allocation12], %s1161
          %1163 = dma.done %s1159, 512
        $region84: #{glow_forward.4} parent=79 // pred_fallthru
          _
        // Predicated region
        $region85: #{glow_forward.4} parent=79 // pred_check
          %p1164 = pneg %p194
        $region86: #{glow_forward.4} parent=79 // pred_check_branch
          %1166 = sbr.rel (%p1164) target = $region88
        $region87: #{glow_forward.4} parent=79 // pred_region
          %s1167 = sand.u32 %s35, 1
          %s1168 = scalar_lea.sflag [#allocation14], %s1167
          %s1169 = sand.u32 %s179, 1
          %s1170 = scalar_lea.vmem [#allocation13], %s1169
          %1171 = dma.done %s1168, 16
        $region88: #{glow_forward.4} parent=79 // pred_fallthru
          _
        // Predicated region
        $region89: #{glow_forward.4} parent=79 // pred_check
          %p1172 = pneg %p220
        $region90: #{glow_forward.4} parent=79 // pred_check_branch
          %1174 = sbr.rel (%p1172) target = $region92
        $region91: #{glow_forward.4} parent=79 // pred_region
          %s1175 = sand.u32 %s35, 1
          %s1176 = scalar_lea.sflag [#allocation14], %s1175
          %s1177 = sand.u32 %s205, 1
          %s1178 = scalar_lea.vmem [#allocation15], %s1177
          %1179 = dma.done %s1176, 16
        $region92: #{glow_forward.4} parent=79 // pred_fallthru
          _
        // Predicated region
        $region93: #{glow_forward.4} parent=79 // pred_check
          %p1180 = pneg %p246
        $region94: #{glow_forward.4} parent=79 // pred_check_branch
          %1182 = sbr.rel (%p1180) target = $region96
        $region95: #{glow_forward.4} parent=79 // pred_region
          %s1183 = sand.u32 %s231, 1
          %s1184 = scalar_lea.sflag [#allocation17], %s1183
          %s1185 = sand.u32 %s231, 1
          %s1186 = smul.addr %s1185, 64
          %s1187 = scalar_lea.vmem [#allocation16], %s1186
          %1188 = dma.done %s1184, 1024
        $region96: #{glow_forward.4} parent=79 // pred_fallthru
          _
      $region80: #{glow_forward.4} parent=5 // pred_fallthru
        _
    $region6: #{glow_forward.4} parent=1 // loop_footer
      %s33 = sadd.s32 1, %s29
    $region7: #{glow_forward.4} parent=1 // loop_footer_branch
      %28 = sbr.rel target = $region3
    $region8: #{glow_forward.4} parent=1 // loop_exit
      _
    %1189 = vsyncpa [#allocation4], 1
    %s1190 = scalar_lea.sflag [#allocation4], 1
    %1191 = vsyncpa %s1190, 1
    %1192 = vsyncpa [#allocation7], 1
    %1193 = vsyncpa [#allocation10], 1
    %1194 = vsyncpa [#allocation5], 1
    %s1195 = scalar_lea.sflag [#allocation5], 1
    %1196 = vsyncpa %s1195, 1
    %1197 = vsyncpa [#allocation14], 1
    %s1198 = scalar_lea.sflag [#allocation14], 1
    %1199 = vsyncpa %s1198, 1
    %1200 = vsyncpa [#allocation17], 1
    %s1201 = scalar_lea.sflag [#allocation17], 1
    %1202 = vsyncpa %s1201, 1

// kernel: glow_forward.5
$region0: #{glow_forward.5}
  #allocation0 [shape = 'u32[]', space=smem, size = 0x4, offset = 0x4, fixed_abs, tag = 'smem constant byte address 0x4 - core index']
  #allocation1 [shape = 'u32[144,128]{1,0:T(1,128)}', space=vmem, size = 0x12000, scoped, tag = 'internal scratch']
  #allocation2 [shape = 'f32[10,10,32]{2,1,0:T(8,128)}', space=vmem, size = 0x14000, scoped, tag = 'scratch operand']
  %s0 = inlined_call_operand.hbm [shape: bf16[2,64,32], index: 0, kind: input, shape index: {}]
  %s1 = inlined_call_operand.hbm [shape: f32[1,32], index: 1, kind: input, shape index: {}]
  %s2 = inlined_call_operand.hbm [shape: f32[1,32], index: 2, kind: input, shape index: {}]
  %s3 = inlined_call_operand.hbm [shape: bf16[288,16], index: 3, kind: input, shape index: {}]
  %s4 = inlined_call_operand.hbm [shape: f32[1,16], index: 4, kind: input, shape index: {}]
  %s5 = inlined_call_operand.hbm [shape: f32[2,64,8], index: 5, kind: input, shape index: {}]
  %s6 = inlined_call_operand.hbm [shape: f32[1,8], index: 6, kind: input, shape index: {}]
  %s7 = inlined_call_operand.hbm [shape: f32[1,8], index: 7, kind: input, shape index: {}]
  %s8 = inlined_call_operand.hbm [shape: f32[2,64,8], index: 8, kind: output, shape index: {0}]
  %s9 = inlined_call_operand.hbm [shape: f32[2,1,1], index: 9, kind: output, shape index: {1}]
  %10 = xla_tuple %s8, %s9
  %s11 = sld [smem:[#allocation0]]
  $region105: #{glow_forward.5} parent=0
    _
  %s13 = ssub.s32 1, %s11
  %s14 = scalar_select 0, %s13, %s11
  $region1: #{glow_forward.5} parent=0
    #allocation3 [shape = 'u8[32768]{0}', space=vmem, size = 0x8000, scoped, tag = 'input window, operand 0']
    #allocation4 [shape = 's32[2]{0}', space=sflag, size = 0x8, scoped, tag = 'scoped memory for glow_forward.5']
    #allocation5 [shape = 's32[2]{0}', space=sflag, size = 0x8, scoped, tag = 'scoped memory for glow_forward.5']
    #allocation6 [shape = 'u8[512]{0}', space=vmem, size = 0x400, scoped, tag = 'input window, operand 1, single buffered']
    #allocation7 [shape = 's32[1]{0}', space=sflag, size = 0x4, scoped, tag = 'scoped memory for glow_forward.5']
    #allocation8 [shape = 'u8[512]{0}', space=vmem, size = 0x400, scoped, tag = 'input window, operand 2, single buffered']
    #allocation9 [shape = 'u8[73728]{0}', space=vmem, size = 0x12000, scoped, tag = 'input window, operand 3, single buffered']
    #allocation10 [shape = 's32[1]{0}', space=sflag, size = 0x4, scoped, tag = 'scoped memory for glow_forward.5']
    #allocation11 [shape = 'u8[512]{0}', space=vmem, size = 0x400, scoped, tag = 'input window, operand 4, single buffered']
    #allocation12 [shape = 'u8[65536]{0}', space=vmem, size = 0x10000, scoped, tag = 'input window, operand 5']
    #allocation13 [shape = 's32[2]{0}', space=sflag, size = 0x8, scoped, tag = 'scoped memory for glow_forward.5']
    #allocation14 [shape = 'u8[512]{0}', space=vmem, size = 0x400, scoped, tag = 'input window, operand 6, single buffered']
    #allocation15 [shape = 'u8[512]{0}', space=vmem, size = 0x400, scoped, tag = 'input window, operand 7, single buffered']
    #allocation16 [shape = 's32[1]{0}', space=sflag, size = 0x4, scoped, tag = 'scoped memory for glow_forward.5']
    #allocation17 [shape = 'u8[65536]{0}', space=vmem, size = 0x10000, scoped, tag = 'output window, operand 0']
    #allocation18 [shape = 'u8[1024]{0}', space=vmem, size = 0x400, scoped, tag = 'output window, operand 1']
    #allocation19 [shape = 's32[2]{0}', space=sflag, size = 0x8, scoped, tag = 'scoped memory for glow_forward.5']
    %15 = vsyncpa [#allocation4], 0
    %s16 = scalar_lea.sflag [#allocation4], 1
    %17 = vsyncpa %s16, 0
    %18 = vsyncpa [#allocation7], 0
    %19 = vsyncpa [#allocation10], 0
    %20 = vsyncpa [#allocation13], 0
    %s21 = scalar_lea.sflag [#allocation13], 1
    %22 = vsyncpa %s21, 0
    %23 = vsyncpa [#allocation16], 0
    %24 = vsyncpa [#allocation5], 0
    %s25 = scalar_lea.sflag [#allocation5], 1
    %26 = vsyncpa %s25, 0
    %27 = vsyncpa [#allocation19], 0
    %s28 = scalar_lea.sflag [#allocation19], 1
    %29 = vsyncpa %s28, 0
    loop: start=0, step=1, limit=4
    $region2: #{glow_forward.5} parent=1 // loop_pre_header
      _
    $region3: #{glow_forward.5} parent=1 // loop_header
      %s31 = sphi 0, %s35
      %p32 = scmp.ge.s32.totalorder %s31, 4
      %s41 = sphi 0, %s43
      %s44 = sphi 0, %s41
      %s45 = sphi 0, %s44
      %s61 = sphi 0, %s45
      %s65 = sphi 0, %s65
      %s67 = sphi 0, %s65
      %s68 = sphi 0, %s67
      %s82 = sphi 0, %s68
      %s86 = sphi 0, %s86
      %s88 = sphi 0, %s86
      %s89 = sphi 0, %s88
      %s103 = sphi 0, %s89
      %s107 = sphi 0, %s107
      %s109 = sphi 0, %s107
      %s110 = sphi 0, %s109
      %s124 = sphi 0, %s110
      %s128 = sphi 0, %s128
      %s130 = sphi 0, %s128
      %s131 = sphi 0, %s130
      %s145 = sphi 0, %s131
      %s151 = sphi 0, %s153
      %s154 = sphi 0, %s151
      %s155 = sphi 0, %s154
      %s171 = sphi 0, %s155
      %s175 = sphi 0, %s175
      %s177 = sphi 0, %s175
      %s178 = sphi 0, %s177
      %s192 = sphi 0, %s178
      %s196 = sphi 0, %s196
      %s198 = sphi 0, %s196
      %s199 = sphi 0, %s198
      %s213 = sphi 0, %s199
      %s219 = sphi 0, %s221
      %s222 = sphi 0, %s219
      %s223 = sphi 0, %s222
      %s239 = sphi 0, %s223
      %s245 = sphi 0, %s247
      %s248 = sphi 0, %s245
      %s249 = sphi 0, %s248
      %s265 = sphi 0, %s249
    $region4: #{glow_forward.5} parent=1 // loop_header_branch
      %34 = sbr.rel (%p32) target = $region8
    $region5: #{glow_forward.5} parent=1 // loop_body
      %s36 = ssub.s32 %s31, 1
      %s37 = ssub.s32 %s31, 2
      %s38 = sadd.s32 %s31, 1
      %s39 = ssub.s32 %s31, %s38
      %p40 = scmp.eq.s32.totalorder %s39, 0
      %s42 = sadd.s32 %s41, 1
      %s43 = scalar_select %p40, %s41, %s42
      %p46 = pneg %p40
      %p47 = scmp.eq.s32.totalorder %s31, 1
      %p48 = por %p46, %p47
      %p49 = scmp.ne.s32.totalorder %s41, %s44
      %p50 = scmp.eq.s32.totalorder %s31, 0
      %p51 = por %p49, %p50
      %p52 = scmp.ne.s32.totalorder %s41, %s44
      %p53 = scmp.eq.s32.totalorder %s36, 1
      %p54 = por %p52, %p53
      %p55 = scmp.ne.s32.totalorder %s44, %s45
      %p56 = scmp.eq.s32.totalorder %s36, 0
      %p57 = por %p55, %p56
      %p58 = scmp.ne.s32.totalorder %s44, %s45
      %p59 = scmp.eq.s32.totalorder %s37, 1
      %p60 = por %p58, %p59
      %p62 = scmp.ne.s32.totalorder %s45, %s61
      %p63 = scmp.eq.s32.totalorder %s37, 0
      %p64 = por %p62, %p63
      %s66 = sadd.s32 %s65, 1
      %p69 = scmp.eq.s32.totalorder %s31, 1
      %p70 = scmp.ne.s32.totalorder %s65, %s67
      %p71 = scmp.eq.s32.totalorder %s31, 0
      %p72 = por %p70, %p71
      %p73 = scmp.ne.s32.totalorder %s65, %s67
      %p74 = scmp.eq.s32.totalorder %s36, 1
      %p75 = por %p73, %p74
      %p76 = scmp.ne.s32.totalorder %s67, %s68
      %p77 = scmp.eq.s32.totalorder %s36, 0
      %p78 = por %p76, %p77
      %p79 = scmp.ne.s32.totalorder %s67, %s68
      %p80 = scmp.eq.s32.totalorder %s37, 1
      %p81 = por %p79, %p80
      %p83 = scmp.ne.s32.totalorder %s68, %s82
      %p84 = scmp.eq.s32.totalorder %s37, 0
      %p85 = por %p83, %p84
      %s87 = sadd.s32 %s86, 1
      %p90 = scmp.eq.s32.totalorder %s31, 1
      %p91 = scmp.ne.s32.totalorder %s86, %s88
      %p92 = scmp.eq.s32.totalorder %s31, 0
      %p93 = por %p91, %p92
      %p94 = scmp.ne.s32.totalorder %s86, %s88
      %p95 = scmp.eq.s32.totalorder %s36, 1
      %p96 = por %p94, %p95
      %p97 = scmp.ne.s32.totalorder %s88, %s89
      %p98 = scmp.eq.s32.totalorder %s36, 0
      %p99 = por %p97, %p98
      %p100 = scmp.ne.s32.totalorder %s88, %s89
      %p101 = scmp.eq.s32.totalorder %s37, 1
      %p102 = por %p100, %p101
      %p104 = scmp.ne.s32.totalorder %s89, %s103
      %p105 = scmp.eq.s32.totalorder %s37, 0
      %p106 = por %p104, %p105
      %s108 = sadd.s32 %s107, 1
      %p111 = scmp.eq.s32.totalorder %s31, 1
      %p112 = scmp.ne.s32.totalorder %s107, %s109
      %p113 = scmp.eq.s32.totalorder %s31, 0
      %p114 = por %p112, %p113
      %p115 = scmp.ne.s32.totalorder %s107, %s109
      %p116 = scmp.eq.s32.totalorder %s36, 1
      %p117 = por %p115, %p116
      %p118 = scmp.ne.s32.totalorder %s109, %s110
      %p119 = scmp.eq.s32.totalorder %s36, 0
      %p120 = por %p118, %p119
      %p121 = scmp.ne.s32.totalorder %s109, %s110
      %p122 = scmp.eq.s32.totalorder %s37, 1
      %p123 = por %p121, %p122
      %p125 = scmp.ne.s32.totalorder %s110, %s124
      %p126 = scmp.eq.s32.totalorder %s37, 0
      %p127 = por %p125, %p126
      %s129 = sadd.s32 %s128, 1
      %p132 = scmp.eq.s32.totalorder %s31, 1
      %p133 = scmp.ne.s32.totalorder %s128, %s130
      %p134 = scmp.eq.s32.totalorder %s31, 0
      %p135 = por %p133, %p134
      %p136 = scmp.ne.s32.totalorder %s128, %s130
      %p137 = scmp.eq.s32.totalorder %s36, 1
      %p138 = por %p136, %p137
      %p139 = scmp.ne.s32.totalorder %s130, %s131
      %p140 = scmp.eq.s32.totalorder %s36, 0
      %p141 = por %p139, %p140
      %p142 = scmp.ne.s32.totalorder %s130, %s131
      %p143 = scmp.eq.s32.totalorder %s37, 1
      %p144 = por %p142, %p143
      %p146 = scmp.ne.s32.totalorder %s131, %s145
      %p147 = scmp.eq.s32.totalorder %s37, 0
      %p148 = por %p146, %p147
      %s149 = ssub.s32 %s31, %s38
      %p150 = scmp.eq.s32.totalorder %s149, 0
      %s152 = sadd.s32 %s151, 1
      %s153 = scalar_select %p150, %s151, %s152
      %p156 = pneg %p150
      %p157 = scmp.eq.s32.totalorder %s31, 1
      %p158 = por %p156, %p157
      %p159 = scmp.ne.s32.totalorder %s151, %s154
      %p160 = scmp.eq.s32.totalorder %s31, 0
      %p161 = por %p159, %p160
      %p162 = scmp.ne.s32.totalorder %s151, %s154
      %p163 = scmp.eq.s32.totalorder %s36, 1
      %p164 = por %p162, %p163
      %p165 = scmp.ne.s32.totalorder %s154, %s155
      %p166 = scmp.eq.s32.totalorder %s36, 0
      %p167 = por %p165, %p166
      %p168 = scmp.ne.s32.totalorder %s154, %s155
      %p169 = scmp.eq.s32.totalorder %s37, 1
      %p170 = por %p168, %p169
      %p172 = scmp.ne.s32.totalorder %s155, %s171
      %p173 = scmp.eq.s32.totalorder %s37, 0
      %p174 = por %p172, %p173
      %s176 = sadd.s32 %s175, 1
      %p179 = scmp.eq.s32.totalorder %s31, 1
      %p180 = scmp.ne.s32.totalorder %s175, %s177
      %p181 = scmp.eq.s32.totalorder %s31, 0
      %p182 = por %p180, %p181
      %p183 = scmp.ne.s32.totalorder %s175, %s177
      %p184 = scmp.eq.s32.totalorder %s36, 1
      %p185 = por %p183, %p184
      %p186 = scmp.ne.s32.totalorder %s177, %s178
      %p187 = scmp.eq.s32.totalorder %s36, 0
      %p188 = por %p186, %p187
      %p189 = scmp.ne.s32.totalorder %s177, %s178
      %p190 = scmp.eq.s32.totalorder %s37, 1
      %p191 = por %p189, %p190
      %p193 = scmp.ne.s32.totalorder %s178, %s192
      %p194 = scmp.eq.s32.totalorder %s37, 0
      %p195 = por %p193, %p194
      %s197 = sadd.s32 %s196, 1
      %p200 = scmp.eq.s32.totalorder %s31, 1
      %p201 = scmp.ne.s32.totalorder %s196, %s198
      %p202 = scmp.eq.s32.totalorder %s31, 0
      %p203 = por %p201, %p202
      %p204 = scmp.ne.s32.totalorder %s196, %s198
      %p205 = scmp.eq.s32.totalorder %s36, 1
      %p206 = por %p204, %p205
      %p207 = scmp.ne.s32.totalorder %s198, %s199
      %p208 = scmp.eq.s32.totalorder %s36, 0
      %p209 = por %p207, %p208
      %p210 = scmp.ne.s32.totalorder %s198, %s199
      %p211 = scmp.eq.s32.totalorder %s37, 1
      %p212 = por %p210, %p211
      %p214 = scmp.ne.s32.totalorder %s199, %s213
      %p215 = scmp.eq.s32.totalorder %s37, 0
      %p216 = por %p214, %p215
      %s217 = ssub.s32 %s31, %s38
      %p218 = scmp.eq.s32.totalorder %s217, 0
      %s220 = sadd.s32 %s219, 1
      %s221 = scalar_select %p218, %s219, %s220
      %p224 = pneg %p218
      %p225 = scmp.eq.s32.totalorder %s31, 1
      %p226 = por %p224, %p225
      %p227 = scmp.ne.s32.totalorder %s219, %s222
      %p228 = scmp.eq.s32.totalorder %s31, 0
      %p229 = por %p227, %p228
      %p230 = scmp.ne.s32.totalorder %s219, %s222
      %p231 = scmp.eq.s32.totalorder %s36, 1
      %p232 = por %p230, %p231
      %p233 = scmp.ne.s32.totalorder %s222, %s223
      %p234 = scmp.eq.s32.totalorder %s36, 0
      %p235 = por %p233, %p234
      %p236 = scmp.ne.s32.totalorder %s222, %s223
      %p237 = scmp.eq.s32.totalorder %s37, 1
      %p238 = por %p236, %p237
      %p240 = scmp.ne.s32.totalorder %s223, %s239
      %p241 = scmp.eq.s32.totalorder %s37, 0
      %p242 = por %p240, %p241
      %s243 = ssub.s32 %s31, %s38
      %p244 = scmp.eq.s32.totalorder %s243, 0
      %s246 = sadd.s32 %s245, 1
      %s247 = scalar_select %p244, %s245, %s246
      %p250 = pneg %p244
      %p251 = scmp.eq.s32.totalorder %s31, 1
      %p252 = por %p250, %p251
      %p253 = scmp.ne.s32.totalorder %s245, %s248
      %p254 = scmp.eq.s32.totalorder %s31, 0
      %p255 = por %p253, %p254
      %p256 = scmp.ne.s32.totalorder %s245, %s248
      %p257 = scmp.eq.s32.totalorder %s36, 1
      %p258 = por %p256, %p257
      %p259 = scmp.ne.s32.totalorder %s248, %s249
      %p260 = scmp.eq.s32.totalorder %s36, 0
      %p261 = por %p259, %p260
      %p262 = scmp.ne.s32.totalorder %s248, %s249
      %p263 = scmp.eq.s32.totalorder %s37, 1
      %p264 = por %p262, %p263
      %p266 = scmp.ne.s32.totalorder %s249, %s265
      %p267 = scmp.eq.s32.totalorder %s37, 0
      %p268 = por %p266, %p267
      %p269 = scmp.le.s32.totalorder 1, %s31
      %p270 = scmp.lt.s32.totalorder %s31, 3
      %p271 = pnand %p269, %p270
      %p272 = pneg %p271
      // Predicated region
      $region9: #{glow_forward.5} parent=5 // pred_check
        _
      $region10: #{glow_forward.5} parent=5 // pred_check_branch
        %274 = sbr.rel (%p271) target = $region12
      $region11: #{glow_forward.5} parent=5 // pred_region
        %s275 = ssub.s32 %s31, 1
        // Predicated region
        $region13: #{glow_forward.5} parent=11 // pred_check
          %p276 = pneg %p78
        $region14: #{glow_forward.5} parent=11 // pred_check_branch
          %278 = sbr.rel (%p276) target = $region16
        $region15: #{glow_forward.5} parent=11 // pred_region
          %s280 = ssub.s32 16, 16
          %281 = vsyncadd [#allocation7], %s280
          %s283 = sshll.u32 [#allocation6], 4
          %s284 = int_to_ptr.vmem [resolvable:$true] %s283
          %286 = dma.hbm_to_vmem [thread:$0]  %s1, 16, %s284, [#allocation7]
        $region16: #{glow_forward.5} parent=11 // pred_fallthru
          _
        // Predicated region
        $region17: #{glow_forward.5} parent=11 // pred_check
          %p287 = pneg %p99
        $region18: #{glow_forward.5} parent=11 // pred_check_branch
          %289 = sbr.rel (%p287) target = $region20
        $region19: #{glow_forward.5} parent=11 // pred_region
          %s291 = ssub.s32 16, 16
          %292 = vsyncadd [#allocation7], %s291
          %s294 = sshll.u32 [#allocation8], 4
          %s295 = int_to_ptr.vmem [resolvable:$true] %s294
          %297 = dma.hbm_to_vmem [thread:$0]  %s2, 16, %s295, [#allocation7]
        $region20: #{glow_forward.5} parent=11 // pred_fallthru
          _
        // Predicated region
        $region21: #{glow_forward.5} parent=11 // pred_check
          %p298 = pneg %p120
        $region22: #{glow_forward.5} parent=11 // pred_check_branch
          %300 = sbr.rel (%p298) target = $region24
        $region23: #{glow_forward.5} parent=11 // pred_region
          %s302 = ssub.s32 2304, 2304
          %303 = vsyncadd [#allocation10], %s302
          %s304 = sshll.u32 [#allocation9], 4
          %s305 = int_to_ptr.vmem [resolvable:$true] %s304
          %310 = dma.hbm_to_vmem [thread:$0]  %s3, 2304, %s305, [#allocation10], 64, 64, 4
        $region24: #{glow_forward.5} parent=11 // pred_fallthru
          _
        // Predicated region
        $region25: #{glow_forward.5} parent=11 // pred_check
          %p311 = pneg %p141
        $region26: #{glow_forward.5} parent=11 // pred_check_branch
          %313 = sbr.rel (%p311) target = $region28
        $region27: #{glow_forward.5} parent=11 // pred_region
          %s315 = ssub.s32 16, 16
          %316 = vsyncadd [#allocation10], %s315
          %s318 = sshll.u32 [#allocation11], 4
          %s319 = int_to_ptr.vmem [resolvable:$true] %s318
          %321 = dma.hbm_to_vmem [thread:$0]  %s4, 16, %s319, [#allocation10]
        $region28: #{glow_forward.5} parent=11 // pred_fallthru
          _
        // Predicated region
        $region29: #{glow_forward.5} parent=11 // pred_check
          %p322 = pneg %p188
        $region30: #{glow_forward.5} parent=11 // pred_check_branch
          %324 = sbr.rel (%p322) target = $region32
        $region31: #{glow_forward.5} parent=11 // pred_region
          %s326 = ssub.s32 16, 16
          %327 = vsyncadd [#allocation13], %s326
          %s329 = sshll.u32 [#allocation14], 4
          %s330 = int_to_ptr.vmem [resolvable:$true] %s329
          %332 = dma.hbm_to_vmem [thread:$0]  %s6, 16, %s330, [#allocation13]
        $region32: #{glow_forward.5} parent=11 // pred_fallthru
          _
        // Predicated region
        $region33: #{glow_forward.5} parent=11 // pred_check
          %p333 = pneg %p209
        $region34: #{glow_forward.5} parent=11 // pred_check_branch
          %335 = sbr.rel (%p333) target = $region36
        $region35: #{glow_forward.5} parent=11 // pred_region
          %s337 = ssub.s32 16, 16
          %338 = vsyncadd [#allocation16], %s337
          %s340 = sshll.u32 [#allocation15], 4
          %s341 = int_to_ptr.vmem [resolvable:$true] %s340
          %343 = dma.hbm_to_vmem [thread:$0]  %s7, 16, %s341, [#allocation16]
        $region36: #{glow_forward.5} parent=11 // pred_fallthru
          _
      $region12: #{glow_forward.5} parent=5 // pred_fallthru
        _
      %p344 = scmp.lt.s32.totalorder %s31, 2
      // Predicated region
      $region37: #{glow_forward.5} parent=5 // pred_check
        %p345 = pneg %p344
      $region38: #{glow_forward.5} parent=5 // pred_check_branch
        %347 = sbr.rel (%p345) target = $region40
      $region39: #{glow_forward.5} parent=5 // pred_region
        // Predicated region
        $region41: #{glow_forward.5} parent=39 // pred_check
          %p348 = pneg %p51
        $region42: #{glow_forward.5} parent=39 // pred_check_branch
          %350 = sbr.rel (%p348) target = $region44
        $region43: #{glow_forward.5} parent=39 // pred_region
          %s351 = sand.u32 %s41, 1
          %s352 = scalar_lea.sflag [#allocation4], %s351
          %s353 = sand.u32 %s41, 1
          %s354 = smul.addr %s353, 32
          %s355 = scalar_lea.vmem [#allocation3], %s354
          %s357 = ssub.s32 512, 512
          %358 = vsyncadd %s352, %s357
          %s359 = smul.addr %s31, 8
          %s360 = smul.addr %s359, 64
          %s361 = scalar_lea.hbm %s0, %s360
          %s362 = sshll.u32 %s355, 4
          %s363 = int_to_ptr.vmem [resolvable:$true] %s362
          %368 = dma.hbm_to_vmem [thread:$0]  %s361, 512, %s363, %s352, 64, 64, 4
        $region44: #{glow_forward.5} parent=39 // pred_fallthru
          _
        // Predicated region
        $region45: #{glow_forward.5} parent=39 // pred_check
          %p369 = pneg %p161
        $region46: #{glow_forward.5} parent=39 // pred_check_branch
          %371 = sbr.rel (%p369) target = $region48
        $region47: #{glow_forward.5} parent=39 // pred_region
          %s372 = sand.u32 %s31, 1
          %s373 = scalar_lea.sflag [#allocation13], %s372
          %s374 = sand.u32 %s151, 1
          %s375 = smul.addr %s374, 64
          %s376 = scalar_lea.vmem [#allocation12], %s375
          %s378 = ssub.s32 1024, 1024
          %379 = vsyncadd %s373, %s378
          %s380 = smul.addr %s31, 8
          %s381 = smul.addr %s380, 128
          %s382 = scalar_lea.hbm %s5, %s381
          %s383 = sshll.u32 %s376, 4
          %s384 = int_to_ptr.vmem [resolvable:$true] %s383
          %389 = dma.hbm_to_vmem [thread:$0]  %s382, 1024, %s384, %s373, 128, 128, 8
        $region48: #{glow_forward.5} parent=39 // pred_fallthru
          _
      $region40: #{glow_forward.5} parent=5 // pred_fallthru
        _
      %p390 = scmp.le.s32.totalorder 1, %s31
      %p391 = scmp.lt.s32.totalorder %s31, 3
      %p392 = pnand %p390, %p391
      %p393 = pneg %p392
      // Predicated region
      $region49: #{glow_forward.5} parent=5 // pred_check
        _
      $region50: #{glow_forward.5} parent=5 // pred_check_branch
        %395 = sbr.rel (%p392) target = $region52
      $region51: #{glow_forward.5} parent=5 // pred_region
        %s396 = ssub.s32 %s31, 1
        %s397 = sand.u32 %s44, 1
        %s398 = scalar_lea.sflag [#allocation4], %s397
        %s399 = sand.u32 %s44, 1
        %s400 = smul.addr %s399, 32
        %s401 = scalar_lea.vmem [#allocation3], %s400
        // Predicated region
        $region53: #{glow_forward.5} parent=51 // pred_check
          %p402 = pneg %p57
        $region54: #{glow_forward.5} parent=51 // pred_check_branch
          %404 = sbr.rel (%p402) target = $region56
        $region55: #{glow_forward.5} parent=51 // pred_region
          %405 = dma.done %s398, 512
        $region56: #{glow_forward.5} parent=51 // pred_fallthru
          _
        // Predicated region
        $region57: #{glow_forward.5} parent=51 // pred_check
          %p406 = pneg %p78
        $region58: #{glow_forward.5} parent=51 // pred_check_branch
          %408 = sbr.rel (%p406) target = $region60
        $region59: #{glow_forward.5} parent=51 // pred_region
          %409 = dma.done [#allocation7], 16
        $region60: #{glow_forward.5} parent=51 // pred_fallthru
          _
        // Predicated region
        $region61: #{glow_forward.5} parent=51 // pred_check
          %p410 = pneg %p99
        $region62: #{glow_forward.5} parent=51 // pred_check_branch
          %412 = sbr.rel (%p410) target = $region64
        $region63: #{glow_forward.5} parent=51 // pred_region
          %413 = dma.done [#allocation7], 16
        $region64: #{glow_forward.5} parent=51 // pred_fallthru
          _
        // Predicated region
        $region65: #{glow_forward.5} parent=51 // pred_check
          %p414 = pneg %p120
        $region66: #{glow_forward.5} parent=51 // pred_check_branch
          %416 = sbr.rel (%p414) target = $region68
        $region67: #{glow_forward.5} parent=51 // pred_region
          %417 = dma.done [#allocation10], 2304
        $region68: #{glow_forward.5} parent=51 // pred_fallthru
          _
        // Predicated region
        $region69: #{glow_forward.5} parent=51 // pred_check
          %p418 = pneg %p141
        $region70: #{glow_forward.5} parent=51 // pred_check_branch
          %420 = sbr.rel (%p418) target = $region72
        $region71: #{glow_forward.5} parent=51 // pred_region
          %421 = dma.done [#allocation10], 16
        $region72: #{glow_forward.5} parent=51 // pred_fallthru
          _
        %s422 = sand.u32 %s36, 1
        %s423 = scalar_lea.sflag [#allocation13], %s422
        %s424 = sand.u32 %s154, 1
        %s425 = smul.addr %s424, 64
        %s426 = scalar_lea.vmem [#allocation12], %s425
        // Predicated region
        $region73: #{glow_forward.5} parent=51 // pred_check
          %p427 = pneg %p167
        $region74: #{glow_forward.5} parent=51 // pred_check_branch
          %429 = sbr.rel (%p427) target = $region76
        $region75: #{glow_forward.5} parent=51 // pred_region
          %430 = dma.done %s423, 1024
        $region76: #{glow_forward.5} parent=51 // pred_fallthru
          _
        // Predicated region
        $region77: #{glow_forward.5} parent=51 // pred_check
          %p431 = pneg %p188
        $region78: #{glow_forward.5} parent=51 // pred_check_branch
          %433 = sbr.rel (%p431) target = $region80
        $region79: #{glow_forward.5} parent=51 // pred_region
          %434 = dma.done [#allocation13], 16
        $region80: #{glow_forward.5} parent=51 // pred_fallthru
          _
        // Predicated region
        $region81: #{glow_forward.5} parent=51 // pred_check
          %p435 = pneg %p209
        $region82: #{glow_forward.5} parent=51 // pred_check_branch
          %437 = sbr.rel (%p435) target = $region84
        $region83: #{glow_forward.5} parent=51 // pred_region
          %438 = dma.done [#allocation16], 16
        $region84: #{glow_forward.5} parent=51 // pred_fallthru
          _
        %s439 = sand.u32 %s44, 1
        %s440 = scalar_lea.sflag [#allocation4], %s439
        %s441 = sand.u32 %s44, 1
        %s442 = smul.addr %s441, 32
        %s443 = scalar_lea.vmem [#allocation3], %s442
        %p444 = pneg %p57
        %p445 = pneg %p54
        %p446 = pneg %p78
        %p447 = pneg %p75
        %p448 = pneg %p99
        %p449 = pneg %p96
        %p450 = pneg %p120
        %p451 = pneg %p117
        %p452 = pneg %p141
        %p453 = pneg %p138
        %s454 = sand.u32 %s36, 1
        %s455 = scalar_lea.sflag [#allocation13], %s454
        %s456 = sand.u32 %s154, 1
        %s457 = smul.addr %s456, 64
        %s458 = scalar_lea.vmem [#allocation12], %s457
        %p459 = pneg %p167
        %p460 = pneg %p164
        %p461 = pneg %p188
        %p462 = pneg %p185
        %p463 = pneg %p209
        %p464 = pneg %p206
        %p465 = pneg %p235
        %p466 = pneg %p232
        %s467 = sand.u32 %s222, 1
        %s468 = scalar_lea.sflag [#allocation5], %s467
        %s469 = sand.u32 %s222, 1
        %s470 = smul.addr %s469, 64
        %s471 = scalar_lea.vmem [#allocation17], %s470
        %p472 = pneg %p261
        %p473 = pneg %p258
        %s474 = sand.u32 %s248, 1
        %s475 = scalar_lea.sflag [#allocation19], %s474
        %s476 = sand.u32 %s248, 1
        %s477 = scalar_lea.vmem [#allocation18], %s476
        %v479 = vld [vmem:[%s401] sm:$0xf]
        %v480 = vld [vmem:[%s401 + $0x4] sm:$0xf]
        %v481 = vld [vmem:[%s401 + $0x8] sm:$0xf]
        %v482 = vld [vmem:[%s401 + $0xc] sm:$0xf]
        %v483 = vld [vmem:[%s401 + $0x10] sm:$0xf]
        %v484 = vld [vmem:[%s401 + $0x14] sm:$0xf]
        %v485 = vld [vmem:[%s401 + $0x18] sm:$0xf]
        %v486 = vld [vmem:[%s401 + $0x1c] sm:$0xf]
        %v487 = vunpack.c.l.bf16 %v479
        %v488 = vunpack.c.l.bf16 %v480
        %v489 = vunpack.c.l.bf16 %v481
        %v490 = vunpack.c.l.bf16 %v482
        %v491 = vunpack.c.l.bf16 %v483
        %v492 = vunpack.c.l.bf16 %v484
        %v493 = vunpack.c.l.bf16 %v485
        %v494 = vunpack.c.l.bf16 %v486
        %v495 = vld [vmem:[#allocation6] sm:$0x1]
        %v497 = vlaneseq
        %v498 = vshrl.u32 %v497, 7
        %v499 = vsub.s32 0, %v498
        %v500 = vrot.slane %v495, %v499
        %v502 = vmul.f32 %v487, %v500
        %v503 = vmul.f32 %v488, %v500
        %v504 = vmul.f32 %v489, %v500
        %v505 = vmul.f32 %v490, %v500
        %v506 = vmul.f32 %v491, %v500
        %v507 = vmul.f32 %v492, %v500
        %v508 = vmul.f32 %v493, %v500
        %v509 = vmul.f32 %v494, %v500
        %v510 = vld [vmem:[#allocation8] sm:$0x1]
        %v512 = vlaneseq
        %v513 = vshrl.u32 %v512, 7
        %v514 = vsub.s32 0, %v513
        %v515 = vrot.slane %v510, %v514
        %v517 = vadd.f32 %v502, %v515
        %v518 = vadd.f32 %v503, %v515
        %v519 = vadd.f32 %v504, %v515
        %v520 = vadd.f32 %v505, %v515
        %v521 = vadd.f32 %v506, %v515
        %v522 = vadd.f32 %v507, %v515
        %v523 = vadd.f32 %v508, %v515
        %v524 = vadd.f32 %v509, %v515
        %v525 = vmax.f32 %v517, 0.0
        %v526 = vmax.f32 %v518, 0.0
        %v527 = vmax.f32 %v519, 0.0
        %v528 = vmax.f32 %v520, 0.0
        %v529 = vmax.f32 %v521, 0.0
        %v530 = vmax.f32 %v522, 0.0
        %v531 = vmax.f32 %v523, 0.0
        %v532 = vmax.f32 %v524, 0.0
        %vm533 = vcmask 261120
        %534 = vst.msk [vmem:[#allocation2] sm:$0xff] %vm533, 0.0
        %vm535 = vcmask 254976
        %536 = vst.msk [vmem:[#allocation2 + $0x8] sm:$0x3] %vm535, 0.0
        %s537 = scalar_lea.vmem [#allocation2], 144
        %538 = vst.msk [vmem:[%s537] sm:$0xff] %vm533, 0.0
        %539 = vst.msk [vmem:[%s537 + $0x8] sm:$0x3] %vm535, 0.0
        %vm540 = vcmask 253952
        %541 = vst.msk [vmem:[#allocation2] sm:$0x1] %vm540, 0.0
        %542 = vst.msk [vmem:[#allocation2 + $0x10] sm:$0x1] %vm540, 0.0
        %543 = vst.msk [vmem:[#allocation2 + $0x20] sm:$0x1] %vm540, 0.0
        %544 = vst.msk [vmem:[#allocation2 + $0x30] sm:$0x1] %vm540, 0.0
        %545 = vst.msk [vmem:[#allocation2 + $0x40] sm:$0x1] %vm540, 0.0
        %546 = vst.msk [vmem:[#allocation2 + $0x50] sm:$0x1] %vm540, 0.0
        %547 = vst.msk [vmem:[#allocation2 + $0x60] sm:$0x1] %vm540, 0.0
        %548 = vst.msk [vmem:[#allocation2 + $0x70] sm:$0x1] %vm540, 0.0
        %549 = vst.msk [vmem:[#allocation2 + $0x80] sm:$0x1] %vm540, 0.0
        %550 = vst.msk [vmem:[#allocation2 + $0x90] sm:$0x1] %vm540, 0.0
        %551 = vst.msk [vmem:[#allocation2 + $0x9] sm:$0x1] %vm540, 0.0
        %552 = vst.msk [vmem:[#allocation2 + $0x19] sm:$0x1] %vm540, 0.0
        %553 = vst.msk [vmem:[#allocation2 + $0x29] sm:$0x1] %vm540, 0.0
        %554 = vst.msk [vmem:[#allocation2 + $0x39] sm:$0x1] %vm540, 0.0
        %555 = vst.msk [vmem:[#allocation2 + $0x49] sm:$0x1] %vm540, 0.0
        %556 = vst.msk [vmem:[#allocation2 + $0x59] sm:$0x1] %vm540, 0.0
        %557 = vst.msk [vmem:[#allocation2 + $0x69] sm:$0x1] %vm540, 0.0
        %558 = vst.msk [vmem:[#allocation2 + $0x79] sm:$0x1] %vm540, 0.0
        %559 = vst.msk [vmem:[#allocation2 + $0x89] sm:$0x1] %vm540, 0.0
        %560 = vst.msk [vmem:[#allocation2 + $0x99] sm:$0x1] %vm540, 0.0
        %s561 = scalar_lea.vmem [#allocation2], 16
        %562 = vst.msk [vmem:[%s561 + $0x1] sm:$0xff] %vm533, %v525
        %563 = vst.msk [vmem:[%s561 + $0x11] sm:$0xff] %vm533, %v526
        %564 = vst.msk [vmem:[%s561 + $0x21] sm:$0xff] %vm533, %v527
        %565 = vst.msk [vmem:[%s561 + $0x31] sm:$0xff] %vm533, %v528
        %566 = vst.msk [vmem:[%s561 + $0x41] sm:$0xff] %vm533, %v529
        %567 = vst.msk [vmem:[%s561 + $0x51] sm:$0xff] %vm533, %v530
        %568 = vst.msk [vmem:[%s561 + $0x61] sm:$0xff] %vm533, %v531
        %569 = vst.msk [vmem:[%s561 + $0x71] sm:$0xff] %vm533, %v532
        %v570 = vld [vmem:[#allocation2] sm:$0xff]
        %v571 = vld [vmem:[#allocation2 + $0x8] sm:$0x3]
        %v572 = vld [vmem:[#allocation2 + $0x10] sm:$0xff]
        %v573 = vld [vmem:[#allocation2 + $0x18] sm:$0x3]
        %v574 = vld [vmem:[#allocation2 + $0x20] sm:$0xff]
        %v575 = vld [vmem:[#allocation2 + $0x28] sm:$0x3]
        %v576 = vld [vmem:[#allocation2 + $0x30] sm:$0xff]
        %v577 = vld [vmem:[#allocation2 + $0x38] sm:$0x3]
        %v578 = vld [vmem:[#allocation2 + $0x40] sm:$0xff]
        %v579 = vld [vmem:[#allocation2 + $0x48] sm:$0x3]
        %v580 = vld [vmem:[#allocation2 + $0x50] sm:$0xff]
        %v581 = vld [vmem:[#allocation2 + $0x58] sm:$0x3]
        %v582 = vld [vmem:[#allocation2 + $0x60] sm:$0xff]
        %v583 = vld [vmem:[#allocation2 + $0x68] sm:$0x3]
        %v584 = vld [vmem:[#allocation2 + $0x70] sm:$0xff]
        %v585 = vld [vmem:[#allocation2 + $0x78] sm:$0x3]
        %v586 = vld [vmem:[#allocation2 + $0x80] sm:$0xff]
        %v587 = vld [vmem:[#allocation2 + $0x88] sm:$0x3]
        %v588 = vld [vmem:[#allocation2 + $0x90] sm:$0xff]
        %v589 = vld [vmem:[#allocation2 + $0x98] sm:$0x3]
        %vm606 = vcmask 1046528
        %v607 = vrot.slane %v570, 1
        %v608 = vrot.slane %v571, 1
        %v609 = vsel %vm606, %v607, %v608
        %v610 = vrot.slane %v572, 1
        %v611 = vrot.slane %v573, 1
        %v612 = vsel %vm606, %v610, %v611
        %v613 = vrot.slane %v574, 1
        %v614 = vrot.slane %v575, 1
        %v615 = vsel %vm606, %v613, %v614
        %v616 = vrot.slane %v576, 1
        %v617 = vrot.slane %v577, 1
        %v618 = vsel %vm606, %v616, %v617
        %v619 = vrot.slane %v578, 1
        %v620 = vrot.slane %v579, 1
        %v621 = vsel %vm606, %v619, %v620
        %v622 = vrot.slane %v580, 1
        %v623 = vrot.slane %v581, 1
        %v624 = vsel %vm606, %v622, %v623
        %v625 = vrot.slane %v582, 1
        %v626 = vrot.slane %v583, 1
        %v627 = vsel %vm606, %v625, %v626
        %v628 = vrot.slane %v584, 1
        %v629 = vrot.slane %v585, 1
        %v630 = vsel %vm606, %v628, %v629
        %vm631 = vcmask 1045504
        %v632 = vrot.slane %v570, 2
        %v633 = vrot.slane %v571, 2
        %v634 = vsel %vm631, %v632, %v633
        %v635 = vrot.slane %v572, 2
        %v636 = vrot.slane %v573, 2
        %v637 = vsel %vm631, %v635, %v636
        %v638 = vrot.slane %v574, 2
        %v639 = vrot.slane %v575, 2
        %v640 = vsel %vm631, %v638, %v639
        %v641 = vrot.slane %v576, 2
        %v642 = vrot.slane %v577, 2
        %v643 = vsel %vm631, %v641, %v642
        %v644 = vrot.slane %v578, 2
        %v645 = vrot.slane %v579, 2
        %v646 = vsel %vm631, %v644, %v645
        %v647 = vrot.slane %v580, 2
        %v648 = vrot.slane %v581, 2
        %v649 = vsel %vm631, %v647, %v648
        %v650 = vrot.slane %v582, 2
        %v651 = vrot.slane %v583, 2
        %v652 = vsel %vm631, %v650, %v651
        %v653 = vrot.slane %v584, 2
        %v654 = vrot.slane %v585, 2
        %v655 = vsel %vm631, %v653, %v654
        %v658 = vrot.slane %v586, 1
        %v659 = vrot.slane %v587, 1
        %v660 = vsel %vm606, %v658, %v659
        %v669 = vrot.slane %v586, 2
        %v670 = vrot.slane %v587, 2
        %v671 = vsel %vm631, %v669, %v670
        %v674 = vrot.slane %v588, 1
        %v675 = vrot.slane %v589, 1
        %v676 = vsel %vm606, %v674, %v675
        %v677 = vrot.slane %v588, 2
        %v678 = vrot.slane %v589, 2
        %v679 = vsel %vm631, %v677, %v678
        %688 = vrot.lane.b32.xlu0 %v609, 32
        %v689 = vpop.permute.xlu0 %688
        %690 = vrot.lane.b32.xlu0 %v612, 32
        %v691 = vpop.permute.xlu0 %690
        %692 = vrot.lane.b32.xlu0 %v615, 32
        %v693 = vpop.permute.xlu0 %692
        %694 = vrot.lane.b32.xlu0 %v618, 32
        %v695 = vpop.permute.xlu0 %694
        %696 = vrot.lane.b32.xlu0 %v621, 32
        %v697 = vpop.permute.xlu0 %696
        %698 = vrot.lane.b32.xlu0 %v624, 32
        %v699 = vpop.permute.xlu0 %698
        %700 = vrot.lane.b32.xlu0 %v627, 32
        %v701 = vpop.permute.xlu0 %700
        %702 = vrot.lane.b32.xlu0 %v630, 32
        %v703 = vpop.permute.xlu0 %702
        %712 = vrot.lane.b32.xlu0 %v634, 64
        %v713 = vpop.permute.xlu0 %712
        %714 = vrot.lane.b32.xlu0 %v637, 64
        %v715 = vpop.permute.xlu0 %714
        %716 = vrot.lane.b32.xlu0 %v640, 64
        %v717 = vpop.permute.xlu0 %716
        %718 = vrot.lane.b32.xlu0 %v643, 64
        %v719 = vpop.permute.xlu0 %718
        %720 = vrot.lane.b32.xlu0 %v646, 64
        %v721 = vpop.permute.xlu0 %720
        %722 = vrot.lane.b32.xlu0 %v649, 64
        %v723 = vpop.permute.xlu0 %722
        %724 = vrot.lane.b32.xlu0 %v652, 64
        %v725 = vpop.permute.xlu0 %724
        %726 = vrot.lane.b32.xlu0 %v655, 64
        %v727 = vpop.permute.xlu0 %726
        %736 = vrot.lane.b32.xlu0 %v572, 96
        %v737 = vpop.permute.xlu0 %736
        %738 = vrot.lane.b32.xlu0 %v574, 96
        %v739 = vpop.permute.xlu0 %738
        %740 = vrot.lane.b32.xlu0 %v576, 96
        %v741 = vpop.permute.xlu0 %740
        %742 = vrot.lane.b32.xlu0 %v578, 96
        %v743 = vpop.permute.xlu0 %742
        %744 = vrot.lane.b32.xlu0 %v580, 96
        %v745 = vpop.permute.xlu0 %744
        %746 = vrot.lane.b32.xlu0 %v582, 96
        %v747 = vpop.permute.xlu0 %746
        %748 = vrot.lane.b32.xlu0 %v584, 96
        %v749 = vpop.permute.xlu0 %748
        %750 = vrot.lane.b32.xlu0 %v586, 96
        %v751 = vpop.permute.xlu0 %750
        %760 = vrot.lane.b32.xlu0 %v637, 32
        %v761 = vpop.permute.xlu0 %760
        %762 = vrot.lane.b32.xlu0 %v640, 32
        %v763 = vpop.permute.xlu0 %762
        %764 = vrot.lane.b32.xlu0 %v643, 32
        %v765 = vpop.permute.xlu0 %764
        %766 = vrot.lane.b32.xlu0 %v646, 32
        %v767 = vpop.permute.xlu0 %766
        %768 = vrot.lane.b32.xlu0 %v649, 32
        %v769 = vpop.permute.xlu0 %768
        %770 = vrot.lane.b32.xlu0 %v652, 32
        %v771 = vpop.permute.xlu0 %770
        %772 = vrot.lane.b32.xlu0 %v655, 32
        %v773 = vpop.permute.xlu0 %772
        %774 = vrot.lane.b32.xlu0 %v671, 32
        %v775 = vpop.permute.xlu0 %774
        %784 = vrot.lane.b32.xlu0 %v574, 64
        %v785 = vpop.permute.xlu0 %784
        %786 = vrot.lane.b32.xlu0 %v576, 64
        %v787 = vpop.permute.xlu0 %786
        %788 = vrot.lane.b32.xlu0 %v578, 64
        %v789 = vpop.permute.xlu0 %788
        %790 = vrot.lane.b32.xlu0 %v580, 64
        %v791 = vpop.permute.xlu0 %790
        %792 = vrot.lane.b32.xlu0 %v582, 64
        %v793 = vpop.permute.xlu0 %792
        %794 = vrot.lane.b32.xlu0 %v584, 64
        %v795 = vpop.permute.xlu0 %794
        %796 = vrot.lane.b32.xlu0 %v586, 64
        %v797 = vpop.permute.xlu0 %796
        %798 = vrot.lane.b32.xlu0 %v588, 64
        %v799 = vpop.permute.xlu0 %798
        %808 = vrot.lane.b32.xlu0 %v615, 96
        %v809 = vpop.permute.xlu0 %808
        %810 = vrot.lane.b32.xlu0 %v618, 96
        %v811 = vpop.permute.xlu0 %810
        %812 = vrot.lane.b32.xlu0 %v621, 96
        %v813 = vpop.permute.xlu0 %812
        %814 = vrot.lane.b32.xlu0 %v624, 96
        %v815 = vpop.permute.xlu0 %814
        %816 = vrot.lane.b32.xlu0 %v627, 96
        %v817 = vpop.permute.xlu0 %816
        %818 = vrot.lane.b32.xlu0 %v630, 96
        %v819 = vpop.permute.xlu0 %818
        %820 = vrot.lane.b32.xlu0 %v660, 96
        %v821 = vpop.permute.xlu0 %820
        %822 = vrot.lane.b32.xlu0 %v676, 96
        %v823 = vpop.permute.xlu0 %822
        %v832 = vsel %vm533, %v570, %v689
        %v833 = vsel %vm533, %v572, %v691
        %v834 = vsel %vm533, %v574, %v693
        %v835 = vsel %vm533, %v576, %v695
        %v836 = vsel %vm533, %v578, %v697
        %v837 = vsel %vm533, %v580, %v699
        %v838 = vsel %vm533, %v582, %v701
        %v839 = vsel %vm533, %v584, %v703
        %vm840 = vcmask 523264
        %v841 = vsel %vm840, %v832, %v713
        %v842 = vsel %vm840, %v833, %v715
        %v843 = vsel %vm840, %v834, %v717
        %v844 = vsel %vm840, %v835, %v719
        %v845 = vsel %vm840, %v836, %v721
        %v846 = vsel %vm840, %v837, %v723
        %v847 = vsel %vm840, %v838, %v725
        %v848 = vsel %vm840, %v839, %v727
        %vm849 = vcmask 785408
        %v850 = vsel %vm849, %v841, %v737
        %v851 = vsel %vm849, %v842, %v739
        %v852 = vsel %vm849, %v843, %v741
        %v853 = vsel %vm849, %v844, %v743
        %v854 = vsel %vm849, %v845, %v745
        %v855 = vsel %vm849, %v846, %v747
        %v856 = vsel %vm849, %v847, %v749
        %v857 = vsel %vm849, %v848, %v751
        %v858 = vsel %vm533, %v612, %v761
        %v859 = vsel %vm533, %v615, %v763
        %v860 = vsel %vm533, %v618, %v765
        %v861 = vsel %vm533, %v621, %v767
        %v862 = vsel %vm533, %v624, %v769
        %v863 = vsel %vm533, %v627, %v771
        %v864 = vsel %vm533, %v630, %v773
        %v865 = vsel %vm533, %v660, %v775
        %v866 = vsel %vm840, %v858, %v785
        %v867 = vsel %vm840, %v859, %v787
        %v868 = vsel %vm840, %v860, %v789
        %v869 = vsel %vm840, %v861, %v791
        %v870 = vsel %vm840, %v862, %v793
        %v871 = vsel %vm840, %v863, %v795
        %v872 = vsel %vm840, %v864, %v797
        %v873 = vsel %vm840, %v865, %v799
        %v874 = vsel %vm849, %v866, %v809
        %v875 = vsel %vm849, %v867, %v811
        %v876 = vsel %vm849, %v868, %v813
        %v877 = vsel %vm849, %v869, %v815
        %v878 = vsel %vm849, %v870, %v817
        %v879 = vsel %vm849, %v871, %v819
        %v880 = vsel %vm849, %v872, %v821
        %v881 = vsel %vm849, %v873, %v823
        %v882 = vpack.c.bf16 %v851, %v850
        %v883 = vpack.c.bf16 %v875, %v874
        %v884 = vpack.c.bf16 %v643, %v640
        %v885 = vpack.c.bf16 %v853, %v852
        %v886 = vpack.c.bf16 %v877, %v876
        %v887 = vpack.c.bf16 %v649, %v646
        %v888 = vpack.c.bf16 %v855, %v854
        %v889 = vpack.c.bf16 %v879, %v878
        %v890 = vpack.c.bf16 %v655, %v652
        %v891 = vpack.c.bf16 %v857, %v856
        %v892 = vpack.c.bf16 %v881, %v880
        %v893 = vpack.c.bf16 %v679, %v671
        %v894 = vld [vmem:[#allocation9] sm:$0xf]
        %v895 = vld [vmem:[#allocation9 + $0x4] sm:$0xf]
        %v896 = vld [vmem:[#allocation9 + $0x8] sm:$0xf]
        %v897 = vld [vmem:[#allocation9 + $0xc] sm:$0xf]
        %v898 = vld [vmem:[#allocation9 + $0x10] sm:$0xf]
        %v899 = vld [vmem:[#allocation9 + $0x14] sm:$0xf]
        %v900 = vld [vmem:[#allocation9 + $0x18] sm:$0xf]
        %v901 = vld [vmem:[#allocation9 + $0x1c] sm:$0xf]
        %v902 = vld [vmem:[#allocation9 + $0x20] sm:$0xf]
        %v903 = vld [vmem:[#allocation9 + $0x24] sm:$0xf]
        %v904 = vld [vmem:[#allocation9 + $0x28] sm:$0xf]
        %v905 = vld [vmem:[#allocation9 + $0x2c] sm:$0xf]
        %v906 = vld [vmem:[#allocation9 + $0x30] sm:$0xf]
        %v907 = vld [vmem:[#allocation9 + $0x34] sm:$0xf]
        %v908 = vld [vmem:[#allocation9 + $0x38] sm:$0xf]
        %v909 = vld [vmem:[#allocation9 + $0x3c] sm:$0xf]
        %v910 = vld [vmem:[#allocation9 + $0x40] sm:$0xf]
        %v911 = vld [vmem:[#allocation9 + $0x44] sm:$0xf]
        %v912 = vld [vmem:[#allocation9 + $0x48] sm:$0xf]
        %v913 = vld [vmem:[#allocation9 + $0x4c] sm:$0xf]
        %v914 = vld [vmem:[#allocation9 + $0x50] sm:$0xf]
        %v915 = vld [vmem:[#allocation9 + $0x54] sm:$0xf]
        %v916 = vld [vmem:[#allocation9 + $0x58] sm:$0xf]
        %v917 = vld [vmem:[#allocation9 + $0x5c] sm:$0xf]
        %v918 = vld [vmem:[#allocation9 + $0x60] sm:$0xf]
        %v919 = vld [vmem:[#allocation9 + $0x64] sm:$0xf]
        %v920 = vld [vmem:[#allocation9 + $0x68] sm:$0xf]
        %v921 = vld [vmem:[#allocation9 + $0x6c] sm:$0xf]
        %v922 = vld [vmem:[#allocation9 + $0x70] sm:$0xf]
        %v923 = vld [vmem:[#allocation9 + $0x74] sm:$0xf]
        %v924 = vld [vmem:[#allocation9 + $0x78] sm:$0xf]
        %v925 = vld [vmem:[#allocation9 + $0x7c] sm:$0xf]
        %v926 = vld [vmem:[#allocation9 + $0x80] sm:$0xf]
        %v927 = vld [vmem:[#allocation9 + $0x84] sm:$0xf]
        %v928 = vld [vmem:[#allocation9 + $0x88] sm:$0xf]
        %v929 = vld [vmem:[#allocation9 + $0x8c] sm:$0xf]
        %v930 = vld [vmem:[#allocation11] sm:$0x1]
        %v932 = vlaneseq
        %v933 = vshrl.u32 %v932, 7
        %v934 = vsub.s32 0, %v933
        %v935 = vrot.slane %v930, %v934
        %v973 = vunpack.c.l.b16 %v894
        %v974 = vunpack.c.l.b16 %v895
        %v975 = vunpack.c.l.b16 %v896
        %v976 = vunpack.c.l.b16 %v897
        %v977 = vunpack.c.l.b16 %v898
        %v978 = vunpack.c.l.b16 %v899
        %v979 = vunpack.c.l.b16 %v900
        %v980 = vunpack.c.l.b16 %v901
        %v981 = vunpack.c.l.b16 %v902
        %v982 = vunpack.c.l.b16 %v903
        %v983 = vunpack.c.l.b16 %v904
        %v984 = vunpack.c.l.b16 %v905
        %v985 = vunpack.c.l.b16 %v906
        %v986 = vunpack.c.l.b16 %v907
        %v987 = vunpack.c.l.b16 %v908
        %v988 = vunpack.c.l.b16 %v909
        %v989 = vunpack.c.l.b16 %v910
        %v990 = vunpack.c.l.b16 %v911
        %v991 = vunpack.c.l.b16 %v912
        %v992 = vunpack.c.l.b16 %v913
        %v993 = vunpack.c.l.b16 %v914
        %v994 = vunpack.c.l.b16 %v915
        %v995 = vunpack.c.l.b16 %v916
        %v996 = vunpack.c.l.b16 %v917
        %v997 = vunpack.c.l.b16 %v918
        %v998 = vunpack.c.l.b16 %v919
        %v999 = vunpack.c.l.b16 %v920
        %v1000 = vunpack.c.l.b16 %v921
        %v1001 = vunpack.c.l.b16 %v922
        %v1002 = vunpack.c.l.b16 %v923
        %v1003 = vunpack.c.l.b16 %v924
        %v1004 = vunpack.c.l.b16 %v925
        %v1005 = vunpack.c.l.b16 %v926
        %v1006 = vunpack.c.l.b16 %v927
        %v1007 = vunpack.c.l.b16 %v928
        %v1008 = vunpack.c.l.b16 %v929
        %v1009 = vpack.c.b16 %v974, %v973
        %v1010 = vpack.c.b16 %v976, %v975
        %v1011 = vpack.c.b16 %v978, %v977
        %v1012 = vpack.c.b16 %v980, %v979
        %v1013 = vpack.c.b16 %v982, %v981
        %v1014 = vpack.c.b16 %v984, %v983
        %v1015 = vpack.c.b16 %v986, %v985
        %v1016 = vpack.c.b16 %v988, %v987
        %v1017 = vpack.c.b16 %v990, %v989
        %v1018 = vpack.c.b16 %v992, %v991
        %v1019 = vpack.c.b16 %v994, %v993
        %v1020 = vpack.c.b16 %v996, %v995
        %v1021 = vpack.c.b16 %v998, %v997
        %v1022 = vpack.c.b16 %v1000, %v999
        %v1023 = vpack.c.b16 %v1002, %v1001
        %v1024 = vpack.c.b16 %v1004, %v1003
        %v1025 = vpack.c.b16 %v1006, %v1005
        %v1026 = vpack.c.b16 %v1008, %v1007
        %v1046 = vsel %vm533, %v884, 0
        %v1049 = vsel %vm533, %v887, 0
        %v1052 = vsel %vm533, %v890, 0
        %v1055 = vsel %vm533, %v893, 0
        %1057 = vmatprep.subr.bf16.mxu0 0
        %1058 = vmatpush1.bf16.msra.mxu0 %v1009
        %1059 = vmatprep.subr.bf16.mxu0 0
        %1060 = vmatpush1.bf16.msra.mxu0 %v1010
        %1061 = vmatprep.subr.bf16.mxu0 0
        %1062 = vmatpush1.bf16.msra.mxu0 %v1011
        %1063 = vmatprep.subr.bf16.mxu0 0
        %1064 = vmatpush1.bf16.msra.mxu0 %v1012
        %1065 = vmatprep.subr.bf16.mxu0 0
        %1066 = vmatpush1.bf16.msra.mxu0 %v1013
        %1067 = vmatprep.subr.bf16.mxu0 0
        %1068 = vmatpush1.bf16.msra.mxu0 %v1014
        %1069 = vmatprep.subr.bf16.mxu0 0
        %1070 = vmatpush1.bf16.msra.mxu0 %v1015
        %1071 = vmatprep.subr.bf16.mxu0 0
        %1072 = vmatpush1.bf16.msra.mxu0 %v1016
        %1073 = vmatprep.subr.bf16.mxu0 0
        %1074 = vmatpush1.bf16.msra.mxu0 %v1017
        %1075 = vmatprep.subr.bf16.mxu0 0
        %1076 = vmatpush1.bf16.msra.mxu0 %v1018
        %1077 = vmatprep.subr.bf16.mxu0 0
        %1078 = vmatpush1.bf16.msra.mxu0 %v1019
        %1079 = vmatprep.subr.bf16.mxu0 0
        %1080 = vmatpush1.bf16.msra.mxu0 %v1020
        %1081 = vmatprep.subr.bf16.mxu0 0
        %1082 = vmatpush1.bf16.msra.mxu0 %v1021
        %1083 = vmatprep.subr.bf16.mxu0 0
        %1084 = vmatpush1.bf16.msra.mxu0 %v1022
        %1085 = vmatprep.subr.bf16.mxu0 0
        %1086 = vmatpush1.bf16.msra.mxu0 %v1023
        %1087 = vmatprep.subr.bf16.mxu0 0
        %1088 = vmatpush1.bf16.msra.mxu0 %v1024
        %1089 = vmatprep.mubr.bf16.mxu0 %v883
        %1090 = vmatmul.mubr.bf16.gmra.mrb[0].mxu0 %v882
        %v1091 = vpop.f32.mrb[0].mxu0
        %v1092 = vadd.f32 %v935, %v1091
        %v1093 = vpop.f32.mrb[0].mxu0
        %v1094 = vpop.f32.mrb[0].mxu0
        %v1095 = vadd.f32 %v935, %v1094
        %v1096 = vpop.f32.mrb[0].mxu0
        %1097 = vmatprep.mubr.bf16.mxu0 %v886
        %1098 = vmatmul.mubr.bf16.gmra.mrb[0].mxu0 %v885
        %v1099 = vpop.f32.mrb[0].mxu0
        %v1100 = vadd.f32 %v935, %v1099
        %v1101 = vpop.f32.mrb[0].mxu0
        %v1102 = vpop.f32.mrb[0].mxu0
        %v1103 = vadd.f32 %v935, %v1102
        %v1104 = vpop.f32.mrb[0].mxu0
        %1105 = vmatprep.mubr.bf16.mxu0 %v889
        %1106 = vmatmul.mubr.bf16.gmra.mrb[0].mxu0 %v888
        %v1107 = vpop.f32.mrb[0].mxu0
        %v1108 = vadd.f32 %v935, %v1107
        %v1109 = vpop.f32.mrb[0].mxu0
        %v1110 = vpop.f32.mrb[0].mxu0
        %v1111 = vadd.f32 %v935, %v1110
        %v1112 = vpop.f32.mrb[0].mxu0
        %1113 = vmatprep.mubr.bf16.mxu0 %v892
        %1114 = vmatmul.mubr.bf16.gmra.mrb[0].mxu0 %v891
        %v1115 = vpop.f32.mrb[0].mxu0
        %v1116 = vadd.f32 %v935, %v1115
        %v1117 = vpop.f32.mrb[0].mxu0
        %v1118 = vpop.f32.mrb[0].mxu0
        %v1119 = vadd.f32 %v935, %v1118
        %v1120 = vpop.f32.mrb[0].mxu0
        %1121 = vdwg.mxu0
        %1122 = vmatprep.subr.bf16.mxu0 0
        %1123 = vmatpush1.bf16.msra.mxu0 %v1025
        %1124 = vmatprep.subr.bf16.mxu0 0
        %1125 = vmatpush1.bf16.msra.mxu0 %v1026
        %1126 = vmatprep.subr.bf16.mxu0 0
        %1127 = vmatpush1.bf16.msra.mxu0 0
        %1128 = vmatprep.subr.bf16.mxu0 0
        %1129 = vmatpush1.bf16.msra.mxu0 0
        %1130 = vmatprep.subr.bf16.mxu0 0
        %1131 = vmatpush1.bf16.msra.mxu0 0
        %1132 = vmatprep.subr.bf16.mxu0 0
        %1133 = vmatpush1.bf16.msra.mxu0 0
        %1134 = vmatprep.subr.bf16.mxu0 0
        %1135 = vmatpush1.bf16.msra.mxu0 0
        %1136 = vmatprep.subr.bf16.mxu0 0
        %1137 = vmatpush1.bf16.msra.mxu0 0
        %1138 = vmatprep.subr.bf16.mxu0 0
        %1139 = vmatpush1.bf16.msra.mxu0 0
        %1140 = vmatprep.subr.bf16.mxu0 0
        %1141 = vmatpush1.bf16.msra.mxu0 0
        %1142 = vmatprep.subr.bf16.mxu0 0
        %1143 = vmatpush1.bf16.msra.mxu0 0
        %1144 = vmatprep.subr.bf16.mxu0 0
        %1145 = vmatpush1.bf16.msra.mxu0 0
        %1146 = vmatprep.subr.bf16.mxu0 0
        %1147 = vmatpush1.bf16.msra.mxu0 0
        %1148 = vmatprep.subr.bf16.mxu0 0
        %1149 = vmatpush1.bf16.msra.mxu0 0
        %1150 = vmatprep.subr.bf16.mxu0 0
        %1151 = vmatpush1.bf16.msra.mxu0 0
        %1152 = vmatprep.subr.bf16.mxu0 0
        %1153 = vmatpush1.bf16.msra.mxu0 0
        %1154 = vmatprep.mubr.bf16.mxu0 0
        %1155 = vmatmul.mubr.bf16.gmra.mrb[0].mxu0 %v1046
        %v1156 = vpop.f32.mrb[0].mxu0
        %v1157 = vadd.f32 %v1092, %v1156
        %v1158 = vpop.f32.mrb[0].mxu0
        %v1159 = vpop.f32.mrb[0].mxu0
        %v1160 = vadd.f32 %v1095, %v1159
        %v1161 = vpop.f32.mrb[0].mxu0
        %1162 = vmatprep.mubr.bf16.mxu0 0
        %1163 = vmatmul.mubr.bf16.gmra.mrb[0].mxu0 %v1049
        %v1164 = vpop.f32.mrb[0].mxu0
        %v1165 = vadd.f32 %v1100, %v1164
        %v1166 = vpop.f32.mrb[0].mxu0
        %v1167 = vpop.f32.mrb[0].mxu0
        %v1168 = vadd.f32 %v1103, %v1167
        %v1169 = vpop.f32.mrb[0].mxu0
        %1170 = vmatprep.mubr.bf16.mxu0 0
        %1171 = vmatmul.mubr.bf16.gmra.mrb[0].mxu0 %v1052
        %v1172 = vpop.f32.mrb[0].mxu0
        %v1173 = vadd.f32 %v1108, %v1172
        %v1174 = vpop.f32.mrb[0].mxu0
        %v1175 = vpop.f32.mrb[0].mxu0
        %v1176 = vadd.f32 %v1111, %v1175
        %v1177 = vpop.f32.mrb[0].mxu0
        %1178 = vmatprep.mubr.bf16.mxu0 0
        %1179 = vmatmul.mubr.bf16.gmra.mrb[0].mxu0 %v1055
        %v1180 = vpop.f32.mrb[0].mxu0
        %v1181 = vadd.f32 %v1116, %v1180
        %v1182 = vpop.f32.mrb[0].mxu0
        %v1183 = vpop.f32.mrb[0].mxu0
        %v1184 = vadd.f32 %v1119, %v1183
        %v1185 = vpop.f32.mrb[0].mxu0
        %1186 = vdwg.mxu0
        %v1187 = vxor.u32 %v1157, 2147483648
        %v1188 = vxor.u32 %v1160, 2147483648
        %v1189 = vxor.u32 %v1165, 2147483648
        %v1190 = vxor.u32 %v1168, 2147483648
        %v1191 = vxor.u32 %v1173, 2147483648
        %v1192 = vxor.u32 %v1176, 2147483648
        %v1193 = vxor.u32 %v1181, 2147483648
        %v1194 = vxor.u32 %v1184, 2147483648
        %v1195 = vmul.f32 %v1187, 1.442695
        %v1196 = vpow.pop %v1195
        %v1197 = vmul.f32 %v1188, 1.442695
        %v1198 = vpow.pop %v1197
        %v1199 = vmul.f32 %v1189, 1.442695
        %v1200 = vpow.pop %v1199
        %v1201 = vmul.f32 %v1190, 1.442695
        %v1202 = vpow.pop %v1201
        %v1203 = vmul.f32 %v1191, 1.442695
        %v1204 = vpow.pop %v1203
        %v1205 = vmul.f32 %v1192, 1.442695
        %v1206 = vpow.pop %v1205
        %v1207 = vmul.f32 %v1193, 1.442695
        %v1208 = vpow.pop %v1207
        %v1209 = vmul.f32 %v1194, 1.442695
        %v1210 = vpow.pop %v1209
        %v1211 = vadd.f32 %v1196, 1.0
        %v1212 = vadd.f32 %v1198, 1.0
        %v1213 = vadd.f32 %v1200, 1.0
        %v1214 = vadd.f32 %v1202, 1.0
        %v1215 = vadd.f32 %v1204, 1.0
        %v1216 = vadd.f32 %v1206, 1.0
        %v1217 = vadd.f32 %v1208, 1.0
        %v1218 = vadd.f32 %v1210, 1.0
        %v1219 = vrcp.pop %v1211
        %v1220 = vmul.f32 1.0, %v1219
        %v1221 = vrcp.pop %v1212
        %v1222 = vmul.f32 1.0, %v1221
        %v1223 = vrcp.pop %v1213
        %v1224 = vmul.f32 1.0, %v1223
        %v1225 = vrcp.pop %v1214
        %v1226 = vmul.f32 1.0, %v1225
        %v1227 = vrcp.pop %v1215
        %v1228 = vmul.f32 1.0, %v1227
        %v1229 = vrcp.pop %v1216
        %v1230 = vmul.f32 1.0, %v1229
        %v1231 = vrcp.pop %v1217
        %v1232 = vmul.f32 1.0, %v1231
        %v1233 = vrcp.pop %v1218
        %v1234 = vmul.f32 1.0, %v1233
        %v1235 = vld [vmem:[%s426] sm:$0xff]
        %v1236 = vld [vmem:[%s426 + $0x8] sm:$0xff]
        %v1237 = vld [vmem:[%s426 + $0x10] sm:$0xff]
        %v1238 = vld [vmem:[%s426 + $0x18] sm:$0xff]
        %v1239 = vld [vmem:[%s426 + $0x20] sm:$0xff]
        %v1240 = vld [vmem:[%s426 + $0x28] sm:$0xff]
        %v1241 = vld [vmem:[%s426 + $0x30] sm:$0xff]
        %v1242 = vld [vmem:[%s426 + $0x38] sm:$0xff]
        %v1243 = vld [vmem:[#allocation15] sm:$0x1]
        %v1245 = vlaneseq
        %v1246 = vshrl.u32 %v1245, 7
        %v1247 = vsub.s32 0, %v1246
        %v1248 = vrot.slane %v1243, %v1247
        %v1250 = vadd.f32 %v1235, %v1248
        %v1251 = vadd.f32 %v1236, %v1248
        %v1252 = vadd.f32 %v1237, %v1248
        %v1253 = vadd.f32 %v1238, %v1248
        %v1254 = vadd.f32 %v1239, %v1248
        %v1255 = vadd.f32 %v1240, %v1248
        %v1256 = vadd.f32 %v1241, %v1248
        %v1257 = vadd.f32 %v1242, %v1248
        %v1258 = vld [vmem:[#allocation14] sm:$0x1]
        %v1260 = vlaneseq
        %v1261 = vshrl.u32 %v1260, 7
        %v1262 = vsub.s32 0, %v1261
        %v1263 = vrot.slane %v1258, %v1262
        %v1265 = vmul.f32 %v1250, %v1263
        %v1266 = vmul.f32 %v1251, %v1263
        %v1267 = vmul.f32 %v1252, %v1263
        %v1268 = vmul.f32 %v1253, %v1263
        %v1269 = vmul.f32 %v1254, %v1263
        %v1270 = vmul.f32 %v1255, %v1263
        %v1271 = vmul.f32 %v1256, %v1263
        %v1272 = vmul.f32 %v1257, %v1263
        %1281 = vrot.lane.b32.xlu0 %v1157, 120
        %v1282 = vpop.permute.xlu0 %1281
        %1283 = vrot.lane.b32.xlu0 %v1160, 120
        %v1284 = vpop.permute.xlu0 %1283
        %1285 = vrot.lane.b32.xlu0 %v1165, 120
        %v1286 = vpop.permute.xlu0 %1285
        %1287 = vrot.lane.b32.xlu0 %v1168, 120
        %v1288 = vpop.permute.xlu0 %1287
        %1289 = vrot.lane.b32.xlu0 %v1173, 120
        %v1290 = vpop.permute.xlu0 %1289
        %1291 = vrot.lane.b32.xlu0 %v1176, 120
        %v1292 = vpop.permute.xlu0 %1291
        %1293 = vrot.lane.b32.xlu0 %v1181, 120
        %v1294 = vpop.permute.xlu0 %1293
        %1295 = vrot.lane.b32.xlu0 %v1184, 120
        %v1296 = vpop.permute.xlu0 %1295
        %v1305 = vadd.f32 %v1265, %v1282
        %v1306 = vadd.f32 %v1266, %v1284
        %v1307 = vadd.f32 %v1267, %v1286
        %v1308 = vadd.f32 %v1268, %v1288
        %v1309 = vadd.f32 %v1269, %v1290
        %v1310 = vadd.f32 %v1270, %v1292
        %v1311 = vadd.f32 %v1271, %v1294
        %v1312 = vadd.f32 %v1272, %v1296
        %v1313 = vmul.f32 %v1305, %v1220
        %v1314 = vmul.f32 %v1306, %v1222
        %v1315 = vmul.f32 %v1307, %v1224
        %v1316 = vmul.f32 %v1308, %v1226
        %v1317 = vmul.f32 %v1309, %v1228
        %v1318 = vmul.f32 %v1310, %v1230
        %v1319 = vmul.f32 %v1311, %v1232
        %v1320 = vmul.f32 %v1312, %v1234
        %vm1321 = vcmask 64512
        %1322 = vst.msk [vmem:[%s471] sm:$0xff] %vm1321, %v1313
        %1323 = vst.msk [vmem:[%s471 + $0x8] sm:$0xff] %vm1321, %v1314
        %1324 = vst.msk [vmem:[%s471 + $0x10] sm:$0xff] %vm1321, %v1315
        %1325 = vst.msk [vmem:[%s471 + $0x18] sm:$0xff] %vm1321, %v1316
        %1326 = vst.msk [vmem:[%s471 + $0x20] sm:$0xff] %vm1321, %v1317
        %1327 = vst.msk [vmem:[%s471 + $0x28] sm:$0xff] %vm1321, %v1318
        %1328 = vst.msk [vmem:[%s471 + $0x30] sm:$0xff] %vm1321, %v1319
        %1329 = vst.msk [vmem:[%s471 + $0x38] sm:$0xff] %vm1321, %v1320
        %v1330 = vmax.f32 %v1157, 0.0
        %v1331 = vmax.f32 %v1160, 0.0
        %v1332 = vmax.f32 %v1165, 0.0
        %v1333 = vmax.f32 %v1168, 0.0
        %v1334 = vmax.f32 %v1173, 0.0
        %v1335 = vmax.f32 %v1176, 0.0
        %v1336 = vmax.f32 %v1181, 0.0
        %v1337 = vmax.f32 %v1184, 0.0
        %v1338 = vsub.f32 %v1157, %v1330
        %v1339 = vsub.f32 %v1160, %v1331
        %v1340 = vsub.f32 %v1165, %v1332
        %v1341 = vsub.f32 %v1168, %v1333
        %v1342 = vsub.f32 %v1173, %v1334
        %v1343 = vsub.f32 %v1176, %v1335
        %v1344 = vsub.f32 %v1181, %v1336
        %v1345 = vsub.f32 %v1184, %v1337
        %v1346 = vmul.f32 %v1338, 1.442695
        %v1347 = vpow.pop %v1346
        %v1348 = vmul.f32 %v1339, 1.442695
        %v1349 = vpow.pop %v1348
        %v1350 = vmul.f32 %v1340, 1.442695
        %v1351 = vpow.pop %v1350
        %v1352 = vmul.f32 %v1341, 1.442695
        %v1353 = vpow.pop %v1352
        %v1354 = vmul.f32 %v1342, 1.442695
        %v1355 = vpow.pop %v1354
        %v1356 = vmul.f32 %v1343, 1.442695
        %v1357 = vpow.pop %v1356
        %v1358 = vmul.f32 %v1344, 1.442695
        %v1359 = vpow.pop %v1358
        %v1360 = vmul.f32 %v1345, 1.442695
        %v1361 = vpow.pop %v1360
        %v1362 = vsub.f32 0.0, %v1330
        %v1363 = vsub.f32 0.0, %v1331
        %v1364 = vsub.f32 0.0, %v1332
        %v1365 = vsub.f32 0.0, %v1333
        %v1366 = vsub.f32 0.0, %v1334
        %v1367 = vsub.f32 0.0, %v1335
        %v1368 = vsub.f32 0.0, %v1336
        %v1369 = vsub.f32 0.0, %v1337
        %v1370 = vmul.f32 %v1362, 1.442695
        %v1371 = vpow.pop %v1370
        %v1372 = vmul.f32 %v1363, 1.442695
        %v1373 = vpow.pop %v1372
        %v1374 = vmul.f32 %v1364, 1.442695
        %v1375 = vpow.pop %v1374
        %v1376 = vmul.f32 %v1365, 1.442695
        %v1377 = vpow.pop %v1376
        %v1378 = vmul.f32 %v1366, 1.442695
        %v1379 = vpow.pop %v1378
        %v1380 = vmul.f32 %v1367, 1.442695
        %v1381 = vpow.pop %v1380
        %v1382 = vmul.f32 %v1368, 1.442695
        %v1383 = vpow.pop %v1382
        %v1384 = vmul.f32 %v1369, 1.442695
        %v1385 = vpow.pop %v1384
        %v1386 = vadd.f32 %v1347, %v1371
        %v1387 = vadd.f32 %v1349, %v1373
        %v1388 = vadd.f32 %v1351, %v1375
        %v1389 = vadd.f32 %v1353, %v1377
        %v1390 = vadd.f32 %v1355, %v1379
        %v1391 = vadd.f32 %v1357, %v1381
        %v1392 = vadd.f32 %v1359, %v1383
        %v1393 = vadd.f32 %v1361, %v1385
        %v1394 = vlog2.pop %v1386
        %v1395 = vmul.f32 %v1394, 0.6931472
        %v1396 = vlog2.pop %v1387
        %v1397 = vmul.f32 %v1396, 0.6931472
        %v1398 = vlog2.pop %v1388
        %v1399 = vmul.f32 %v1398, 0.6931472
        %v1400 = vlog2.pop %v1389
        %v1401 = vmul.f32 %v1400, 0.6931472
        %v1402 = vlog2.pop %v1390
        %v1403 = vmul.f32 %v1402, 0.6931472
        %v1404 = vlog2.pop %v1391
        %v1405 = vmul.f32 %v1404, 0.6931472
        %v1406 = vlog2.pop %v1392
        %v1407 = vmul.f32 %v1406, 0.6931472
        %v1408 = vlog2.pop %v1393
        %v1409 = vmul.f32 %v1408, 0.6931472
        %v1410 = vsub.f32 %v1338, %v1395
        %v1411 = vsub.f32 %v1339, %v1397
        %v1412 = vsub.f32 %v1340, %v1399
        %v1413 = vsub.f32 %v1341, %v1401
        %v1414 = vsub.f32 %v1342, %v1403
        %v1415 = vsub.f32 %v1343, %v1405
        %v1416 = vsub.f32 %v1344, %v1407
        %v1417 = vsub.f32 %v1345, %v1409
        %v1418 = vsel %vm1321, %v1410, 0.0
        %1419 = vadd.xlane.f32.xlu0 %v1418
        %v1420 = vpop.xlane.xlu0 %1419
        %v1421 = vsel %vm1321, %v1411, 0.0
        %1422 = vadd.xlane.f32.xlu0 %v1421
        %v1423 = vpop.xlane.xlu0 %1422
        %v1424 = vsel %vm1321, %v1412, 0.0
        %1425 = vadd.xlane.f32.xlu0 %v1424
        %v1426 = vpop.xlane.xlu0 %1425
        %v1427 = vsel %vm1321, %v1413, 0.0
        %1428 = vadd.xlane.f32.xlu0 %v1427
        %v1429 = vpop.xlane.xlu0 %1428
        %v1430 = vsel %vm1321, %v1414, 0.0
        %1431 = vadd.xlane.f32.xlu0 %v1430
        %v1432 = vpop.xlane.xlu0 %1431
        %v1433 = vsel %vm1321, %v1415, 0.0
        %1434 = vadd.xlane.f32.xlu0 %v1433
        %v1435 = vpop.xlane.xlu0 %1434
        %v1436 = vsel %vm1321, %v1416, 0.0
        %1437 = vadd.xlane.f32.xlu0 %v1436
        %v1438 = vpop.xlane.xlu0 %1437
        %v1439 = vsel %vm1321, %v1417, 0.0
        %1440 = vadd.xlane.f32.xlu0 %v1439
        %v1441 = vpop.xlane.xlu0 %1440
        %v1442 = vadd.f32 %v1420, %v1423
        %v1443 = vadd.f32 %v1442, %v1426
        %v1444 = vadd.f32 %v1443, %v1429
        %v1445 = vadd.f32 %v1444, %v1432
        %v1446 = vadd.f32 %v1445, %v1435
        %v1447 = vadd.f32 %v1446, %v1438
        %v1448 = vadd.f32 %v1447, %v1441
        %v1449 = vrot.slane %v1448, 4
        %v1450 = vadd.f32 %v1448, %v1449
        %v1451 = vrot.slane %v1450, 2
        %v1452 = vadd.f32 %v1450, %v1451
        %v1453 = vrot.slane %v1452, 1
        %v1454 = vadd.f32 %v1452, %v1453
        %vm1455 = vcmask 0
        %1456 = vst.msk [vmem:[%s477] sm:$0x1] %vm1455, %v1454
        %s1457 = sand.u32 %s222, 1
        %s1458 = scalar_lea.sflag [#allocation5], %s1457
        %s1459 = sand.u32 %s222, 1
        %s1460 = smul.addr %s1459, 64
        %s1461 = scalar_lea.vmem [#allocation17], %s1460
        %s1462 = sand.u32 %s248, 1
        %s1463 = scalar_lea.sflag [#allocation19], %s1462
        %s1464 = sand.u32 %s248, 1
        %s1465 = scalar_lea.vmem [#allocation18], %s1464
        // Predicated region
        $region85: #{glow_forward.5} parent=51 // pred_check
          %p1466 = pneg %p232
        $region86: #{glow_forward.5} parent=51 // pred_check_branch
          %1468 = sbr.rel (%p1466) target = $region88
        $region87: #{glow_forward.5} parent=51 // pred_region
          %s1470 = ssub.s32 1024, 1024
          %1471 = vsyncadd %s1458, %s1470
          %s1472 = smul.addr %s36, 8
          %s1473 = smul.addr %s1472, 128
          %s1474 = scalar_lea.hbm %s8, %s1473
          %s1475 = sshll.u32 %s1461, 4
          %s1476 = int_to_ptr.vmem [resolvable:$true] %s1475
          %1481 = dma.vmem_to_hbm [thread:$0]  %s1476, 1024, %s1474, %s1458, 128, 128, 8
        $region88: #{glow_forward.5} parent=51 // pred_fallthru
          _
        // Predicated region
        $region89: #{glow_forward.5} parent=51 // pred_check
          %p1482 = pneg %p258
        $region90: #{glow_forward.5} parent=51 // pred_check_branch
          %1484 = sbr.rel (%p1482) target = $region92
        $region91: #{glow_forward.5} parent=51 // pred_region
          %s1486 = ssub.s32 16, 16
          %1487 = vsyncadd %s1463, %s1486
          %s1488 = smul.addr %s36, 16
          %s1489 = scalar_lea.hbm %s9, %s1488
          %s1491 = sshll.u32 %s1465, 4
          %s1492 = int_to_ptr.vmem [resolvable:$true] %s1491
          %1494 = dma.vmem_to_hbm [thread:$0]  %s1492, 16, %s1489, %s1463
        $region92: #{glow_forward.5} parent=51 // pred_fallthru
          _
      $region52: #{glow_forward.5} parent=5 // pred_fallthru
        _
      %p1495 = scmp.le.s32.totalorder 2, %s31
      // Predicated region
      $region93: #{glow_forward.5} parent=5 // pred_check
        %p1496 = pneg %p1495
      $region94: #{glow_forward.5} parent=5 // pred_check_branch
        %1498 = sbr.rel (%p1496) target = $region96
      $region95: #{glow_forward.5} parent=5 // pred_region
        %s1499 = ssub.s32 %s31, 2
        // Predicated region
        $region97: #{glow_forward.5} parent=95 // pred_check
          %p1500 = pneg %p238
        $region98: #{glow_forward.5} parent=95 // pred_check_branch
          %1502 = sbr.rel (%p1500) target = $region100
        $region99: #{glow_forward.5} parent=95 // pred_region
          %s1503 = sand.u32 %s223, 1
          %s1504 = scalar_lea.sflag [#allocation5], %s1503
          %s1505 = sand.u32 %s223, 1
          %s1506 = smul.addr %s1505, 64
          %s1507 = scalar_lea.vmem [#allocation17], %s1506
          %1508 = dma.done %s1504, 1024
        $region100: #{glow_forward.5} parent=95 // pred_fallthru
          _
        // Predicated region
        $region101: #{glow_forward.5} parent=95 // pred_check
          %p1509 = pneg %p264
        $region102: #{glow_forward.5} parent=95 // pred_check_branch
          %1511 = sbr.rel (%p1509) target = $region104
        $region103: #{glow_forward.5} parent=95 // pred_region
          %s1512 = sand.u32 %s249, 1
          %s1513 = scalar_lea.sflag [#allocation19], %s1512
          %s1514 = sand.u32 %s249, 1
          %s1515 = scalar_lea.vmem [#allocation18], %s1514
          %1516 = dma.done %s1513, 16
        $region104: #{glow_forward.5} parent=95 // pred_fallthru
          _
      $region96: #{glow_forward.5} parent=5 // pred_fallthru
        _
    $region6: #{glow_forward.5} parent=1 // loop_footer
      %s35 = sadd.s32 1, %s31
    $region7: #{glow_forward.5} parent=1 // loop_footer_branch
      %30 = sbr.rel target = $region3
    $region8: #{glow_forward.5} parent=1 // loop_exit
      _
    %1517 = vsyncpa [#allocation4], 1
    %s1518 = scalar_lea.sflag [#allocation4], 1
    %1519 = vsyncpa %s1518, 1
    %1520 = vsyncpa [#allocation7], 1
    %1521 = vsyncpa [#allocation10], 1
    %1522 = vsyncpa [#allocation13], 1
    %s1523 = scalar_lea.sflag [#allocation13], 1
    %1524 = vsyncpa %s1523, 1
    %1525 = vsyncpa [#allocation16], 1
    %1526 = vsyncpa [#allocation5], 1
    %s1527 = scalar_lea.sflag [#allocation5], 1
    %1528 = vsyncpa %s1527, 1
    %1529 = vsyncpa [#allocation19], 1
    %s1530 = scalar_lea.sflag [#allocation19], 1
    %1531 = vsyncpa %s1530, 1

</llo_original>
